<compile_context>
chip_gen: v5e
topology: v5e:2x2
jax: 0.10.0
libtpu: 0.0.40
codegen_flags: <defaults>
</compile_context>

<pallas_src>
import functools

import jax
import jax.numpy as jnp
from jax.experimental import pallas as pl
from jax.experimental.pallas import tpu as pltpu


def _sort_rows(v, tri, k_lane):
    """Sort every row of v ([Q, N] f32) ascending; returns [Q, 1, N].

    Exact rank-then-gather sort (lax.sort does not lower in Mosaic):
      rank[q, n]    = #{m : element m sorts strictly before element n} (stable ties)
      onehot[q,n,k] = (rank[q, n] == k)          -- exactly one 1 per (q, n)
      sorted[q, k]  = sum_n v[q, n] * onehot[q, n, k]
    The rank count is a lane-axis reduction (XLU/VPU, off the MXU); the gather
    is two single-pass bf16 MXU matmuls on a hi/lo split of v (near-exact).
    """
    vi = v[:, :, None]                                   # [Q, N, 1] element n (sublanes)
    vj = v[:, None, :]                                   # [Q, 1, N] element m (lanes)
    # less[q, n, m] = True iff element m sorts strictly before element n
    less = (vj < vi) | ((vj == vi) & tri)                # bool [Q, N, N]

    # rank[q, n] = sum_m less[q, n, m]  -- lane reduction, exact integer count in f32
    rank = jnp.sum(less.astype(jnp.float32), axis=2, keepdims=True)   # [Q, N, 1]

    # one-hot destination mask; 0/1 values are exact in bf16
    onehot = (rank == k_lane).astype(jnp.bfloat16)                     # [Q, N, N]

    # gather to sorted order: batched [1,N] @ [N,N] bf16 matmuls, f32 accumulation.
    # hi/lo split keeps the gathered values accurate to ~2^-18 relative.
    v_hi = v.astype(jnp.bfloat16)
    v_lo = (v - v_hi.astype(jnp.float32)).astype(jnp.bfloat16)
    dn = (((2,), (1,)), ((0,), (0,)))
    s_hi = jax.lax.dot_general(v_hi[:, None, :], onehot, dn,
                               preferred_element_type=jnp.float32)
    s_lo = jax.lax.dot_general(v_lo[:, None, :], onehot, dn,
                               preferred_element_type=jnp.float32)
    return s_hi + s_lo                                                 # [Q, 1, N]


def _swd_kernel(xy_ref, pr_ref, out_ref, *, inv_p):
    c = pl.program_id(1)
    last = pl.num_programs(1) - 1

    xy = xy_ref[0]          # [2*Dp, N]   lane-dense points (x rows then y rows)
    pr = pr_ref[0, 0]       # [2*Pc, 2*Dp] stacked (proj|0) / (0|proj) rows for this chunk
    Q = pr.shape[0]         # 2*Pc
    Pc = Q // 2
    N = xy.shape[1]

    # Fused projection matmul (tiny K dim; HIGHEST keeps v f32-accurate so the
    # sort order matches the reference).  Rows [0,Pc) project x, [Pc,2Pc) project y.
    v = jax.lax.dot_general(
        pr, xy, (((1,), (0,)), ((), ())),
        precision=jax.lax.Precision.HIGHEST,
        preferred_element_type=jnp.float32)                            # [2Pc, N]

    # Per-chunk index constants (regenerated with iota; nothing large persists).
    n_idx = jax.lax.broadcasted_iota(jnp.int32, (N, N), 0)   # row  = destination n
    m_idx = jax.lax.broadcasted_iota(jnp.int32, (N, N), 1)   # col  = source m / dest k
    tri = (m_idx < n_idx)[None]                              # [1,N,N] stable tie-break
    k_lane = m_idx.astype(jnp.float32)[None]                 # [1,N,N] destination index

    s = _sort_rows(v, tri, k_lane)                           # [2Pc, 1, N] sorted rows
    d = s[:Pc] - s[Pc:]                                      # [Pc, 1, N]
    sq = d * d                                               # degree == 2.0 -> |diff|^2

    part = jnp.sum(jnp.sum(sq, axis=2, keepdims=True), axis=0, keepdims=True)  # [1,1,1]

    @pl.when(c == 0)
    def _():
        out_ref[...] = jnp.zeros_like(out_ref)

    out_ref[...] += part                                     # accumulate over projection chunks

    @pl.when(c == last)
    def _():
        # first_moment = sqrt( mean_p( sum_n sq[p, n] ) )
        out_ref[...] = jnp.sqrt(out_ref[...] * inv_p)


def _pick_vmem_limit():
    try:
        cap = int(pltpu.get_tpu_info().vmem_capacity_bytes)
    except Exception:
        cap = 64 * 1024 * 1024          # conservative (v7x per-TC physical VMEM)
    # ~3/4 of physical, capped (v6e/v5e -> ~96 MiB, v7x -> ~48 MiB)
    return int(min(cap * 3 // 4, 100 * 1024 * 1024))


def swd_forward(x, y, num_projs, key, proj_chunk=None):
    """Pallas equivalent of SWD(num_projs).forward(x, y). Returns ({'loss': scalar}, proj)."""
    B, N, D = x.shape
    assert y.shape == x.shape
    P = num_projs
    Dp = 8  # zero-pad coordinate dim 3 -> 8 (dot products unchanged)

    # torch.randn analogue, unit-normalized along the coordinate dim.
    proj = jax.random.normal(key, (B, P, D), dtype=jnp.float32)
    proj = proj / jnp.sqrt(jnp.sum(proj * proj, axis=2, keepdims=True))

    # Lane-dense point layout [B, 2*Dp, N]: x coords in rows [0, Dp), y in [Dp, 2*Dp).
    xt = jnp.pad(jnp.transpose(x, (0, 2, 1)), ((0, 0), (0, Dp - D), (0, 0)))
    yt = jnp.pad(jnp.transpose(y, (0, 2, 1)), ((0, 0), (0, Dp - D), (0, 0)))
    xy = jnp.concatenate([xt, yt], axis=1)                    # [B, 2*Dp, N]

    # Chunk the projection axis so per-chunk [2Pc, N, N] intermediates stay inside
    # a conservative VMEM budget on all generations (v7x has 64 MiB/TC).
    if proj_chunk is None:
        budget = 20 * 1024 * 1024
        per_proj = 2 * N * N * (2 + 4)   # bf16 one-hot + streamed f32 temps per x/y pair
        proj_chunk = max(1, min(P, budget // max(per_proj, 1)))
    Pc = max(1, min(P, int(proj_chunk)))
    while P % Pc:
        Pc -= 1
    C = P // Pc

    # Per-chunk stacked projection rows [B, C, 2*Pc, 2*Dp]:
    #   rows [0, Pc)   = (proj | 0)  -> project the x cloud
    #   rows [Pc, 2Pc) = (0 | proj)  -> project the y cloud
    pp = jnp.pad(proj, ((0, 0), (0, 0), (0, Dp - D)))         # [B, P, Dp]
    z = jnp.zeros_like(pp)
    prx = jnp.concatenate([pp, z], axis=2).reshape(B, C, Pc, 2 * Dp)
    pry = jnp.concatenate([z, pp], axis=2).reshape(B, C, Pc, 2 * Dp)
    pr = jnp.concatenate([prx, pry], axis=2)                  # [B, C, 2*Pc, 2*Dp]

    kernel = functools.partial(_swd_kernel, inv_p=1.0 / P)

    per_batch = pl.pallas_call(
        kernel,
        out_shape=jax.ShapeDtypeStruct((B, 1, 1), jnp.float32),
        grid_spec=pltpu.PrefetchScalarGridSpec(
            num_scalar_prefetch=0,
            grid=(B, C),                                      # reduction (chunk) axis last
            in_specs=[
                pl.BlockSpec((1, 2 * Dp, N), lambda b, c: (b, 0, 0)),
                pl.BlockSpec((1, 1, 2 * Pc, 2 * Dp), lambda b, c: (b, c, 0, 0)),
            ],
            out_specs=pl.BlockSpec((1, 1, 1), lambda b, c: (b, 0, 0)),
        ),
        compiler_params=pltpu.CompilerParams(
            dimension_semantics=("parallel", "arbitrary"),
            vmem_limit_bytes=_pick_vmem_limit(),
        ),
    )(xy, pr)

    # mean over the batch dim (dim=0 in the torch code) -- trivial glue.
    return {"loss": jnp.mean(per_batch[:, 0, 0])}, proj


def swd_reference(x, y, proj):
    """Pure-JAX mirror of compute_practical_moments_sw (first moment), given projections."""
    hp = jax.lax.Precision.HIGHEST
    xproj = jnp.einsum("bnd,bpd->bpn", x, proj, precision=hp)
    yproj = jnp.einsum("bnd,bpd->bpn", y, proj, precision=hp)
    sx = jnp.sort(xproj, axis=-1)
    sy = jnp.sort(yproj, axis=-1)
    s = jnp.sum(jnp.abs(sx - sy) ** 2.0, axis=2)   # [B, P]
    first = jnp.sqrt(jnp.mean(s, axis=1))          # [B]
    return jnp.mean(first, axis=0)


if __name__ == "__main__":
    key = jax.random.PRNGKey(0)
    kx, ky, kproj = jax.random.split(key, 3)
    B, N, D = 2, 128, 3      # batch, points per cloud, point dim
    num_projs = 16           # SWD(num_projs=16)

    x = jax.random.normal(kx, (B, N, D), dtype=jnp.float32)
    y = jax.random.normal(ky, (B, N, D), dtype=jnp.float32)

    # proj_chunk=8 -> two projection chunks per batch element, exercising the
    # grid-axis accumulator path (the heuristic would otherwise pick one chunk).
    out, proj = swd_forward(x, y, num_projs, kproj, proj_chunk=8)
    loss = jax.block_until_ready(out["loss"])

    ref = swd_reference(x, y, proj)
    assert jnp.allclose(loss, ref, rtol=1e-3, atol=1e-4), (float(loss), float(ref))
    print("KERNEL_OK")
</pallas_src>

<mosaic_0001>
module attributes {stable_mosaic.version = 11 : i64} {
  func.func @_swd_kernel(%arg0: i32, %arg1: i32, %arg2: memref<1x16x128xf32, #tpu.memory_space<vmem>>, %arg3: memref<1x1x16x16xf32, #tpu.memory_space<vmem>>, %arg4: memref<1x1x1xf32, #tpu.memory_space<vmem>>) attributes {dimension_semantics = [#tpu.dimension_semantics<parallel>, #tpu.dimension_semantics<arbitrary>], iteration_bounds = array<i64: 2, 2>, scalar_prefetch = 0 : i64, scratch_operands = 0 : i64, tpu.core_type = #tpu.core_type<tc>, window_params = [{transform_indices = @transform_0, window_bounds = array<i64: 1, 16, 128>}, {transform_indices = @transform_1, window_bounds = array<i64: 1, 1, 16, 16>}, {transform_indices = @transform_2, window_bounds = array<i64: 1, 1, 1>}]} {
    %c0 = arith.constant 0 : index
    %c0_0 = arith.constant 0 : index
    %c0_1 = arith.constant 0 : index
    %0 = vector.load %arg2[%c0, %c0_0, %c0_1] : memref<1x16x128xf32, #tpu.memory_space<vmem>>, vector<1x16x128xf32>
    %1 = vector.shape_cast %0 : vector<1x16x128xf32> to vector<16x128xf32>
    %c0_2 = arith.constant 0 : index
    %c0_3 = arith.constant 0 : index
    %c0_4 = arith.constant 0 : index
    %c0_5 = arith.constant 0 : index
    %2 = vector.load %arg3[%c0_2, %c0_3, %c0_4, %c0_5] : memref<1x1x16x16xf32, #tpu.memory_space<vmem>>, vector<1x1x16x16xf32>
    %3 = vector.shape_cast %2 : vector<1x1x16x16xf32> to vector<16x16xf32>
    %cst = arith.constant dense<0.000000e+00> : vector<16x128xf32>
    %4 = tpu.matmul %3, %1, %cst {dimension_numbers = #tpu.dot_dimension_numbers<[1], [0], [0], [1], [0, 0, 1, 1], [], []>, precision = #tpu.contract_precision<fp32>} : vector<16x16xf32>, vector<16x128xf32>, vector<16x128xf32> -> vector<16x128xf32>
    %5 = tpu.iota {dimensions = array<i32: 0>} : vector<128x128xi32>
    %6 = tpu.iota {dimensions = array<i32: 1>} : vector<128x128xi32>
    %7 = arith.cmpi slt, %6, %5 : vector<128x128xi32>
    %8 = vector.shape_cast %7 : vector<128x128xi1> to vector<1x128x128xi1>
    %9 = arith.sitofp %6 : vector<128x128xi32> to vector<128x128xf32>
    %10 = vector.shape_cast %9 : vector<128x128xf32> to vector<1x128x128xf32>
    %11 = vector.shape_cast %4 : vector<16x128xf32> to vector<16x128x1xf32>
    %12 = vector.shape_cast %4 : vector<16x128xf32> to vector<16x1x128xf32>
    %13 = vector.broadcast %12 : vector<16x1x128xf32> to vector<16x128x128xf32>
    %14 = vector.broadcast %11 : vector<16x128x1xf32> to vector<16x128x128xf32>
    %15 = arith.cmpf olt, %13, %14 : vector<16x128x128xf32>
    %16 = vector.broadcast %12 : vector<16x1x128xf32> to vector<16x128x128xf32>
    %17 = vector.broadcast %11 : vector<16x128x1xf32> to vector<16x128x128xf32>
    %18 = arith.cmpf oeq, %16, %17 : vector<16x128x128xf32>
    %19 = vector.broadcast %8 : vector<1x128x128xi1> to vector<16x128x128xi1>
    %20 = arith.andi %18, %19 : vector<16x128x128xi1>
    %21 = arith.ori %15, %20 : vector<16x128x128xi1>
    %22 = arith.extui %21 : vector<16x128x128xi1> to vector<16x128x128xi32>
    %23 = arith.sitofp %22 : vector<16x128x128xi32> to vector<16x128x128xf32>
    %cst_6 = arith.constant dense<0.000000e+00> : vector<16x128xf32>
    %24 = vector.multi_reduction <add>, %23, %cst_6 [2] : vector<16x128x128xf32> to vector<16x128xf32>
    %25 = vector.shape_cast %24 : vector<16x128xf32> to vector<16x128x1xf32>
    %26 = vector.broadcast %25 : vector<16x128x1xf32> to vector<16x128x128xf32>
    %27 = vector.broadcast %10 : vector<1x128x128xf32> to vector<16x128x128xf32>
    %28 = arith.cmpf oeq, %26, %27 : vector<16x128x128xf32>
    %29 = arith.extui %28 : vector<16x128x128xi1> to vector<16x128x128xi32>
    %30 = arith.sitofp %29 : vector<16x128x128xi32> to vector<16x128x128xf32>
    %31 = arith.truncf %30 : vector<16x128x128xf32> to vector<16x128x128xbf16>
    %32 = arith.truncf %4 : vector<16x128xf32> to vector<16x128xbf16>
    %33 = arith.extf %32 : vector<16x128xbf16> to vector<16x128xf32>
    %34 = arith.subf %4, %33 : vector<16x128xf32>
    %35 = arith.truncf %34 : vector<16x128xf32> to vector<16x128xbf16>
    %36 = vector.shape_cast %32 : vector<16x128xbf16> to vector<16x1x128xbf16>
    %cst_7 = arith.constant dense<0.000000e+00> : vector<16x1x128xf32>
    %37 = tpu.matmul %36, %31, %cst_7 {dimension_numbers = #tpu.dot_dimension_numbers<[2], [1], [1], [2], [0, 0, 0, 1, 1, 2], [0], [0]>} : vector<16x1x128xbf16>, vector<16x128x128xbf16>, vector<16x1x128xf32> -> vector<16x1x128xf32>
    %38 = vector.shape_cast %35 : vector<16x128xbf16> to vector<16x1x128xbf16>
    %cst_8 = arith.constant dense<0.000000e+00> : vector<16x1x128xf32>
    %39 = tpu.matmul %38, %31, %cst_8 {dimension_numbers = #tpu.dot_dimension_numbers<[2], [1], [1], [2], [0, 0, 0, 1, 1, 2], [0], [0]>} : vector<16x1x128xbf16>, vector<16x128x128xbf16>, vector<16x1x128xf32> -> vector<16x1x128xf32>
    %40 = arith.addf %37, %39 : vector<16x1x128xf32>
    %41 = vector.extract_strided_slice %40 {offsets = [0, 0, 0], sizes = [8, 1, 128], strides = [1, 1, 1]} : vector<16x1x128xf32> to vector<8x1x128xf32>
    %42 = vector.extract_strided_slice %40 {offsets = [8, 0, 0], sizes = [8, 1, 128], strides = [1, 1, 1]} : vector<16x1x128xf32> to vector<8x1x128xf32>
    %43 = arith.subf %41, %42 : vector<8x1x128xf32>
    %44 = arith.mulf %43, %43 : vector<8x1x128xf32>
    %cst_9 = arith.constant dense<0.000000e+00> : vector<8x1xf32>
    %45 = vector.multi_reduction <add>, %44, %cst_9 [2] : vector<8x1x128xf32> to vector<8x1xf32>
    %46 = vector.shape_cast %45 : vector<8x1xf32> to vector<8x1x1xf32>
    %cst_10 = arith.constant dense<0.000000e+00> : vector<1x1xf32>
    %47 = vector.multi_reduction <add>, %46, %cst_10 [0] : vector<8x1x1xf32> to vector<1x1xf32>
    %48 = vector.shape_cast %47 : vector<1x1xf32> to vector<1x1x1xf32>
    %c0_i32 = arith.constant 0 : i32
    %49 = arith.cmpi eq, %arg1, %c0_i32 : i32
    %50 = arith.extui %49 : i1 to i32
    %c0_i32_11 = arith.constant 0 : i32
    %51 = arith.cmpi ne, %50, %c0_i32_11 : i32
    scf.if %51 {
      %cst_19 = arith.constant 0.000000e+00 : f32
      %58 = vector.broadcast %cst_19 : f32 to vector<1x1x1xf32>
      %c0_20 = arith.constant 0 : index
      %c0_21 = arith.constant 0 : index
      %c0_22 = arith.constant 0 : index
      %59 = vector.load %arg4[%c0_20, %c0_21, %c0_22] : memref<1x1x1xf32, #tpu.memory_space<vmem>>, vector<1x1x1xf32>
      tpu.vector_store %arg4[%c0_20, %c0_21, %c0_22], %58 {strides = array<i32>} : memref<1x1x1xf32, #tpu.memory_space<vmem>>, vector<1x1x1xf32>,
    } else {
    }
    %c0_12 = arith.constant 0 : index
    %c0_13 = arith.constant 0 : index
    %c0_14 = arith.constant 0 : index
    %52 = vector.load %arg4[%c0_12, %c0_13, %c0_14] : memref<1x1x1xf32, #tpu.memory_space<vmem>>, vector<1x1x1xf32>
    %53 = arith.addf %52, %48 : vector<1x1x1xf32>
    %c0_15 = arith.constant 0 : index
    %c0_16 = arith.constant 0 : index
    %c0_17 = arith.constant 0 : index
    %54 = vector.load %arg4[%c0_15, %c0_16, %c0_17] : memref<1x1x1xf32, #tpu.memory_space<vmem>>, vector<1x1x1xf32>
    tpu.vector_store %arg4[%c0_15, %c0_16, %c0_17], %53 {strides = array<i32>} : memref<1x1x1xf32, #tpu.memory_space<vmem>>, vector<1x1x1xf32>,
    %c1_i32 = arith.constant 1 : i32
    %55 = arith.cmpi eq, %arg1, %c1_i32 : i32
    %56 = arith.extui %55 : i1 to i32
    %c0_i32_18 = arith.constant 0 : i32
    %57 = arith.cmpi ne, %56, %c0_i32_18 : i32
    scf.if %57 {
      %c0_19 = arith.constant 0 : index
      %c0_20 = arith.constant 0 : index
      %c0_21 = arith.constant 0 : index
      %58 = vector.load %arg4[%c0_19, %c0_20, %c0_21] : memref<1x1x1xf32, #tpu.memory_space<vmem>>, vector<1x1x1xf32>
      %cst_22 = arith.constant 6.250000e-02 : f32
      %59 = vector.broadcast %cst_22 : f32 to vector<1x1x1xf32>
      %60 = arith.mulf %58, %59 : vector<1x1x1xf32>
      %61 = math.sqrt %60 : vector<1x1x1xf32>
      %c0_23 = arith.constant 0 : index
      %c0_24 = arith.constant 0 : index
      %c0_25 = arith.constant 0 : index
      %62 = vector.load %arg4[%c0_23, %c0_24, %c0_25] : memref<1x1x1xf32, #tpu.memory_space<vmem>>, vector<1x1x1xf32>
      tpu.vector_store %arg4[%c0_23, %c0_24, %c0_25], %61 {strides = array<i32>} : memref<1x1x1xf32, #tpu.memory_space<vmem>>, vector<1x1x1xf32>,
    } else {
    }
    return
  }
  func.func @transform_0(%arg0: i32, %arg1: i32) -> (i32, i32, i32) {
    %c0_i32 = arith.constant 0 : i32
    %c0_i32_0 = arith.constant 0 : i32
    %c0_i32_1 = arith.constant 0 : i32
    return %arg0, %c0_i32, %c0_i32_0 : i32, i32, i32
  }
  func.func @transform_1(%arg0: i32, %arg1: i32) -> (i32, i32, i32, i32) {
    %c0_i32 = arith.constant 0 : i32
    %c0_i32_0 = arith.constant 0 : i32
    %c0_i32_1 = arith.constant 0 : i32
    return %arg0, %arg1, %c0_i32, %c0_i32_0 : i32, i32, i32, i32
  }
  func.func @transform_2(%arg0: i32, %arg1: i32) -> (i32, i32, i32) {
    %c0_i32 = arith.constant 0 : i32
    %c0_i32_0 = arith.constant 0 : i32
    %c0_i32_1 = arith.constant 0 : i32
    return %arg0, %c0_i32, %c0_i32_0 : i32, i32, i32
  }
}

</mosaic_0001>

<llo_original>
// kernel: tpu_custom_call.1
$region0: #{tpu_custom_call.1}
  #allocation0 [shape = 'u32[]', space=smem, size = 0x4, offset = 0x4, fixed_abs, tag = 'smem constant byte address 0x4 - core index']
  #allocation1 [shape = 'u32[72,128]{1,0:T(1,128)}', space=vmem, size = 0x9000, scoped, tag = 'internal scratch']
  %s0 = inlined_call_operand.hbm [shape: f32[2,16,128], index: 0, kind: input, shape index: {}]
  %s1 = inlined_call_operand.hbm [shape: f32[2,2,16,16], index: 1, kind: input, shape index: {}]
  %s2 = inlined_call_operand.vmem [shape: f32[2,1,1], index: 2, kind: output, shape index: {}]
  %s3 = sld [smem:[#allocation0]]
  $region57: #{tpu_custom_call.1} parent=0
    _
  %s5 = ssub.s32 1, %s3
  %s6 = scalar_select 0, %s5, %s3
  $region1: #{tpu_custom_call.1} parent=0
    #allocation2 [shape = 'u8[16384]{0}', space=vmem, size = 0x4000, scoped, tag = 'input window, operand 0']
    #allocation3 [shape = 's32[2]{0}', space=sflag, size = 0x8, scoped, tag = 'scoped memory for tpu_custom_call.1']
    #allocation4 [shape = 'u8[16384]{0}', space=vmem, size = 0x4000, scoped, tag = 'input window, operand 1']
    #allocation5 [shape = 's32[2]{0}', space=sflag, size = 0x8, scoped, tag = 'scoped memory for tpu_custom_call.1']
    %7 = vsyncpa [#allocation3], 0
    %s8 = scalar_lea.sflag [#allocation3], 1
    %9 = vsyncpa %s8, 0
    %10 = vsyncpa [#allocation5], 0
    %s11 = scalar_lea.sflag [#allocation5], 1
    %12 = vsyncpa %s11, 0
    loop: start=0, step=1, limit=6
    $region2: #{tpu_custom_call.1} parent=1 // loop_pre_header
      _
    $region3: #{tpu_custom_call.1} parent=1 // loop_header
      %s14 = sphi 0, %s18
      %p15 = scmp.ge.s32.totalorder %s14, 6
      %s21 = sphi 0, %s33
      %s22 = sphi 0, %s29
      %s23 = sphi 0, %s21
      %s24 = sphi 0, %s22
      %s25 = sphi 0, %s23
      %s26 = sphi 0, %s24
      %s36 = sphi 0, %s38
      %s39 = sphi 0, %s36
      %s40 = sphi 0, %s39
      %s56 = sphi 0, %s40
      %s64 = sphi 0, %s66
      %s67 = sphi 0, %s64
      %s68 = sphi 0, %s67
      %s84 = sphi 0, %s68
      %s90 = sphi 0, %s92
      %s93 = sphi 0, %s90
      %s94 = sphi 0, %s93
      %s110 = sphi 0, %s94
    $region4: #{tpu_custom_call.1} parent=1 // loop_header_branch
      %17 = sbr.rel (%p15) target = $region8
    $region5: #{tpu_custom_call.1} parent=1 // loop_body
      %s19 = ssub.s32 %s14, 1
      %s20 = ssub.s32 %s14, 2
      %s27 = sadd.s32 1, %s22
      %p28 = scmp.ge.s32.totalorder %s27, 2
      %s29 = scalar_select %p28, 0, %s27
      %s30 = sadd.s32 1, %s21
      %s31 = scalar_select %p28, %s30, %s21
      %p32 = scmp.ge.s32.totalorder %s31, 2
      %s33 = scalar_select %p32, 0, %s31
      %s34 = ssub.s32 %s21, %s33
      %p35 = scmp.eq.s32.totalorder %s34, 0
      %s37 = sadd.s32 %s36, 1
      %s38 = scalar_select %p35, %s36, %s37
      %p41 = pneg %p35
      %p42 = scmp.eq.s32.totalorder %s14, 3
      %p43 = por %p41, %p42
      %p44 = scmp.ne.s32.totalorder %s36, %s39
      %p45 = scmp.eq.s32.totalorder %s14, 0
      %p46 = por %p44, %p45
      %p47 = scmp.ne.s32.totalorder %s36, %s39
      %p48 = scmp.eq.s32.totalorder %s19, 3
      %p49 = por %p47, %p48
      %p50 = scmp.ne.s32.totalorder %s39, %s40
      %p51 = scmp.eq.s32.totalorder %s19, 0
      %p52 = por %p50, %p51
      %p53 = scmp.ne.s32.totalorder %s39, %s40
      %p54 = scmp.eq.s32.totalorder %s20, 3
      %p55 = por %p53, %p54
      %p57 = scmp.ne.s32.totalorder %s40, %s56
      %p58 = scmp.eq.s32.totalorder %s20, 0
      %p59 = por %p57, %p58
      %s60 = ssub.s32 %s21, %s33
      %s61 = ssub.s32 %s22, %s29
      %s62 = sor.u32 %s60, %s61
      %p63 = scmp.eq.s32.totalorder %s62, 0
      %s65 = sadd.s32 %s64, 1
      %s66 = scalar_select %p63, %s64, %s65
      %p69 = pneg %p63
      %p70 = scmp.eq.s32.totalorder %s14, 3
      %p71 = por %p69, %p70
      %p72 = scmp.ne.s32.totalorder %s64, %s67
      %p73 = scmp.eq.s32.totalorder %s14, 0
      %p74 = por %p72, %p73
      %p75 = scmp.ne.s32.totalorder %s64, %s67
      %p76 = scmp.eq.s32.totalorder %s19, 3
      %p77 = por %p75, %p76
      %p78 = scmp.ne.s32.totalorder %s67, %s68
      %p79 = scmp.eq.s32.totalorder %s19, 0
      %p80 = por %p78, %p79
      %p81 = scmp.ne.s32.totalorder %s67, %s68
      %p82 = scmp.eq.s32.totalorder %s20, 3
      %p83 = por %p81, %p82
      %p85 = scmp.ne.s32.totalorder %s68, %s84
      %p86 = scmp.eq.s32.totalorder %s20, 0
      %p87 = por %p85, %p86
      %s88 = ssub.s32 %s21, %s33
      %p89 = scmp.eq.s32.totalorder %s88, 0
      %s91 = sadd.s32 %s90, 1
      %s92 = scalar_select %p89, %s90, %s91
      %p95 = pneg %p89
      %p96 = scmp.eq.s32.totalorder %s14, 3
      %p97 = por %p95, %p96
      %p98 = scmp.ne.s32.totalorder %s90, %s93
      %p99 = scmp.eq.s32.totalorder %s14, 0
      %p100 = por %p98, %p99
      %p101 = scmp.ne.s32.totalorder %s90, %s93
      %p102 = scmp.eq.s32.totalorder %s19, 3
      %p103 = por %p101, %p102
      %p104 = scmp.ne.s32.totalorder %s93, %s94
      %p105 = scmp.eq.s32.totalorder %s19, 0
      %p106 = por %p104, %p105
      %p107 = scmp.ne.s32.totalorder %s93, %s94
      %p108 = scmp.eq.s32.totalorder %s20, 3
      %p109 = por %p107, %p108
      %p111 = scmp.ne.s32.totalorder %s94, %s110
      %p112 = scmp.eq.s32.totalorder %s20, 0
      %p113 = por %p111, %p112
      %p114 = scmp.le.s32.totalorder 1, %s14
      %p115 = scmp.lt.s32.totalorder %s14, 5
      %p116 = pnand %p114, %p115
      %p117 = pneg %p116
      // Predicated region
      $region9: #{tpu_custom_call.1} parent=5 // pred_check
        _
      $region10: #{tpu_custom_call.1} parent=5 // pred_check_branch
        %119 = sbr.rel (%p116) target = $region12
      $region11: #{tpu_custom_call.1} parent=5 // pred_region
        %s120 = ssub.s32 %s14, 1
      $region12: #{tpu_custom_call.1} parent=5 // pred_fallthru
        _
      %p121 = scmp.lt.s32.totalorder %s14, 4
      // Predicated region
      $region13: #{tpu_custom_call.1} parent=5 // pred_check
        %p122 = pneg %p121
      $region14: #{tpu_custom_call.1} parent=5 // pred_check_branch
        %124 = sbr.rel (%p122) target = $region16
      $region15: #{tpu_custom_call.1} parent=5 // pred_region
        // Predicated region
        $region17: #{tpu_custom_call.1} parent=15 // pred_check
          %p125 = pneg %p46
        $region18: #{tpu_custom_call.1} parent=15 // pred_check_branch
          %127 = sbr.rel (%p125) target = $region20
        $region19: #{tpu_custom_call.1} parent=15 // pred_region
          %s128 = sand.u32 %s36, 1
          %s129 = scalar_lea.sflag [#allocation3], %s128
          %s130 = sand.u32 %s36, 1
          %s131 = smul.addr %s130, 16
          %s132 = scalar_lea.vmem [#allocation2], %s131
          %134 = vsyncadd %s129, 0
          %s135 = smul.addr %s21, 2
          %s136 = smul.addr %s135, 8
          %s137 = scalar_lea.hbm %s0, %s136
          %s138 = sshll.u32 %s137, 4
          %s139 = int_to_ptr.hbm [resolvable:$true] %s138
          %s140 = sshll.u32 %s132, 4
          %s141 = int_to_ptr.vmem [resolvable:$true] %s140
          %146 = dma.hbm_to_vmem [thread:$0]  %s139, 256, %s141, %s129, 128, 128, 8
        $region20: #{tpu_custom_call.1} parent=15 // pred_fallthru
          _
        // Predicated region
        $region21: #{tpu_custom_call.1} parent=15 // pred_check
          %p147 = pneg %p74
        $region22: #{tpu_custom_call.1} parent=15 // pred_check_branch
          %149 = sbr.rel (%p147) target = $region24
        $region23: #{tpu_custom_call.1} parent=15 // pred_region
          %s150 = sand.u32 %s64, 1
          %s151 = scalar_lea.sflag [#allocation5], %s150
          %s152 = sand.u32 %s64, 1
          %s153 = smul.addr %s152, 16
          %s154 = scalar_lea.vmem [#allocation4], %s153
          %156 = vsyncadd %s151, 0
          %s157 = smul.addr %s22, 2
          %s158 = smul.addr %s21, 4
          %s159 = sadd.s32 %s157, %s158
          %s160 = smul.addr %s159, 8
          %s161 = scalar_lea.hbm %s1, %s160
          %s162 = sshll.u32 %s161, 4
          %s163 = int_to_ptr.hbm [resolvable:$true] %s162
          %s164 = sshll.u32 %s154, 4
          %s165 = int_to_ptr.vmem [resolvable:$true] %s164
          %170 = dma.hbm_to_vmem [thread:$0]  %s163, 256, %s165, %s151, 128, 128, 8
        $region24: #{tpu_custom_call.1} parent=15 // pred_fallthru
          _
      $region16: #{tpu_custom_call.1} parent=5 // pred_fallthru
        _
      %p171 = scmp.le.s32.totalorder 1, %s14
      %p172 = scmp.lt.s32.totalorder %s14, 5
      %p173 = pnand %p171, %p172
      %p174 = pneg %p173
      // Predicated region
      $region25: #{tpu_custom_call.1} parent=5 // pred_check
        _
      $region26: #{tpu_custom_call.1} parent=5 // pred_check_branch
        %176 = sbr.rel (%p173) target = $region28
      $region27: #{tpu_custom_call.1} parent=5 // pred_region
        %s177 = ssub.s32 %s14, 1
        %s178 = sand.u32 %s39, 1
        %s179 = scalar_lea.sflag [#allocation3], %s178
        %s180 = sand.u32 %s39, 1
        %s181 = smul.addr %s180, 16
        %s182 = scalar_lea.vmem [#allocation2], %s181
        // Predicated region
        $region29: #{tpu_custom_call.1} parent=27 // pred_check
          %p183 = pneg %p52
        $region30: #{tpu_custom_call.1} parent=27 // pred_check_branch
          %185 = sbr.rel (%p183) target = $region32
        $region31: #{tpu_custom_call.1} parent=27 // pred_region
          %187 = dma.done %s179, 256
        $region32: #{tpu_custom_call.1} parent=27 // pred_fallthru
          _
        %s188 = sand.u32 %s67, 1
        %s189 = scalar_lea.sflag [#allocation5], %s188
        %s190 = sand.u32 %s67, 1
        %s191 = smul.addr %s190, 16
        %s192 = scalar_lea.vmem [#allocation4], %s191
        // Predicated region
        $region33: #{tpu_custom_call.1} parent=27 // pred_check
          %p193 = pneg %p80
        $region34: #{tpu_custom_call.1} parent=27 // pred_check_branch
          %195 = sbr.rel (%p193) target = $region36
        $region35: #{tpu_custom_call.1} parent=27 // pred_region
          %197 = dma.done %s189, 256
        $region36: #{tpu_custom_call.1} parent=27 // pred_fallthru
          _
        %s198 = sand.u32 %s39, 1
        %s199 = scalar_lea.sflag [#allocation3], %s198
        %s200 = sand.u32 %s39, 1
        %s201 = smul.addr %s200, 16
        %s202 = scalar_lea.vmem [#allocation2], %s201
        %p203 = pneg %p52
        %p204 = pneg %p49
        %s205 = sand.u32 %s67, 1
        %s206 = scalar_lea.sflag [#allocation5], %s205
        %s207 = sand.u32 %s67, 1
        %s208 = smul.addr %s207, 16
        %s209 = scalar_lea.vmem [#allocation4], %s208
        %p210 = pneg %p80
        %p211 = pneg %p77
        %p212 = pneg %p106
        %p213 = pneg %p103
        %p214 = scmp.lt.s32.totalorder %s23, 1
        %s215 = scalar_select %p214, %s23, 1
        %s216 = scalar_lea.vmem %s2, %s215
        %p217 = scmp.lt.s32.totalorder %s23, 1
        %s218 = scalar_select %p217, %s23, 1
        %s219 = scalar_lea.vmem %s2, %s218
        %v220 = vld [vmem:[%s182] sm:$0xff]
        %v221 = vld [vmem:[%s182 + $0x8] sm:$0xff]
        %v222 = vld [vmem:[%s192] sm:$0xff]
        %v223 = vld [vmem:[%s192 + $0x8] sm:$0xff]
        %vm224 = vcmask 130048
        %v226 = vsel %vm224, %v222, 0
        %v229 = vsel %vm224, %v223, 0
        %231 = vmatpush.msra.mxu0 0.0
        %232 = vmatpush.msra.mxu0 0.0
        %233 = vmatpush.msra.mxu0 0.0
        %234 = vmatpush.msra.mxu0 0.0
        %235 = vmatpush.msra.mxu0 0.0
        %236 = vmatpush.msra.mxu0 0.0
        %237 = vmatpush.msra.mxu0 0.0
        %238 = vmatpush.msra.mxu0 0.0
        %239 = vmatpush.msra.mxu0 0.0
        %240 = vmatpush.msra.mxu0 0.0
        %241 = vmatpush.msra.mxu0 0.0
        %242 = vmatpush.msra.mxu0 0.0
        %243 = vmatpush.msra.mxu0 0.0
        %244 = vmatpush.msra.mxu0 0.0
        %v245 = vand.u32 %v221, 4294901760
        %246 = vmatpush.msra.mxu0 %v245
        %v247 = vand.u32 %v220, 4294901760
        %248 = vmatpush.msra.mxu0 %v247
        %v249 = vand.u32 %v226, 4294901760
        %v250 = vsub.f32 %v226, %v249
        %v251 = vand.u32 %v250, 4294901760
        %v252 = vsub.f32 %v250, %v251
        %v253 = vand.u32 %v252, 4294901760
        %254 = vmatmul.f32.gmra.mxu0 %v253
        %v255 = vpop.f32.mrf.mxu0
        %v256 = vadd.f32 0.0, %v255
        %v257 = vand.u32 %v229, 4294901760
        %v258 = vsub.f32 %v229, %v257
        %v259 = vand.u32 %v258, 4294901760
        %v260 = vsub.f32 %v258, %v259
        %v261 = vand.u32 %v260, 4294901760
        %262 = vmatmul.f32.gmra.mxu0 %v261
        %v263 = vpop.f32.mrf.mxu0
        %v264 = vadd.f32 0.0, %v263
        %265 = vdwg.mxu0
        %266 = vmatpush.msra.mxu0 0.0
        %267 = vmatpush.msra.mxu0 0.0
        %268 = vmatpush.msra.mxu0 0.0
        %269 = vmatpush.msra.mxu0 0.0
        %270 = vmatpush.msra.mxu0 0.0
        %271 = vmatpush.msra.mxu0 0.0
        %272 = vmatpush.msra.mxu0 0.0
        %273 = vmatpush.msra.mxu0 0.0
        %274 = vmatpush.msra.mxu0 0.0
        %275 = vmatpush.msra.mxu0 0.0
        %276 = vmatpush.msra.mxu0 0.0
        %277 = vmatpush.msra.mxu0 0.0
        %278 = vmatpush.msra.mxu0 0.0
        %279 = vmatpush.msra.mxu0 0.0
        %v280 = vand.u32 %v221, 4294901760
        %v281 = vsub.f32 %v221, %v280
        %v282 = vand.u32 %v281, 4294901760
        %v283 = vsub.f32 %v281, %v282
        %v284 = vand.u32 %v283, 4294901760
        %285 = vmatpush.msra.mxu0 %v284
        %v286 = vand.u32 %v220, 4294901760
        %v287 = vsub.f32 %v220, %v286
        %v288 = vand.u32 %v287, 4294901760
        %v289 = vsub.f32 %v287, %v288
        %v290 = vand.u32 %v289, 4294901760
        %291 = vmatpush.msra.mxu0 %v290
        %v292 = vand.u32 %v226, 4294901760
        %293 = vmatmul.f32.gmra.mxu0 %v292
        %v294 = vpop.f32.mrf.mxu0
        %v295 = vadd.f32 %v256, %v294
        %v296 = vand.u32 %v229, 4294901760
        %297 = vmatmul.f32.gmra.mxu0 %v296
        %v298 = vpop.f32.mrf.mxu0
        %v299 = vadd.f32 %v264, %v298
        %300 = vdwg.mxu0
        %301 = vmatpush.msra.mxu0 0.0
        %302 = vmatpush.msra.mxu0 0.0
        %303 = vmatpush.msra.mxu0 0.0
        %304 = vmatpush.msra.mxu0 0.0
        %305 = vmatpush.msra.mxu0 0.0
        %306 = vmatpush.msra.mxu0 0.0
        %307 = vmatpush.msra.mxu0 0.0
        %308 = vmatpush.msra.mxu0 0.0
        %309 = vmatpush.msra.mxu0 0.0
        %310 = vmatpush.msra.mxu0 0.0
        %311 = vmatpush.msra.mxu0 0.0
        %312 = vmatpush.msra.mxu0 0.0
        %313 = vmatpush.msra.mxu0 0.0
        %314 = vmatpush.msra.mxu0 0.0
        %v315 = vand.u32 %v221, 4294901760
        %v316 = vsub.f32 %v221, %v315
        %317 = vmatpush.msra.mxu0 %v316
        %v318 = vand.u32 %v220, 4294901760
        %v319 = vsub.f32 %v220, %v318
        %320 = vmatpush.msra.mxu0 %v319
        %v321 = vand.u32 %v226, 4294901760
        %v322 = vsub.f32 %v226, %v321
        %323 = vmatmul.f32.gmra.mxu0 %v322
        %v324 = vpop.f32.mrf.mxu0
        %v325 = vadd.f32 %v295, %v324
        %v326 = vand.u32 %v229, 4294901760
        %v327 = vsub.f32 %v229, %v326
        %328 = vmatmul.f32.gmra.mxu0 %v327
        %v329 = vpop.f32.mrf.mxu0
        %v330 = vadd.f32 %v299, %v329
        %331 = vdwg.mxu0
        %332 = vmatpush.msra.mxu0 0.0
        %333 = vmatpush.msra.mxu0 0.0
        %334 = vmatpush.msra.mxu0 0.0
        %335 = vmatpush.msra.mxu0 0.0
        %336 = vmatpush.msra.mxu0 0.0
        %337 = vmatpush.msra.mxu0 0.0
        %338 = vmatpush.msra.mxu0 0.0
        %339 = vmatpush.msra.mxu0 0.0
        %340 = vmatpush.msra.mxu0 0.0
        %341 = vmatpush.msra.mxu0 0.0
        %342 = vmatpush.msra.mxu0 0.0
        %343 = vmatpush.msra.mxu0 0.0
        %344 = vmatpush.msra.mxu0 0.0
        %345 = vmatpush.msra.mxu0 0.0
        %v346 = vand.u32 %v221, 4294901760
        %347 = vmatpush.msra.mxu0 %v346
        %v348 = vand.u32 %v220, 4294901760
        %349 = vmatpush.msra.mxu0 %v348
        %v350 = vand.u32 %v226, 4294901760
        %v351 = vsub.f32 %v226, %v350
        %v352 = vand.u32 %v351, 4294901760
        %353 = vmatmul.f32.gmra.mxu0 %v352
        %v354 = vpop.f32.mrf.mxu0
        %v355 = vadd.f32 %v325, %v354
        %v356 = vand.u32 %v229, 4294901760
        %v357 = vsub.f32 %v229, %v356
        %v358 = vand.u32 %v357, 4294901760
        %359 = vmatmul.f32.gmra.mxu0 %v358
        %v360 = vpop.f32.mrf.mxu0
        %v361 = vadd.f32 %v330, %v360
        %362 = vdwg.mxu0
        %363 = vmatpush.msra.mxu0 0.0
        %364 = vmatpush.msra.mxu0 0.0
        %365 = vmatpush.msra.mxu0 0.0
        %366 = vmatpush.msra.mxu0 0.0
        %367 = vmatpush.msra.mxu0 0.0
        %368 = vmatpush.msra.mxu0 0.0
        %369 = vmatpush.msra.mxu0 0.0
        %370 = vmatpush.msra.mxu0 0.0
        %371 = vmatpush.msra.mxu0 0.0
        %372 = vmatpush.msra.mxu0 0.0
        %373 = vmatpush.msra.mxu0 0.0
        %374 = vmatpush.msra.mxu0 0.0
        %375 = vmatpush.msra.mxu0 0.0
        %376 = vmatpush.msra.mxu0 0.0
        %v377 = vand.u32 %v221, 4294901760
        %v378 = vsub.f32 %v221, %v377
        %v379 = vand.u32 %v378, 4294901760
        %380 = vmatpush.msra.mxu0 %v379
        %v381 = vand.u32 %v220, 4294901760
        %v382 = vsub.f32 %v220, %v381
        %v383 = vand.u32 %v382, 4294901760
        %384 = vmatpush.msra.mxu0 %v383
        %v385 = vand.u32 %v226, 4294901760
        %386 = vmatmul.f32.gmra.mxu0 %v385
        %v387 = vpop.f32.mrf.mxu0
        %v388 = vadd.f32 %v355, %v387
        %v389 = vand.u32 %v229, 4294901760
        %390 = vmatmul.f32.gmra.mxu0 %v389
        %v391 = vpop.f32.mrf.mxu0
        %v392 = vadd.f32 %v361, %v391
        %393 = vdwg.mxu0
        %394 = vmatpush.msra.mxu0 0.0
        %395 = vmatpush.msra.mxu0 0.0
        %396 = vmatpush.msra.mxu0 0.0
        %397 = vmatpush.msra.mxu0 0.0
        %398 = vmatpush.msra.mxu0 0.0
        %399 = vmatpush.msra.mxu0 0.0
        %400 = vmatpush.msra.mxu0 0.0
        %401 = vmatpush.msra.mxu0 0.0
        %402 = vmatpush.msra.mxu0 0.0
        %403 = vmatpush.msra.mxu0 0.0
        %404 = vmatpush.msra.mxu0 0.0
        %405 = vmatpush.msra.mxu0 0.0
        %406 = vmatpush.msra.mxu0 0.0
        %407 = vmatpush.msra.mxu0 0.0
        %v408 = vand.u32 %v221, 4294901760
        %409 = vmatpush.msra.mxu0 %v408
        %v410 = vand.u32 %v220, 4294901760
        %411 = vmatpush.msra.mxu0 %v410
        %v412 = vand.u32 %v226, 4294901760
        %413 = vmatmul.f32.gmra.mxu0 %v412
        %v414 = vpop.f32.mrf.mxu0
        %v415 = vadd.f32 %v388, %v414
        %v416 = vand.u32 %v229, 4294901760
        %417 = vmatmul.f32.gmra.mxu0 %v416
        %v418 = vpop.f32.mrf.mxu0
        %v419 = vadd.f32 %v392, %v418
        %420 = vdwg.mxu0
        %v421 = vlaneseq
        %v422 = vshrl.u32 %v421, 7
        %v423 = vadd.s32 %v422, 8
        %v424 = vadd.s32 %v422, 16
        %v425 = vadd.s32 %v422, 24
        %v426 = vadd.s32 %v422, 32
        %v427 = vadd.s32 %v422, 40
        %v428 = vadd.s32 %v422, 48
        %v429 = vadd.s32 %v422, 56
        %v430 = vadd.s32 %v422, 64
        %v431 = vadd.s32 %v422, 72
        %v432 = vadd.s32 %v422, 80
        %v433 = vadd.s32 %v422, 88
        %v434 = vadd.s32 %v422, 96
        %v435 = vadd.s32 %v422, 104
        %v436 = vadd.s32 %v422, 112
        %v437 = vadd.s32 %v422, 120
        %v438 = vlaneseq
        %v439 = vand.u32 %v438, 127
        %vm440 = vcmp.lt.s32.totalorder %v439, %v422
        %vm441 = vcmp.lt.s32.totalorder %v439, %v423
        %vm442 = vcmp.lt.s32.totalorder %v439, %v424
        %vm443 = vcmp.lt.s32.totalorder %v439, %v425
        %vm444 = vcmp.lt.s32.totalorder %v439, %v426
        %vm445 = vcmp.lt.s32.totalorder %v439, %v427
        %vm446 = vcmp.lt.s32.totalorder %v439, %v428
        %vm447 = vcmp.lt.s32.totalorder %v439, %v429
        %vm448 = vcmp.lt.s32.totalorder %v439, %v430
        %vm449 = vcmp.lt.s32.totalorder %v439, %v431
        %vm450 = vcmp.lt.s32.totalorder %v439, %v432
        %vm451 = vcmp.lt.s32.totalorder %v439, %v433
        %vm452 = vcmp.lt.s32.totalorder %v439, %v434
        %vm453 = vcmp.lt.s32.totalorder %v439, %v435
        %vm454 = vcmp.lt.s32.totalorder %v439, %v436
        %vm455 = vcmp.lt.s32.totalorder %v439, %v437
        %v456 = vcvt.s32.f32 %v439
        %v457 = vperm.slane %v415, 0
        %v458 = vlaneseq
        %v459 = vshrl.u32 %v458, 7
        %461 = vset.pattern.permute.xlu0 %v459
        %462 = vperm.xlu0 %461, %v457
        %v463 = vpop.permute.xlu0 %462
        %v464 = vlaneseq
        %v465 = vshrl.u32 %v464, 7
        %v466 = vadd.s32 %v465, 8
        %467 = vset.pattern.permute.xlu0 %v466
        %468 = vperm.xlu0 %467, %v457
        %v469 = vpop.permute.xlu0 %468
        %v470 = vlaneseq
        %v471 = vshrl.u32 %v470, 7
        %v472 = vadd.s32 %v471, 16
        %473 = vset.pattern.permute.xlu0 %v472
        %474 = vperm.xlu0 %473, %v457
        %v475 = vpop.permute.xlu0 %474
        %v476 = vlaneseq
        %v477 = vshrl.u32 %v476, 7
        %v478 = vadd.s32 %v477, 24
        %479 = vset.pattern.permute.xlu0 %v478
        %480 = vperm.xlu0 %479, %v457
        %v481 = vpop.permute.xlu0 %480
        %v482 = vlaneseq
        %v483 = vshrl.u32 %v482, 7
        %v484 = vadd.s32 %v483, 32
        %485 = vset.pattern.permute.xlu0 %v484
        %486 = vperm.xlu0 %485, %v457
        %v487 = vpop.permute.xlu0 %486
        %v488 = vlaneseq
        %v489 = vshrl.u32 %v488, 7
        %v490 = vadd.s32 %v489, 40
        %491 = vset.pattern.permute.xlu0 %v490
        %492 = vperm.xlu0 %491, %v457
        %v493 = vpop.permute.xlu0 %492
        %v494 = vlaneseq
        %v495 = vshrl.u32 %v494, 7
        %v496 = vadd.s32 %v495, 48
        %497 = vset.pattern.permute.xlu0 %v496
        %498 = vperm.xlu0 %497, %v457
        %v499 = vpop.permute.xlu0 %498
        %v500 = vlaneseq
        %v501 = vshrl.u32 %v500, 7
        %v502 = vadd.s32 %v501, 56
        %503 = vset.pattern.permute.xlu0 %v502
        %504 = vperm.xlu0 %503, %v457
        %v505 = vpop.permute.xlu0 %504
        %v506 = vlaneseq
        %v507 = vshrl.u32 %v506, 7
        %v508 = vadd.s32 %v507, 64
        %509 = vset.pattern.permute.xlu0 %v508
        %510 = vperm.xlu0 %509, %v457
        %v511 = vpop.permute.xlu0 %510
        %v512 = vlaneseq
        %v513 = vshrl.u32 %v512, 7
        %v514 = vadd.s32 %v513, 72
        %515 = vset.pattern.permute.xlu0 %v514
        %516 = vperm.xlu0 %515, %v457
        %v517 = vpop.permute.xlu0 %516
        %v518 = vlaneseq
        %v519 = vshrl.u32 %v518, 7
        %v520 = vadd.s32 %v519, 80
        %521 = vset.pattern.permute.xlu0 %v520
        %522 = vperm.xlu0 %521, %v457
        %v523 = vpop.permute.xlu0 %522
        %v524 = vlaneseq
        %v525 = vshrl.u32 %v524, 7
        %v526 = vadd.s32 %v525, 88
        %527 = vset.pattern.permute.xlu0 %v526
        %528 = vperm.xlu0 %527, %v457
        %v529 = vpop.permute.xlu0 %528
        %v530 = vlaneseq
        %v531 = vshrl.u32 %v530, 7
        %v532 = vadd.s32 %v531, 96
        %533 = vset.pattern.permute.xlu0 %v532
        %534 = vperm.xlu0 %533, %v457
        %v535 = vpop.permute.xlu0 %534
        %v536 = vlaneseq
        %v537 = vshrl.u32 %v536, 7
        %v538 = vadd.s32 %v537, 104
        %539 = vset.pattern.permute.xlu0 %v538
        %540 = vperm.xlu0 %539, %v457
        %v541 = vpop.permute.xlu0 %540
        %v542 = vlaneseq
        %v543 = vshrl.u32 %v542, 7
        %v544 = vadd.s32 %v543, 112
        %545 = vset.pattern.permute.xlu0 %v544
        %546 = vperm.xlu0 %545, %v457
        %v547 = vpop.permute.xlu0 %546
        %v548 = vlaneseq
        %v549 = vshrl.u32 %v548, 7
        %v550 = vadd.s32 %v549, 120
        %551 = vset.pattern.permute.xlu0 %v550
        %552 = vperm.xlu0 %551, %v457
        %v553 = vpop.permute.xlu0 %552
        %v554 = vperm.slane %v415, 1
        %v555 = vlaneseq
        %v556 = vshrl.u32 %v555, 7
        %558 = vset.pattern.permute.xlu0 %v556
        %559 = vperm.xlu0 %558, %v554
        %v560 = vpop.permute.xlu0 %559
        %v561 = vlaneseq
        %v562 = vshrl.u32 %v561, 7
        %v563 = vadd.s32 %v562, 8
        %564 = vset.pattern.permute.xlu0 %v563
        %565 = vperm.xlu0 %564, %v554
        %v566 = vpop.permute.xlu0 %565
        %v567 = vlaneseq
        %v568 = vshrl.u32 %v567, 7
        %v569 = vadd.s32 %v568, 16
        %570 = vset.pattern.permute.xlu0 %v569
        %571 = vperm.xlu0 %570, %v554
        %v572 = vpop.permute.xlu0 %571
        %v573 = vlaneseq
        %v574 = vshrl.u32 %v573, 7
        %v575 = vadd.s32 %v574, 24
        %576 = vset.pattern.permute.xlu0 %v575
        %577 = vperm.xlu0 %576, %v554
        %v578 = vpop.permute.xlu0 %577
        %v579 = vlaneseq
        %v580 = vshrl.u32 %v579, 7
        %v581 = vadd.s32 %v580, 32
        %582 = vset.pattern.permute.xlu0 %v581
        %583 = vperm.xlu0 %582, %v554
        %v584 = vpop.permute.xlu0 %583
        %v585 = vlaneseq
        %v586 = vshrl.u32 %v585, 7
        %v587 = vadd.s32 %v586, 40
        %588 = vset.pattern.permute.xlu0 %v587
        %589 = vperm.xlu0 %588, %v554
        %v590 = vpop.permute.xlu0 %589
        %v591 = vlaneseq
        %v592 = vshrl.u32 %v591, 7
        %v593 = vadd.s32 %v592, 48
        %594 = vset.pattern.permute.xlu0 %v593
        %595 = vperm.xlu0 %594, %v554
        %v596 = vpop.permute.xlu0 %595
        %v597 = vlaneseq
        %v598 = vshrl.u32 %v597, 7
        %v599 = vadd.s32 %v598, 56
        %600 = vset.pattern.permute.xlu0 %v599
        %601 = vperm.xlu0 %600, %v554
        %v602 = vpop.permute.xlu0 %601
        %v603 = vlaneseq
        %v604 = vshrl.u32 %v603, 7
        %v605 = vadd.s32 %v604, 64
        %606 = vset.pattern.permute.xlu0 %v605
        %607 = vperm.xlu0 %606, %v554
        %v608 = vpop.permute.xlu0 %607
        %v609 = vlaneseq
        %v610 = vshrl.u32 %v609, 7
        %v611 = vadd.s32 %v610, 72
        %612 = vset.pattern.permute.xlu0 %v611
        %613 = vperm.xlu0 %612, %v554
        %v614 = vpop.permute.xlu0 %613
        %v615 = vlaneseq
        %v616 = vshrl.u32 %v615, 7
        %v617 = vadd.s32 %v616, 80
        %618 = vset.pattern.permute.xlu0 %v617
        %619 = vperm.xlu0 %618, %v554
        %v620 = vpop.permute.xlu0 %619
        %v621 = vlaneseq
        %v622 = vshrl.u32 %v621, 7
        %v623 = vadd.s32 %v622, 88
        %624 = vset.pattern.permute.xlu0 %v623
        %625 = vperm.xlu0 %624, %v554
        %v626 = vpop.permute.xlu0 %625
        %v627 = vlaneseq
        %v628 = vshrl.u32 %v627, 7
        %v629 = vadd.s32 %v628, 96
        %630 = vset.pattern.permute.xlu0 %v629
        %631 = vperm.xlu0 %630, %v554
        %v632 = vpop.permute.xlu0 %631
        %v633 = vlaneseq
        %v634 = vshrl.u32 %v633, 7
        %v635 = vadd.s32 %v634, 104
        %636 = vset.pattern.permute.xlu0 %v635
        %637 = vperm.xlu0 %636, %v554
        %v638 = vpop.permute.xlu0 %637
        %v639 = vlaneseq
        %v640 = vshrl.u32 %v639, 7
        %v641 = vadd.s32 %v640, 112
        %642 = vset.pattern.permute.xlu0 %v641
        %643 = vperm.xlu0 %642, %v554
        %v644 = vpop.permute.xlu0 %643
        %v645 = vlaneseq
        %v646 = vshrl.u32 %v645, 7
        %v647 = vadd.s32 %v646, 120
        %648 = vset.pattern.permute.xlu0 %v647
        %649 = vperm.xlu0 %648, %v554
        %v650 = vpop.permute.xlu0 %649
        %v651 = vperm.slane %v415, 2
        %v652 = vlaneseq
        %v653 = vshrl.u32 %v652, 7
        %655 = vset.pattern.permute.xlu0 %v653
        %656 = vperm.xlu0 %655, %v651
        %v657 = vpop.permute.xlu0 %656
        %v658 = vlaneseq
        %v659 = vshrl.u32 %v658, 7
        %v660 = vadd.s32 %v659, 8
        %661 = vset.pattern.permute.xlu0 %v660
        %662 = vperm.xlu0 %661, %v651
        %v663 = vpop.permute.xlu0 %662
        %v664 = vlaneseq
        %v665 = vshrl.u32 %v664, 7
        %v666 = vadd.s32 %v665, 16
        %667 = vset.pattern.permute.xlu0 %v666
        %668 = vperm.xlu0 %667, %v651
        %v669 = vpop.permute.xlu0 %668
        %v670 = vlaneseq
        %v671 = vshrl.u32 %v670, 7
        %v672 = vadd.s32 %v671, 24
        %673 = vset.pattern.permute.xlu0 %v672
        %674 = vperm.xlu0 %673, %v651
        %v675 = vpop.permute.xlu0 %674
        %v676 = vlaneseq
        %v677 = vshrl.u32 %v676, 7
        %v678 = vadd.s32 %v677, 32
        %679 = vset.pattern.permute.xlu0 %v678
        %680 = vperm.xlu0 %679, %v651
        %v681 = vpop.permute.xlu0 %680
        %v682 = vlaneseq
        %v683 = vshrl.u32 %v682, 7
        %v684 = vadd.s32 %v683, 40
        %685 = vset.pattern.permute.xlu0 %v684
        %686 = vperm.xlu0 %685, %v651
        %v687 = vpop.permute.xlu0 %686
        %v688 = vlaneseq
        %v689 = vshrl.u32 %v688, 7
        %v690 = vadd.s32 %v689, 48
        %691 = vset.pattern.permute.xlu0 %v690
        %692 = vperm.xlu0 %691, %v651
        %v693 = vpop.permute.xlu0 %692
        %v694 = vlaneseq
        %v695 = vshrl.u32 %v694, 7
        %v696 = vadd.s32 %v695, 56
        %697 = vset.pattern.permute.xlu0 %v696
        %698 = vperm.xlu0 %697, %v651
        %v699 = vpop.permute.xlu0 %698
        %v700 = vlaneseq
        %v701 = vshrl.u32 %v700, 7
        %v702 = vadd.s32 %v701, 64
        %703 = vset.pattern.permute.xlu0 %v702
        %704 = vperm.xlu0 %703, %v651
        %v705 = vpop.permute.xlu0 %704
        %v706 = vlaneseq
        %v707 = vshrl.u32 %v706, 7
        %v708 = vadd.s32 %v707, 72
        %709 = vset.pattern.permute.xlu0 %v708
        %710 = vperm.xlu0 %709, %v651
        %v711 = vpop.permute.xlu0 %710
        %v712 = vlaneseq
        %v713 = vshrl.u32 %v712, 7
        %v714 = vadd.s32 %v713, 80
        %715 = vset.pattern.permute.xlu0 %v714
        %716 = vperm.xlu0 %715, %v651
        %v717 = vpop.permute.xlu0 %716
        %v718 = vlaneseq
        %v719 = vshrl.u32 %v718, 7
        %v720 = vadd.s32 %v719, 88
        %721 = vset.pattern.permute.xlu0 %v720
        %722 = vperm.xlu0 %721, %v651
        %v723 = vpop.permute.xlu0 %722
        %v724 = vlaneseq
        %v725 = vshrl.u32 %v724, 7
        %v726 = vadd.s32 %v725, 96
        %727 = vset.pattern.permute.xlu0 %v726
        %728 = vperm.xlu0 %727, %v651
        %v729 = vpop.permute.xlu0 %728
        %v730 = vlaneseq
        %v731 = vshrl.u32 %v730, 7
        %v732 = vadd.s32 %v731, 104
        %733 = vset.pattern.permute.xlu0 %v732
        %734 = vperm.xlu0 %733, %v651
        %v735 = vpop.permute.xlu0 %734
        %v736 = vlaneseq
        %v737 = vshrl.u32 %v736, 7
        %v738 = vadd.s32 %v737, 112
        %739 = vset.pattern.permute.xlu0 %v738
        %740 = vperm.xlu0 %739, %v651
        %v741 = vpop.permute.xlu0 %740
        %v742 = vlaneseq
        %v743 = vshrl.u32 %v742, 7
        %v744 = vadd.s32 %v743, 120
        %745 = vset.pattern.permute.xlu0 %v744
        %746 = vperm.xlu0 %745, %v651
        %v747 = vpop.permute.xlu0 %746
        %v748 = vperm.slane %v415, 3
        %v749 = vlaneseq
        %v750 = vshrl.u32 %v749, 7
        %752 = vset.pattern.permute.xlu0 %v750
        %753 = vperm.xlu0 %752, %v748
        %v754 = vpop.permute.xlu0 %753
        %v755 = vlaneseq
        %v756 = vshrl.u32 %v755, 7
        %v757 = vadd.s32 %v756, 8
        %758 = vset.pattern.permute.xlu0 %v757
        %759 = vperm.xlu0 %758, %v748
        %v760 = vpop.permute.xlu0 %759
        %v761 = vlaneseq
        %v762 = vshrl.u32 %v761, 7
        %v763 = vadd.s32 %v762, 16
        %764 = vset.pattern.permute.xlu0 %v763
        %765 = vperm.xlu0 %764, %v748
        %v766 = vpop.permute.xlu0 %765
        %v767 = vlaneseq
        %v768 = vshrl.u32 %v767, 7
        %v769 = vadd.s32 %v768, 24
        %770 = vset.pattern.permute.xlu0 %v769
        %771 = vperm.xlu0 %770, %v748
        %v772 = vpop.permute.xlu0 %771
        %v773 = vlaneseq
        %v774 = vshrl.u32 %v773, 7
        %v775 = vadd.s32 %v774, 32
        %776 = vset.pattern.permute.xlu0 %v775
        %777 = vperm.xlu0 %776, %v748
        %v778 = vpop.permute.xlu0 %777
        %v779 = vlaneseq
        %v780 = vshrl.u32 %v779, 7
        %v781 = vadd.s32 %v780, 40
        %782 = vset.pattern.permute.xlu0 %v781
        %783 = vperm.xlu0 %782, %v748
        %v784 = vpop.permute.xlu0 %783
        %v785 = vlaneseq
        %v786 = vshrl.u32 %v785, 7
        %v787 = vadd.s32 %v786, 48
        %788 = vset.pattern.permute.xlu0 %v787
        %789 = vperm.xlu0 %788, %v748
        %v790 = vpop.permute.xlu0 %789
        %v791 = vlaneseq
        %v792 = vshrl.u32 %v791, 7
        %v793 = vadd.s32 %v792, 56
        %794 = vset.pattern.permute.xlu0 %v793
        %795 = vperm.xlu0 %794, %v748
        %v796 = vpop.permute.xlu0 %795
        %v797 = vlaneseq
        %v798 = vshrl.u32 %v797, 7
        %v799 = vadd.s32 %v798, 64
        %800 = vset.pattern.permute.xlu0 %v799
        %801 = vperm.xlu0 %800, %v748
        %v802 = vpop.permute.xlu0 %801
        %v803 = vlaneseq
        %v804 = vshrl.u32 %v803, 7
        %v805 = vadd.s32 %v804, 72
        %806 = vset.pattern.permute.xlu0 %v805
        %807 = vperm.xlu0 %806, %v748
        %v808 = vpop.permute.xlu0 %807
        %v809 = vlaneseq
        %v810 = vshrl.u32 %v809, 7
        %v811 = vadd.s32 %v810, 80
        %812 = vset.pattern.permute.xlu0 %v811
        %813 = vperm.xlu0 %812, %v748
        %v814 = vpop.permute.xlu0 %813
        %v815 = vlaneseq
        %v816 = vshrl.u32 %v815, 7
        %v817 = vadd.s32 %v816, 88
        %818 = vset.pattern.permute.xlu0 %v817
        %819 = vperm.xlu0 %818, %v748
        %v820 = vpop.permute.xlu0 %819
        %v821 = vlaneseq
        %v822 = vshrl.u32 %v821, 7
        %v823 = vadd.s32 %v822, 96
        %824 = vset.pattern.permute.xlu0 %v823
        %825 = vperm.xlu0 %824, %v748
        %v826 = vpop.permute.xlu0 %825
        %v827 = vlaneseq
        %v828 = vshrl.u32 %v827, 7
        %v829 = vadd.s32 %v828, 104
        %830 = vset.pattern.permute.xlu0 %v829
        %831 = vperm.xlu0 %830, %v748
        %v832 = vpop.permute.xlu0 %831
        %v833 = vlaneseq
        %v834 = vshrl.u32 %v833, 7
        %v835 = vadd.s32 %v834, 112
        %836 = vset.pattern.permute.xlu0 %v835
        %837 = vperm.xlu0 %836, %v748
        %v838 = vpop.permute.xlu0 %837
        %v839 = vlaneseq
        %v840 = vshrl.u32 %v839, 7
        %v841 = vadd.s32 %v840, 120
        %842 = vset.pattern.permute.xlu0 %v841
        %843 = vperm.xlu0 %842, %v748
        %v844 = vpop.permute.xlu0 %843
        %v845 = vperm.slane %v415, 4
        %v846 = vlaneseq
        %v847 = vshrl.u32 %v846, 7
        %849 = vset.pattern.permute.xlu0 %v847
        %850 = vperm.xlu0 %849, %v845
        %v851 = vpop.permute.xlu0 %850
        %v852 = vlaneseq
        %v853 = vshrl.u32 %v852, 7
        %v854 = vadd.s32 %v853, 8
        %855 = vset.pattern.permute.xlu0 %v854
        %856 = vperm.xlu0 %855, %v845
        %v857 = vpop.permute.xlu0 %856
        %v858 = vlaneseq
        %v859 = vshrl.u32 %v858, 7
        %v860 = vadd.s32 %v859, 16
        %861 = vset.pattern.permute.xlu0 %v860
        %862 = vperm.xlu0 %861, %v845
        %v863 = vpop.permute.xlu0 %862
        %v864 = vlaneseq
        %v865 = vshrl.u32 %v864, 7
        %v866 = vadd.s32 %v865, 24
        %867 = vset.pattern.permute.xlu0 %v866
        %868 = vperm.xlu0 %867, %v845
        %v869 = vpop.permute.xlu0 %868
        %v870 = vlaneseq
        %v871 = vshrl.u32 %v870, 7
        %v872 = vadd.s32 %v871, 32
        %873 = vset.pattern.permute.xlu0 %v872
        %874 = vperm.xlu0 %873, %v845
        %v875 = vpop.permute.xlu0 %874
        %v876 = vlaneseq
        %v877 = vshrl.u32 %v876, 7
        %v878 = vadd.s32 %v877, 40
        %879 = vset.pattern.permute.xlu0 %v878
        %880 = vperm.xlu0 %879, %v845
        %v881 = vpop.permute.xlu0 %880
        %v882 = vlaneseq
        %v883 = vshrl.u32 %v882, 7
        %v884 = vadd.s32 %v883, 48
        %885 = vset.pattern.permute.xlu0 %v884
        %886 = vperm.xlu0 %885, %v845
        %v887 = vpop.permute.xlu0 %886
        %v888 = vlaneseq
        %v889 = vshrl.u32 %v888, 7
        %v890 = vadd.s32 %v889, 56
        %891 = vset.pattern.permute.xlu0 %v890
        %892 = vperm.xlu0 %891, %v845
        %v893 = vpop.permute.xlu0 %892
        %v894 = vlaneseq
        %v895 = vshrl.u32 %v894, 7
        %v896 = vadd.s32 %v895, 64
        %897 = vset.pattern.permute.xlu0 %v896
        %898 = vperm.xlu0 %897, %v845
        %v899 = vpop.permute.xlu0 %898
        %v900 = vlaneseq
        %v901 = vshrl.u32 %v900, 7
        %v902 = vadd.s32 %v901, 72
        %903 = vset.pattern.permute.xlu0 %v902
        %904 = vperm.xlu0 %903, %v845
        %v905 = vpop.permute.xlu0 %904
        %v906 = vlaneseq
        %v907 = vshrl.u32 %v906, 7
        %v908 = vadd.s32 %v907, 80
        %909 = vset.pattern.permute.xlu0 %v908
        %910 = vperm.xlu0 %909, %v845
        %v911 = vpop.permute.xlu0 %910
        %v912 = vlaneseq
        %v913 = vshrl.u32 %v912, 7
        %v914 = vadd.s32 %v913, 88
        %915 = vset.pattern.permute.xlu0 %v914
        %916 = vperm.xlu0 %915, %v845
        %v917 = vpop.permute.xlu0 %916
        %v918 = vlaneseq
        %v919 = vshrl.u32 %v918, 7
        %v920 = vadd.s32 %v919, 96
        %921 = vset.pattern.permute.xlu0 %v920
        %922 = vperm.xlu0 %921, %v845
        %v923 = vpop.permute.xlu0 %922
        %v924 = vlaneseq
        %v925 = vshrl.u32 %v924, 7
        %v926 = vadd.s32 %v925, 104
        %927 = vset.pattern.permute.xlu0 %v926
        %928 = vperm.xlu0 %927, %v845
        %v929 = vpop.permute.xlu0 %928
        %v930 = vlaneseq
        %v931 = vshrl.u32 %v930, 7
        %v932 = vadd.s32 %v931, 112
        %933 = vset.pattern.permute.xlu0 %v932
        %934 = vperm.xlu0 %933, %v845
        %v935 = vpop.permute.xlu0 %934
        %v936 = vlaneseq
        %v937 = vshrl.u32 %v936, 7
        %v938 = vadd.s32 %v937, 120
        %939 = vset.pattern.permute.xlu0 %v938
        %940 = vperm.xlu0 %939, %v845
        %v941 = vpop.permute.xlu0 %940
        %v942 = vperm.slane %v415, 5
        %v943 = vlaneseq
        %v944 = vshrl.u32 %v943, 7
        %946 = vset.pattern.permute.xlu0 %v944
        %947 = vperm.xlu0 %946, %v942
        %v948 = vpop.permute.xlu0 %947
        %v949 = vlaneseq
        %v950 = vshrl.u32 %v949, 7
        %v951 = vadd.s32 %v950, 8
        %952 = vset.pattern.permute.xlu0 %v951
        %953 = vperm.xlu0 %952, %v942
        %v954 = vpop.permute.xlu0 %953
        %v955 = vlaneseq
        %v956 = vshrl.u32 %v955, 7
        %v957 = vadd.s32 %v956, 16
        %958 = vset.pattern.permute.xlu0 %v957
        %959 = vperm.xlu0 %958, %v942
        %v960 = vpop.permute.xlu0 %959
        %v961 = vlaneseq
        %v962 = vshrl.u32 %v961, 7
        %v963 = vadd.s32 %v962, 24
        %964 = vset.pattern.permute.xlu0 %v963
        %965 = vperm.xlu0 %964, %v942
        %v966 = vpop.permute.xlu0 %965
        %v967 = vlaneseq
        %v968 = vshrl.u32 %v967, 7
        %v969 = vadd.s32 %v968, 32
        %970 = vset.pattern.permute.xlu0 %v969
        %971 = vperm.xlu0 %970, %v942
        %v972 = vpop.permute.xlu0 %971
        %v973 = vlaneseq
        %v974 = vshrl.u32 %v973, 7
        %v975 = vadd.s32 %v974, 40
        %976 = vset.pattern.permute.xlu0 %v975
        %977 = vperm.xlu0 %976, %v942
        %v978 = vpop.permute.xlu0 %977
        %v979 = vlaneseq
        %v980 = vshrl.u32 %v979, 7
        %v981 = vadd.s32 %v980, 48
        %982 = vset.pattern.permute.xlu0 %v981
        %983 = vperm.xlu0 %982, %v942
        %v984 = vpop.permute.xlu0 %983
        %v985 = vlaneseq
        %v986 = vshrl.u32 %v985, 7
        %v987 = vadd.s32 %v986, 56
        %988 = vset.pattern.permute.xlu0 %v987
        %989 = vperm.xlu0 %988, %v942
        %v990 = vpop.permute.xlu0 %989
        %v991 = vlaneseq
        %v992 = vshrl.u32 %v991, 7
        %v993 = vadd.s32 %v992, 64
        %994 = vset.pattern.permute.xlu0 %v993
        %995 = vperm.xlu0 %994, %v942
        %v996 = vpop.permute.xlu0 %995
        %v997 = vlaneseq
        %v998 = vshrl.u32 %v997, 7
        %v999 = vadd.s32 %v998, 72
        %1000 = vset.pattern.permute.xlu0 %v999
        %1001 = vperm.xlu0 %1000, %v942
        %v1002 = vpop.permute.xlu0 %1001
        %v1003 = vlaneseq
        %v1004 = vshrl.u32 %v1003, 7
        %v1005 = vadd.s32 %v1004, 80
        %1006 = vset.pattern.permute.xlu0 %v1005
        %1007 = vperm.xlu0 %1006, %v942
        %v1008 = vpop.permute.xlu0 %1007
        %v1009 = vlaneseq
        %v1010 = vshrl.u32 %v1009, 7
        %v1011 = vadd.s32 %v1010, 88
        %1012 = vset.pattern.permute.xlu0 %v1011
        %1013 = vperm.xlu0 %1012, %v942
        %v1014 = vpop.permute.xlu0 %1013
        %v1015 = vlaneseq
        %v1016 = vshrl.u32 %v1015, 7
        %v1017 = vadd.s32 %v1016, 96
        %1018 = vset.pattern.permute.xlu0 %v1017
        %1019 = vperm.xlu0 %1018, %v942
        %v1020 = vpop.permute.xlu0 %1019
        %v1021 = vlaneseq
        %v1022 = vshrl.u32 %v1021, 7
        %v1023 = vadd.s32 %v1022, 104
        %1024 = vset.pattern.permute.xlu0 %v1023
        %1025 = vperm.xlu0 %1024, %v942
        %v1026 = vpop.permute.xlu0 %1025
        %v1027 = vlaneseq
        %v1028 = vshrl.u32 %v1027, 7
        %v1029 = vadd.s32 %v1028, 112
        %1030 = vset.pattern.permute.xlu0 %v1029
        %1031 = vperm.xlu0 %1030, %v942
        %v1032 = vpop.permute.xlu0 %1031
        %v1033 = vlaneseq
        %v1034 = vshrl.u32 %v1033, 7
        %v1035 = vadd.s32 %v1034, 120
        %1036 = vset.pattern.permute.xlu0 %v1035
        %1037 = vperm.xlu0 %1036, %v942
        %v1038 = vpop.permute.xlu0 %1037
        %v1039 = vperm.slane %v415, 6
        %v1040 = vlaneseq
        %v1041 = vshrl.u32 %v1040, 7
        %1043 = vset.pattern.permute.xlu0 %v1041
        %1044 = vperm.xlu0 %1043, %v1039
        %v1045 = vpop.permute.xlu0 %1044
        %v1046 = vlaneseq
        %v1047 = vshrl.u32 %v1046, 7
        %v1048 = vadd.s32 %v1047, 8
        %1049 = vset.pattern.permute.xlu0 %v1048
        %1050 = vperm.xlu0 %1049, %v1039
        %v1051 = vpop.permute.xlu0 %1050
        %v1052 = vlaneseq
        %v1053 = vshrl.u32 %v1052, 7
        %v1054 = vadd.s32 %v1053, 16
        %1055 = vset.pattern.permute.xlu0 %v1054
        %1056 = vperm.xlu0 %1055, %v1039
        %v1057 = vpop.permute.xlu0 %1056
        %v1058 = vlaneseq
        %v1059 = vshrl.u32 %v1058, 7
        %v1060 = vadd.s32 %v1059, 24
        %1061 = vset.pattern.permute.xlu0 %v1060
        %1062 = vperm.xlu0 %1061, %v1039
        %v1063 = vpop.permute.xlu0 %1062
        %v1064 = vlaneseq
        %v1065 = vshrl.u32 %v1064, 7
        %v1066 = vadd.s32 %v1065, 32
        %1067 = vset.pattern.permute.xlu0 %v1066
        %1068 = vperm.xlu0 %1067, %v1039
        %v1069 = vpop.permute.xlu0 %1068
        %v1070 = vlaneseq
        %v1071 = vshrl.u32 %v1070, 7
        %v1072 = vadd.s32 %v1071, 40
        %1073 = vset.pattern.permute.xlu0 %v1072
        %1074 = vperm.xlu0 %1073, %v1039
        %v1075 = vpop.permute.xlu0 %1074
        %v1076 = vlaneseq
        %v1077 = vshrl.u32 %v1076, 7
        %v1078 = vadd.s32 %v1077, 48
        %1079 = vset.pattern.permute.xlu0 %v1078
        %1080 = vperm.xlu0 %1079, %v1039
        %v1081 = vpop.permute.xlu0 %1080
        %v1082 = vlaneseq
        %v1083 = vshrl.u32 %v1082, 7
        %v1084 = vadd.s32 %v1083, 56
        %1085 = vset.pattern.permute.xlu0 %v1084
        %1086 = vperm.xlu0 %1085, %v1039
        %v1087 = vpop.permute.xlu0 %1086
        %v1088 = vlaneseq
        %v1089 = vshrl.u32 %v1088, 7
        %v1090 = vadd.s32 %v1089, 64
        %1091 = vset.pattern.permute.xlu0 %v1090
        %1092 = vperm.xlu0 %1091, %v1039
        %v1093 = vpop.permute.xlu0 %1092
        %v1094 = vlaneseq
        %v1095 = vshrl.u32 %v1094, 7
        %v1096 = vadd.s32 %v1095, 72
        %1097 = vset.pattern.permute.xlu0 %v1096
        %1098 = vperm.xlu0 %1097, %v1039
        %v1099 = vpop.permute.xlu0 %1098
        %v1100 = vlaneseq
        %v1101 = vshrl.u32 %v1100, 7
        %v1102 = vadd.s32 %v1101, 80
        %1103 = vset.pattern.permute.xlu0 %v1102
        %1104 = vperm.xlu0 %1103, %v1039
        %v1105 = vpop.permute.xlu0 %1104
        %v1106 = vlaneseq
        %v1107 = vshrl.u32 %v1106, 7
        %v1108 = vadd.s32 %v1107, 88
        %1109 = vset.pattern.permute.xlu0 %v1108
        %1110 = vperm.xlu0 %1109, %v1039
        %v1111 = vpop.permute.xlu0 %1110
        %v1112 = vlaneseq
        %v1113 = vshrl.u32 %v1112, 7
        %v1114 = vadd.s32 %v1113, 96
        %1115 = vset.pattern.permute.xlu0 %v1114
        %1116 = vperm.xlu0 %1115, %v1039
        %v1117 = vpop.permute.xlu0 %1116
        %v1118 = vlaneseq
        %v1119 = vshrl.u32 %v1118, 7
        %v1120 = vadd.s32 %v1119, 104
        %1121 = vset.pattern.permute.xlu0 %v1120
        %1122 = vperm.xlu0 %1121, %v1039
        %v1123 = vpop.permute.xlu0 %1122
        %v1124 = vlaneseq
        %v1125 = vshrl.u32 %v1124, 7
        %v1126 = vadd.s32 %v1125, 112
        %1127 = vset.pattern.permute.xlu0 %v1126
        %1128 = vperm.xlu0 %1127, %v1039
        %v1129 = vpop.permute.xlu0 %1128
        %v1130 = vlaneseq
        %v1131 = vshrl.u32 %v1130, 7
        %v1132 = vadd.s32 %v1131, 120
        %1133 = vset.pattern.permute.xlu0 %v1132
        %1134 = vperm.xlu0 %1133, %v1039
        %v1135 = vpop.permute.xlu0 %1134
        %v1136 = vperm.slane %v415, 7
        %v1137 = vlaneseq
        %v1138 = vshrl.u32 %v1137, 7
        %1140 = vset.pattern.permute.xlu0 %v1138
        %1141 = vperm.xlu0 %1140, %v1136
        %v1142 = vpop.permute.xlu0 %1141
        %v1143 = vlaneseq
        %v1144 = vshrl.u32 %v1143, 7
        %v1145 = vadd.s32 %v1144, 8
        %1146 = vset.pattern.permute.xlu0 %v1145
        %1147 = vperm.xlu0 %1146, %v1136
        %v1148 = vpop.permute.xlu0 %1147
        %v1149 = vlaneseq
        %v1150 = vshrl.u32 %v1149, 7
        %v1151 = vadd.s32 %v1150, 16
        %1152 = vset.pattern.permute.xlu0 %v1151
        %1153 = vperm.xlu0 %1152, %v1136
        %v1154 = vpop.permute.xlu0 %1153
        %v1155 = vlaneseq
        %v1156 = vshrl.u32 %v1155, 7
        %v1157 = vadd.s32 %v1156, 24
        %1158 = vset.pattern.permute.xlu0 %v1157
        %1159 = vperm.xlu0 %1158, %v1136
        %v1160 = vpop.permute.xlu0 %1159
        %v1161 = vlaneseq
        %v1162 = vshrl.u32 %v1161, 7
        %v1163 = vadd.s32 %v1162, 32
        %1164 = vset.pattern.permute.xlu0 %v1163
        %1165 = vperm.xlu0 %1164, %v1136
        %v1166 = vpop.permute.xlu0 %1165
        %v1167 = vlaneseq
        %v1168 = vshrl.u32 %v1167, 7
        %v1169 = vadd.s32 %v1168, 40
        %1170 = vset.pattern.permute.xlu0 %v1169
        %1171 = vperm.xlu0 %1170, %v1136
        %v1172 = vpop.permute.xlu0 %1171
        %v1173 = vlaneseq
        %v1174 = vshrl.u32 %v1173, 7
        %v1175 = vadd.s32 %v1174, 48
        %1176 = vset.pattern.permute.xlu0 %v1175
        %1177 = vperm.xlu0 %1176, %v1136
        %v1178 = vpop.permute.xlu0 %1177
        %v1179 = vlaneseq
        %v1180 = vshrl.u32 %v1179, 7
        %v1181 = vadd.s32 %v1180, 56
        %1182 = vset.pattern.permute.xlu0 %v1181
        %1183 = vperm.xlu0 %1182, %v1136
        %v1184 = vpop.permute.xlu0 %1183
        %v1185 = vlaneseq
        %v1186 = vshrl.u32 %v1185, 7
        %v1187 = vadd.s32 %v1186, 64
        %1188 = vset.pattern.permute.xlu0 %v1187
        %1189 = vperm.xlu0 %1188, %v1136
        %v1190 = vpop.permute.xlu0 %1189
        %v1191 = vlaneseq
        %v1192 = vshrl.u32 %v1191, 7
        %v1193 = vadd.s32 %v1192, 72
        %1194 = vset.pattern.permute.xlu0 %v1193
        %1195 = vperm.xlu0 %1194, %v1136
        %v1196 = vpop.permute.xlu0 %1195
        %v1197 = vlaneseq
        %v1198 = vshrl.u32 %v1197, 7
        %v1199 = vadd.s32 %v1198, 80
        %1200 = vset.pattern.permute.xlu0 %v1199
        %1201 = vperm.xlu0 %1200, %v1136
        %v1202 = vpop.permute.xlu0 %1201
        %v1203 = vlaneseq
        %v1204 = vshrl.u32 %v1203, 7
        %v1205 = vadd.s32 %v1204, 88
        %1206 = vset.pattern.permute.xlu0 %v1205
        %1207 = vperm.xlu0 %1206, %v1136
        %v1208 = vpop.permute.xlu0 %1207
        %v1209 = vlaneseq
        %v1210 = vshrl.u32 %v1209, 7
        %v1211 = vadd.s32 %v1210, 96
        %1212 = vset.pattern.permute.xlu0 %v1211
        %1213 = vperm.xlu0 %1212, %v1136
        %v1214 = vpop.permute.xlu0 %1213
        %v1215 = vlaneseq
        %v1216 = vshrl.u32 %v1215, 7
        %v1217 = vadd.s32 %v1216, 104
        %1218 = vset.pattern.permute.xlu0 %v1217
        %1219 = vperm.xlu0 %1218, %v1136
        %v1220 = vpop.permute.xlu0 %1219
        %v1221 = vlaneseq
        %v1222 = vshrl.u32 %v1221, 7
        %v1223 = vadd.s32 %v1222, 112
        %1224 = vset.pattern.permute.xlu0 %v1223
        %1225 = vperm.xlu0 %1224, %v1136
        %v1226 = vpop.permute.xlu0 %1225
        %v1227 = vlaneseq
        %v1228 = vshrl.u32 %v1227, 7
        %v1229 = vadd.s32 %v1228, 120
        %1230 = vset.pattern.permute.xlu0 %v1229
        %1231 = vperm.xlu0 %1230, %v1136
        %v1232 = vpop.permute.xlu0 %1231
        %v1233 = vperm.slane %v419, 0
        %v1234 = vlaneseq
        %v1235 = vshrl.u32 %v1234, 7
        %1237 = vset.pattern.permute.xlu0 %v1235
        %1238 = vperm.xlu0 %1237, %v1233
        %v1239 = vpop.permute.xlu0 %1238
        %v1240 = vlaneseq
        %v1241 = vshrl.u32 %v1240, 7
        %v1242 = vadd.s32 %v1241, 8
        %1243 = vset.pattern.permute.xlu0 %v1242
        %1244 = vperm.xlu0 %1243, %v1233
        %v1245 = vpop.permute.xlu0 %1244
        %v1246 = vlaneseq
        %v1247 = vshrl.u32 %v1246, 7
        %v1248 = vadd.s32 %v1247, 16
        %1249 = vset.pattern.permute.xlu0 %v1248
        %1250 = vperm.xlu0 %1249, %v1233
        %v1251 = vpop.permute.xlu0 %1250
        %v1252 = vlaneseq
        %v1253 = vshrl.u32 %v1252, 7
        %v1254 = vadd.s32 %v1253, 24
        %1255 = vset.pattern.permute.xlu0 %v1254
        %1256 = vperm.xlu0 %1255, %v1233
        %v1257 = vpop.permute.xlu0 %1256
        %v1258 = vlaneseq
        %v1259 = vshrl.u32 %v1258, 7
        %v1260 = vadd.s32 %v1259, 32
        %1261 = vset.pattern.permute.xlu0 %v1260
        %1262 = vperm.xlu0 %1261, %v1233
        %v1263 = vpop.permute.xlu0 %1262
        %v1264 = vlaneseq
        %v1265 = vshrl.u32 %v1264, 7
        %v1266 = vadd.s32 %v1265, 40
        %1267 = vset.pattern.permute.xlu0 %v1266
        %1268 = vperm.xlu0 %1267, %v1233
        %v1269 = vpop.permute.xlu0 %1268
        %v1270 = vlaneseq
        %v1271 = vshrl.u32 %v1270, 7
        %v1272 = vadd.s32 %v1271, 48
        %1273 = vset.pattern.permute.xlu0 %v1272
        %1274 = vperm.xlu0 %1273, %v1233
        %v1275 = vpop.permute.xlu0 %1274
        %v1276 = vlaneseq
        %v1277 = vshrl.u32 %v1276, 7
        %v1278 = vadd.s32 %v1277, 56
        %1279 = vset.pattern.permute.xlu0 %v1278
        %1280 = vperm.xlu0 %1279, %v1233
        %v1281 = vpop.permute.xlu0 %1280
        %v1282 = vlaneseq
        %v1283 = vshrl.u32 %v1282, 7
        %v1284 = vadd.s32 %v1283, 64
        %1285 = vset.pattern.permute.xlu0 %v1284
        %1286 = vperm.xlu0 %1285, %v1233
        %v1287 = vpop.permute.xlu0 %1286
        %v1288 = vlaneseq
        %v1289 = vshrl.u32 %v1288, 7
        %v1290 = vadd.s32 %v1289, 72
        %1291 = vset.pattern.permute.xlu0 %v1290
        %1292 = vperm.xlu0 %1291, %v1233
        %v1293 = vpop.permute.xlu0 %1292
        %v1294 = vlaneseq
        %v1295 = vshrl.u32 %v1294, 7
        %v1296 = vadd.s32 %v1295, 80
        %1297 = vset.pattern.permute.xlu0 %v1296
        %1298 = vperm.xlu0 %1297, %v1233
        %v1299 = vpop.permute.xlu0 %1298
        %v1300 = vlaneseq
        %v1301 = vshrl.u32 %v1300, 7
        %v1302 = vadd.s32 %v1301, 88
        %1303 = vset.pattern.permute.xlu0 %v1302
        %1304 = vperm.xlu0 %1303, %v1233
        %v1305 = vpop.permute.xlu0 %1304
        %v1306 = vlaneseq
        %v1307 = vshrl.u32 %v1306, 7
        %v1308 = vadd.s32 %v1307, 96
        %1309 = vset.pattern.permute.xlu0 %v1308
        %1310 = vperm.xlu0 %1309, %v1233
        %v1311 = vpop.permute.xlu0 %1310
        %v1312 = vlaneseq
        %v1313 = vshrl.u32 %v1312, 7
        %v1314 = vadd.s32 %v1313, 104
        %1315 = vset.pattern.permute.xlu0 %v1314
        %1316 = vperm.xlu0 %1315, %v1233
        %v1317 = vpop.permute.xlu0 %1316
        %v1318 = vlaneseq
        %v1319 = vshrl.u32 %v1318, 7
        %v1320 = vadd.s32 %v1319, 112
        %1321 = vset.pattern.permute.xlu0 %v1320
        %1322 = vperm.xlu0 %1321, %v1233
        %v1323 = vpop.permute.xlu0 %1322
        %v1324 = vlaneseq
        %v1325 = vshrl.u32 %v1324, 7
        %v1326 = vadd.s32 %v1325, 120
        %1327 = vset.pattern.permute.xlu0 %v1326
        %1328 = vperm.xlu0 %1327, %v1233
        %v1329 = vpop.permute.xlu0 %1328
        %v1330 = vperm.slane %v419, 1
        %v1331 = vlaneseq
        %v1332 = vshrl.u32 %v1331, 7
        %1334 = vset.pattern.permute.xlu0 %v1332
        %1335 = vperm.xlu0 %1334, %v1330
        %v1336 = vpop.permute.xlu0 %1335
        %v1337 = vlaneseq
        %v1338 = vshrl.u32 %v1337, 7
        %v1339 = vadd.s32 %v1338, 8
        %1340 = vset.pattern.permute.xlu0 %v1339
        %1341 = vperm.xlu0 %1340, %v1330
        %v1342 = vpop.permute.xlu0 %1341
        %v1343 = vlaneseq
        %v1344 = vshrl.u32 %v1343, 7
        %v1345 = vadd.s32 %v1344, 16
        %1346 = vset.pattern.permute.xlu0 %v1345
        %1347 = vperm.xlu0 %1346, %v1330
        %v1348 = vpop.permute.xlu0 %1347
        %v1349 = vlaneseq
        %v1350 = vshrl.u32 %v1349, 7
        %v1351 = vadd.s32 %v1350, 24
        %1352 = vset.pattern.permute.xlu0 %v1351
        %1353 = vperm.xlu0 %1352, %v1330
        %v1354 = vpop.permute.xlu0 %1353
        %v1355 = vlaneseq
        %v1356 = vshrl.u32 %v1355, 7
        %v1357 = vadd.s32 %v1356, 32
        %1358 = vset.pattern.permute.xlu0 %v1357
        %1359 = vperm.xlu0 %1358, %v1330
        %v1360 = vpop.permute.xlu0 %1359
        %v1361 = vlaneseq
        %v1362 = vshrl.u32 %v1361, 7
        %v1363 = vadd.s32 %v1362, 40
        %1364 = vset.pattern.permute.xlu0 %v1363
        %1365 = vperm.xlu0 %1364, %v1330
        %v1366 = vpop.permute.xlu0 %1365
        %v1367 = vlaneseq
        %v1368 = vshrl.u32 %v1367, 7
        %v1369 = vadd.s32 %v1368, 48
        %1370 = vset.pattern.permute.xlu0 %v1369
        %1371 = vperm.xlu0 %1370, %v1330
        %v1372 = vpop.permute.xlu0 %1371
        %v1373 = vlaneseq
        %v1374 = vshrl.u32 %v1373, 7
        %v1375 = vadd.s32 %v1374, 56
        %1376 = vset.pattern.permute.xlu0 %v1375
        %1377 = vperm.xlu0 %1376, %v1330
        %v1378 = vpop.permute.xlu0 %1377
        %v1379 = vlaneseq
        %v1380 = vshrl.u32 %v1379, 7
        %v1381 = vadd.s32 %v1380, 64
        %1382 = vset.pattern.permute.xlu0 %v1381
        %1383 = vperm.xlu0 %1382, %v1330
        %v1384 = vpop.permute.xlu0 %1383
        %v1385 = vlaneseq
        %v1386 = vshrl.u32 %v1385, 7
        %v1387 = vadd.s32 %v1386, 72
        %1388 = vset.pattern.permute.xlu0 %v1387
        %1389 = vperm.xlu0 %1388, %v1330
        %v1390 = vpop.permute.xlu0 %1389
        %v1391 = vlaneseq
        %v1392 = vshrl.u32 %v1391, 7
        %v1393 = vadd.s32 %v1392, 80
        %1394 = vset.pattern.permute.xlu0 %v1393
        %1395 = vperm.xlu0 %1394, %v1330
        %v1396 = vpop.permute.xlu0 %1395
        %v1397 = vlaneseq
        %v1398 = vshrl.u32 %v1397, 7
        %v1399 = vadd.s32 %v1398, 88
        %1400 = vset.pattern.permute.xlu0 %v1399
        %1401 = vperm.xlu0 %1400, %v1330
        %v1402 = vpop.permute.xlu0 %1401
        %v1403 = vlaneseq
        %v1404 = vshrl.u32 %v1403, 7
        %v1405 = vadd.s32 %v1404, 96
        %1406 = vset.pattern.permute.xlu0 %v1405
        %1407 = vperm.xlu0 %1406, %v1330
        %v1408 = vpop.permute.xlu0 %1407
        %v1409 = vlaneseq
        %v1410 = vshrl.u32 %v1409, 7
        %v1411 = vadd.s32 %v1410, 104
        %1412 = vset.pattern.permute.xlu0 %v1411
        %1413 = vperm.xlu0 %1412, %v1330
        %v1414 = vpop.permute.xlu0 %1413
        %v1415 = vlaneseq
        %v1416 = vshrl.u32 %v1415, 7
        %v1417 = vadd.s32 %v1416, 112
        %1418 = vset.pattern.permute.xlu0 %v1417
        %1419 = vperm.xlu0 %1418, %v1330
        %v1420 = vpop.permute.xlu0 %1419
        %v1421 = vlaneseq
        %v1422 = vshrl.u32 %v1421, 7
        %v1423 = vadd.s32 %v1422, 120
        %1424 = vset.pattern.permute.xlu0 %v1423
        %1425 = vperm.xlu0 %1424, %v1330
        %v1426 = vpop.permute.xlu0 %1425
        %v1427 = vperm.slane %v419, 2
        %v1428 = vlaneseq
        %v1429 = vshrl.u32 %v1428, 7
        %1431 = vset.pattern.permute.xlu0 %v1429
        %1432 = vperm.xlu0 %1431, %v1427
        %v1433 = vpop.permute.xlu0 %1432
        %v1434 = vlaneseq
        %v1435 = vshrl.u32 %v1434, 7
        %v1436 = vadd.s32 %v1435, 8
        %1437 = vset.pattern.permute.xlu0 %v1436
        %1438 = vperm.xlu0 %1437, %v1427
        %v1439 = vpop.permute.xlu0 %1438
        %v1440 = vlaneseq
        %v1441 = vshrl.u32 %v1440, 7
        %v1442 = vadd.s32 %v1441, 16
        %1443 = vset.pattern.permute.xlu0 %v1442
        %1444 = vperm.xlu0 %1443, %v1427
        %v1445 = vpop.permute.xlu0 %1444
        %v1446 = vlaneseq
        %v1447 = vshrl.u32 %v1446, 7
        %v1448 = vadd.s32 %v1447, 24
        %1449 = vset.pattern.permute.xlu0 %v1448
        %1450 = vperm.xlu0 %1449, %v1427
        %v1451 = vpop.permute.xlu0 %1450
        %v1452 = vlaneseq
        %v1453 = vshrl.u32 %v1452, 7
        %v1454 = vadd.s32 %v1453, 32
        %1455 = vset.pattern.permute.xlu0 %v1454
        %1456 = vperm.xlu0 %1455, %v1427
        %v1457 = vpop.permute.xlu0 %1456
        %v1458 = vlaneseq
        %v1459 = vshrl.u32 %v1458, 7
        %v1460 = vadd.s32 %v1459, 40
        %1461 = vset.pattern.permute.xlu0 %v1460
        %1462 = vperm.xlu0 %1461, %v1427
        %v1463 = vpop.permute.xlu0 %1462
        %v1464 = vlaneseq
        %v1465 = vshrl.u32 %v1464, 7
        %v1466 = vadd.s32 %v1465, 48
        %1467 = vset.pattern.permute.xlu0 %v1466
        %1468 = vperm.xlu0 %1467, %v1427
        %v1469 = vpop.permute.xlu0 %1468
        %v1470 = vlaneseq
        %v1471 = vshrl.u32 %v1470, 7
        %v1472 = vadd.s32 %v1471, 56
        %1473 = vset.pattern.permute.xlu0 %v1472
        %1474 = vperm.xlu0 %1473, %v1427
        %v1475 = vpop.permute.xlu0 %1474
        %v1476 = vlaneseq
        %v1477 = vshrl.u32 %v1476, 7
        %v1478 = vadd.s32 %v1477, 64
        %1479 = vset.pattern.permute.xlu0 %v1478
        %1480 = vperm.xlu0 %1479, %v1427
        %v1481 = vpop.permute.xlu0 %1480
        %v1482 = vlaneseq
        %v1483 = vshrl.u32 %v1482, 7
        %v1484 = vadd.s32 %v1483, 72
        %1485 = vset.pattern.permute.xlu0 %v1484
        %1486 = vperm.xlu0 %1485, %v1427
        %v1487 = vpop.permute.xlu0 %1486
        %v1488 = vlaneseq
        %v1489 = vshrl.u32 %v1488, 7
        %v1490 = vadd.s32 %v1489, 80
        %1491 = vset.pattern.permute.xlu0 %v1490
        %1492 = vperm.xlu0 %1491, %v1427
        %v1493 = vpop.permute.xlu0 %1492
        %v1494 = vlaneseq
        %v1495 = vshrl.u32 %v1494, 7
        %v1496 = vadd.s32 %v1495, 88
        %1497 = vset.pattern.permute.xlu0 %v1496
        %1498 = vperm.xlu0 %1497, %v1427
        %v1499 = vpop.permute.xlu0 %1498
        %v1500 = vlaneseq
        %v1501 = vshrl.u32 %v1500, 7
        %v1502 = vadd.s32 %v1501, 96
        %1503 = vset.pattern.permute.xlu0 %v1502
        %1504 = vperm.xlu0 %1503, %v1427
        %v1505 = vpop.permute.xlu0 %1504
        %v1506 = vlaneseq
        %v1507 = vshrl.u32 %v1506, 7
        %v1508 = vadd.s32 %v1507, 104
        %1509 = vset.pattern.permute.xlu0 %v1508
        %1510 = vperm.xlu0 %1509, %v1427
        %v1511 = vpop.permute.xlu0 %1510
        %v1512 = vlaneseq
        %v1513 = vshrl.u32 %v1512, 7
        %v1514 = vadd.s32 %v1513, 112
        %1515 = vset.pattern.permute.xlu0 %v1514
        %1516 = vperm.xlu0 %1515, %v1427
        %v1517 = vpop.permute.xlu0 %1516
        %v1518 = vlaneseq
        %v1519 = vshrl.u32 %v1518, 7
        %v1520 = vadd.s32 %v1519, 120
        %1521 = vset.pattern.permute.xlu0 %v1520
        %1522 = vperm.xlu0 %1521, %v1427
        %v1523 = vpop.permute.xlu0 %1522
        %v1524 = vperm.slane %v419, 3
        %v1525 = vlaneseq
        %v1526 = vshrl.u32 %v1525, 7
        %1528 = vset.pattern.permute.xlu0 %v1526
        %1529 = vperm.xlu0 %1528, %v1524
        %v1530 = vpop.permute.xlu0 %1529
        %v1531 = vlaneseq
        %v1532 = vshrl.u32 %v1531, 7
        %v1533 = vadd.s32 %v1532, 8
        %1534 = vset.pattern.permute.xlu0 %v1533
        %1535 = vperm.xlu0 %1534, %v1524
        %v1536 = vpop.permute.xlu0 %1535
        %v1537 = vlaneseq
        %v1538 = vshrl.u32 %v1537, 7
        %v1539 = vadd.s32 %v1538, 16
        %1540 = vset.pattern.permute.xlu0 %v1539
        %1541 = vperm.xlu0 %1540, %v1524
        %v1542 = vpop.permute.xlu0 %1541
        %v1543 = vlaneseq
        %v1544 = vshrl.u32 %v1543, 7
        %v1545 = vadd.s32 %v1544, 24
        %1546 = vset.pattern.permute.xlu0 %v1545
        %1547 = vperm.xlu0 %1546, %v1524
        %v1548 = vpop.permute.xlu0 %1547
        %v1549 = vlaneseq
        %v1550 = vshrl.u32 %v1549, 7
        %v1551 = vadd.s32 %v1550, 32
        %1552 = vset.pattern.permute.xlu0 %v1551
        %1553 = vperm.xlu0 %1552, %v1524
        %v1554 = vpop.permute.xlu0 %1553
        %v1555 = vlaneseq
        %v1556 = vshrl.u32 %v1555, 7
        %v1557 = vadd.s32 %v1556, 40
        %1558 = vset.pattern.permute.xlu0 %v1557
        %1559 = vperm.xlu0 %1558, %v1524
        %v1560 = vpop.permute.xlu0 %1559
        %v1561 = vlaneseq
        %v1562 = vshrl.u32 %v1561, 7
        %v1563 = vadd.s32 %v1562, 48
        %1564 = vset.pattern.permute.xlu0 %v1563
        %1565 = vperm.xlu0 %1564, %v1524
        %v1566 = vpop.permute.xlu0 %1565
        %v1567 = vlaneseq
        %v1568 = vshrl.u32 %v1567, 7
        %v1569 = vadd.s32 %v1568, 56
        %1570 = vset.pattern.permute.xlu0 %v1569
        %1571 = vperm.xlu0 %1570, %v1524
        %v1572 = vpop.permute.xlu0 %1571
        %v1573 = vlaneseq
        %v1574 = vshrl.u32 %v1573, 7
        %v1575 = vadd.s32 %v1574, 64
        %1576 = vset.pattern.permute.xlu0 %v1575
        %1577 = vperm.xlu0 %1576, %v1524
        %v1578 = vpop.permute.xlu0 %1577
        %v1579 = vlaneseq
        %v1580 = vshrl.u32 %v1579, 7
        %v1581 = vadd.s32 %v1580, 72
        %1582 = vset.pattern.permute.xlu0 %v1581
        %1583 = vperm.xlu0 %1582, %v1524
        %v1584 = vpop.permute.xlu0 %1583
        %v1585 = vlaneseq
        %v1586 = vshrl.u32 %v1585, 7
        %v1587 = vadd.s32 %v1586, 80
        %1588 = vset.pattern.permute.xlu0 %v1587
        %1589 = vperm.xlu0 %1588, %v1524
        %v1590 = vpop.permute.xlu0 %1589
        %v1591 = vlaneseq
        %v1592 = vshrl.u32 %v1591, 7
        %v1593 = vadd.s32 %v1592, 88
        %1594 = vset.pattern.permute.xlu0 %v1593
        %1595 = vperm.xlu0 %1594, %v1524
        %v1596 = vpop.permute.xlu0 %1595
        %v1597 = vlaneseq
        %v1598 = vshrl.u32 %v1597, 7
        %v1599 = vadd.s32 %v1598, 96
        %1600 = vset.pattern.permute.xlu0 %v1599
        %1601 = vperm.xlu0 %1600, %v1524
        %v1602 = vpop.permute.xlu0 %1601
        %v1603 = vlaneseq
        %v1604 = vshrl.u32 %v1603, 7
        %v1605 = vadd.s32 %v1604, 104
        %1606 = vset.pattern.permute.xlu0 %v1605
        %1607 = vperm.xlu0 %1606, %v1524
        %v1608 = vpop.permute.xlu0 %1607
        %v1609 = vlaneseq
        %v1610 = vshrl.u32 %v1609, 7
        %v1611 = vadd.s32 %v1610, 112
        %1612 = vset.pattern.permute.xlu0 %v1611
        %1613 = vperm.xlu0 %1612, %v1524
        %v1614 = vpop.permute.xlu0 %1613
        %v1615 = vlaneseq
        %v1616 = vshrl.u32 %v1615, 7
        %v1617 = vadd.s32 %v1616, 120
        %1618 = vset.pattern.permute.xlu0 %v1617
        %1619 = vperm.xlu0 %1618, %v1524
        %v1620 = vpop.permute.xlu0 %1619
        %v1621 = vperm.slane %v419, 4
        %v1622 = vlaneseq
        %v1623 = vshrl.u32 %v1622, 7
        %1625 = vset.pattern.permute.xlu0 %v1623
        %1626 = vperm.xlu0 %1625, %v1621
        %v1627 = vpop.permute.xlu0 %1626
        %v1628 = vlaneseq
        %v1629 = vshrl.u32 %v1628, 7
        %v1630 = vadd.s32 %v1629, 8
        %1631 = vset.pattern.permute.xlu0 %v1630
        %1632 = vperm.xlu0 %1631, %v1621
        %v1633 = vpop.permute.xlu0 %1632
        %v1634 = vlaneseq
        %v1635 = vshrl.u32 %v1634, 7
        %v1636 = vadd.s32 %v1635, 16
        %1637 = vset.pattern.permute.xlu0 %v1636
        %1638 = vperm.xlu0 %1637, %v1621
        %v1639 = vpop.permute.xlu0 %1638
        %v1640 = vlaneseq
        %v1641 = vshrl.u32 %v1640, 7
        %v1642 = vadd.s32 %v1641, 24
        %1643 = vset.pattern.permute.xlu0 %v1642
        %1644 = vperm.xlu0 %1643, %v1621
        %v1645 = vpop.permute.xlu0 %1644
        %v1646 = vlaneseq
        %v1647 = vshrl.u32 %v1646, 7
        %v1648 = vadd.s32 %v1647, 32
        %1649 = vset.pattern.permute.xlu0 %v1648
        %1650 = vperm.xlu0 %1649, %v1621
        %v1651 = vpop.permute.xlu0 %1650
        %v1652 = vlaneseq
        %v1653 = vshrl.u32 %v1652, 7
        %v1654 = vadd.s32 %v1653, 40
        %1655 = vset.pattern.permute.xlu0 %v1654
        %1656 = vperm.xlu0 %1655, %v1621
        %v1657 = vpop.permute.xlu0 %1656
        %v1658 = vlaneseq
        %v1659 = vshrl.u32 %v1658, 7
        %v1660 = vadd.s32 %v1659, 48
        %1661 = vset.pattern.permute.xlu0 %v1660
        %1662 = vperm.xlu0 %1661, %v1621
        %v1663 = vpop.permute.xlu0 %1662
        %v1664 = vlaneseq
        %v1665 = vshrl.u32 %v1664, 7
        %v1666 = vadd.s32 %v1665, 56
        %1667 = vset.pattern.permute.xlu0 %v1666
        %1668 = vperm.xlu0 %1667, %v1621
        %v1669 = vpop.permute.xlu0 %1668
        %v1670 = vlaneseq
        %v1671 = vshrl.u32 %v1670, 7
        %v1672 = vadd.s32 %v1671, 64
        %1673 = vset.pattern.permute.xlu0 %v1672
        %1674 = vperm.xlu0 %1673, %v1621
        %v1675 = vpop.permute.xlu0 %1674
        %v1676 = vlaneseq
        %v1677 = vshrl.u32 %v1676, 7
        %v1678 = vadd.s32 %v1677, 72
        %1679 = vset.pattern.permute.xlu0 %v1678
        %1680 = vperm.xlu0 %1679, %v1621
        %v1681 = vpop.permute.xlu0 %1680
        %v1682 = vlaneseq
        %v1683 = vshrl.u32 %v1682, 7
        %v1684 = vadd.s32 %v1683, 80
        %1685 = vset.pattern.permute.xlu0 %v1684
        %1686 = vperm.xlu0 %1685, %v1621
        %v1687 = vpop.permute.xlu0 %1686
        %v1688 = vlaneseq
        %v1689 = vshrl.u32 %v1688, 7
        %v1690 = vadd.s32 %v1689, 88
        %1691 = vset.pattern.permute.xlu0 %v1690
        %1692 = vperm.xlu0 %1691, %v1621
        %v1693 = vpop.permute.xlu0 %1692
        %v1694 = vlaneseq
        %v1695 = vshrl.u32 %v1694, 7
        %v1696 = vadd.s32 %v1695, 96
        %1697 = vset.pattern.permute.xlu0 %v1696
        %1698 = vperm.xlu0 %1697, %v1621
        %v1699 = vpop.permute.xlu0 %1698
        %v1700 = vlaneseq
        %v1701 = vshrl.u32 %v1700, 7
        %v1702 = vadd.s32 %v1701, 104
        %1703 = vset.pattern.permute.xlu0 %v1702
        %1704 = vperm.xlu0 %1703, %v1621
        %v1705 = vpop.permute.xlu0 %1704
        %v1706 = vlaneseq
        %v1707 = vshrl.u32 %v1706, 7
        %v1708 = vadd.s32 %v1707, 112
        %1709 = vset.pattern.permute.xlu0 %v1708
        %1710 = vperm.xlu0 %1709, %v1621
        %v1711 = vpop.permute.xlu0 %1710
        %v1712 = vlaneseq
        %v1713 = vshrl.u32 %v1712, 7
        %v1714 = vadd.s32 %v1713, 120
        %1715 = vset.pattern.permute.xlu0 %v1714
        %1716 = vperm.xlu0 %1715, %v1621
        %v1717 = vpop.permute.xlu0 %1716
        %v1718 = vperm.slane %v419, 5
        %v1719 = vlaneseq
        %v1720 = vshrl.u32 %v1719, 7
        %1722 = vset.pattern.permute.xlu0 %v1720
        %1723 = vperm.xlu0 %1722, %v1718
        %v1724 = vpop.permute.xlu0 %1723
        %v1725 = vlaneseq
        %v1726 = vshrl.u32 %v1725, 7
        %v1727 = vadd.s32 %v1726, 8
        %1728 = vset.pattern.permute.xlu0 %v1727
        %1729 = vperm.xlu0 %1728, %v1718
        %v1730 = vpop.permute.xlu0 %1729
        %v1731 = vlaneseq
        %v1732 = vshrl.u32 %v1731, 7
        %v1733 = vadd.s32 %v1732, 16
        %1734 = vset.pattern.permute.xlu0 %v1733
        %1735 = vperm.xlu0 %1734, %v1718
        %v1736 = vpop.permute.xlu0 %1735
        %v1737 = vlaneseq
        %v1738 = vshrl.u32 %v1737, 7
        %v1739 = vadd.s32 %v1738, 24
        %1740 = vset.pattern.permute.xlu0 %v1739
        %1741 = vperm.xlu0 %1740, %v1718
        %v1742 = vpop.permute.xlu0 %1741
        %v1743 = vlaneseq
        %v1744 = vshrl.u32 %v1743, 7
        %v1745 = vadd.s32 %v1744, 32
        %1746 = vset.pattern.permute.xlu0 %v1745
        %1747 = vperm.xlu0 %1746, %v1718
        %v1748 = vpop.permute.xlu0 %1747
        %v1749 = vlaneseq
        %v1750 = vshrl.u32 %v1749, 7
        %v1751 = vadd.s32 %v1750, 40
        %1752 = vset.pattern.permute.xlu0 %v1751
        %1753 = vperm.xlu0 %1752, %v1718
        %v1754 = vpop.permute.xlu0 %1753
        %v1755 = vlaneseq
        %v1756 = vshrl.u32 %v1755, 7
        %v1757 = vadd.s32 %v1756, 48
        %1758 = vset.pattern.permute.xlu0 %v1757
        %1759 = vperm.xlu0 %1758, %v1718
        %v1760 = vpop.permute.xlu0 %1759
        %v1761 = vlaneseq
        %v1762 = vshrl.u32 %v1761, 7
        %v1763 = vadd.s32 %v1762, 56
        %1764 = vset.pattern.permute.xlu0 %v1763
        %1765 = vperm.xlu0 %1764, %v1718
        %v1766 = vpop.permute.xlu0 %1765
        %v1767 = vlaneseq
        %v1768 = vshrl.u32 %v1767, 7
        %v1769 = vadd.s32 %v1768, 64
        %1770 = vset.pattern.permute.xlu0 %v1769
        %1771 = vperm.xlu0 %1770, %v1718
        %v1772 = vpop.permute.xlu0 %1771
        %v1773 = vlaneseq
        %v1774 = vshrl.u32 %v1773, 7
        %v1775 = vadd.s32 %v1774, 72
        %1776 = vset.pattern.permute.xlu0 %v1775
        %1777 = vperm.xlu0 %1776, %v1718
        %v1778 = vpop.permute.xlu0 %1777
        %v1779 = vlaneseq
        %v1780 = vshrl.u32 %v1779, 7
        %v1781 = vadd.s32 %v1780, 80
        %1782 = vset.pattern.permute.xlu0 %v1781
        %1783 = vperm.xlu0 %1782, %v1718
        %v1784 = vpop.permute.xlu0 %1783
        %v1785 = vlaneseq
        %v1786 = vshrl.u32 %v1785, 7
        %v1787 = vadd.s32 %v1786, 88
        %1788 = vset.pattern.permute.xlu0 %v1787
        %1789 = vperm.xlu0 %1788, %v1718
        %v1790 = vpop.permute.xlu0 %1789
        %v1791 = vlaneseq
        %v1792 = vshrl.u32 %v1791, 7
        %v1793 = vadd.s32 %v1792, 96
        %1794 = vset.pattern.permute.xlu0 %v1793
        %1795 = vperm.xlu0 %1794, %v1718
        %v1796 = vpop.permute.xlu0 %1795
        %v1797 = vlaneseq
        %v1798 = vshrl.u32 %v1797, 7
        %v1799 = vadd.s32 %v1798, 104
        %1800 = vset.pattern.permute.xlu0 %v1799
        %1801 = vperm.xlu0 %1800, %v1718
        %v1802 = vpop.permute.xlu0 %1801
        %v1803 = vlaneseq
        %v1804 = vshrl.u32 %v1803, 7
        %v1805 = vadd.s32 %v1804, 112
        %1806 = vset.pattern.permute.xlu0 %v1805
        %1807 = vperm.xlu0 %1806, %v1718
        %v1808 = vpop.permute.xlu0 %1807
        %v1809 = vlaneseq
        %v1810 = vshrl.u32 %v1809, 7
        %v1811 = vadd.s32 %v1810, 120
        %1812 = vset.pattern.permute.xlu0 %v1811
        %1813 = vperm.xlu0 %1812, %v1718
        %v1814 = vpop.permute.xlu0 %1813
        %v1815 = vperm.slane %v419, 6
        %v1816 = vlaneseq
        %v1817 = vshrl.u32 %v1816, 7
        %1819 = vset.pattern.permute.xlu0 %v1817
        %1820 = vperm.xlu0 %1819, %v1815
        %v1821 = vpop.permute.xlu0 %1820
        %v1822 = vlaneseq
        %v1823 = vshrl.u32 %v1822, 7
        %v1824 = vadd.s32 %v1823, 8
        %1825 = vset.pattern.permute.xlu0 %v1824
        %1826 = vperm.xlu0 %1825, %v1815
        %v1827 = vpop.permute.xlu0 %1826
        %v1828 = vlaneseq
        %v1829 = vshrl.u32 %v1828, 7
        %v1830 = vadd.s32 %v1829, 16
        %1831 = vset.pattern.permute.xlu0 %v1830
        %1832 = vperm.xlu0 %1831, %v1815
        %v1833 = vpop.permute.xlu0 %1832
        %v1834 = vlaneseq
        %v1835 = vshrl.u32 %v1834, 7
        %v1836 = vadd.s32 %v1835, 24
        %1837 = vset.pattern.permute.xlu0 %v1836
        %1838 = vperm.xlu0 %1837, %v1815
        %v1839 = vpop.permute.xlu0 %1838
        %v1840 = vlaneseq
        %v1841 = vshrl.u32 %v1840, 7
        %v1842 = vadd.s32 %v1841, 32
        %1843 = vset.pattern.permute.xlu0 %v1842
        %1844 = vperm.xlu0 %1843, %v1815
        %v1845 = vpop.permute.xlu0 %1844
        %v1846 = vlaneseq
        %v1847 = vshrl.u32 %v1846, 7
        %v1848 = vadd.s32 %v1847, 40
        %1849 = vset.pattern.permute.xlu0 %v1848
        %1850 = vperm.xlu0 %1849, %v1815
        %v1851 = vpop.permute.xlu0 %1850
        %v1852 = vlaneseq
        %v1853 = vshrl.u32 %v1852, 7
        %v1854 = vadd.s32 %v1853, 48
        %1855 = vset.pattern.permute.xlu0 %v1854
        %1856 = vperm.xlu0 %1855, %v1815
        %v1857 = vpop.permute.xlu0 %1856
        %v1858 = vlaneseq
        %v1859 = vshrl.u32 %v1858, 7
        %v1860 = vadd.s32 %v1859, 56
        %1861 = vset.pattern.permute.xlu0 %v1860
        %1862 = vperm.xlu0 %1861, %v1815
        %v1863 = vpop.permute.xlu0 %1862
        %v1864 = vlaneseq
        %v1865 = vshrl.u32 %v1864, 7
        %v1866 = vadd.s32 %v1865, 64
        %1867 = vset.pattern.permute.xlu0 %v1866
        %1868 = vperm.xlu0 %1867, %v1815
        %v1869 = vpop.permute.xlu0 %1868
        %v1870 = vlaneseq
        %v1871 = vshrl.u32 %v1870, 7
        %v1872 = vadd.s32 %v1871, 72
        %1873 = vset.pattern.permute.xlu0 %v1872
        %1874 = vperm.xlu0 %1873, %v1815
        %v1875 = vpop.permute.xlu0 %1874
        %v1876 = vlaneseq
        %v1877 = vshrl.u32 %v1876, 7
        %v1878 = vadd.s32 %v1877, 80
        %1879 = vset.pattern.permute.xlu0 %v1878
        %1880 = vperm.xlu0 %1879, %v1815
        %v1881 = vpop.permute.xlu0 %1880
        %v1882 = vlaneseq
        %v1883 = vshrl.u32 %v1882, 7
        %v1884 = vadd.s32 %v1883, 88
        %1885 = vset.pattern.permute.xlu0 %v1884
        %1886 = vperm.xlu0 %1885, %v1815
        %v1887 = vpop.permute.xlu0 %1886
        %v1888 = vlaneseq
        %v1889 = vshrl.u32 %v1888, 7
        %v1890 = vadd.s32 %v1889, 96
        %1891 = vset.pattern.permute.xlu0 %v1890
        %1892 = vperm.xlu0 %1891, %v1815
        %v1893 = vpop.permute.xlu0 %1892
        %v1894 = vlaneseq
        %v1895 = vshrl.u32 %v1894, 7
        %v1896 = vadd.s32 %v1895, 104
        %1897 = vset.pattern.permute.xlu0 %v1896
        %1898 = vperm.xlu0 %1897, %v1815
        %v1899 = vpop.permute.xlu0 %1898
        %v1900 = vlaneseq
        %v1901 = vshrl.u32 %v1900, 7
        %v1902 = vadd.s32 %v1901, 112
        %1903 = vset.pattern.permute.xlu0 %v1902
        %1904 = vperm.xlu0 %1903, %v1815
        %v1905 = vpop.permute.xlu0 %1904
        %v1906 = vlaneseq
        %v1907 = vshrl.u32 %v1906, 7
        %v1908 = vadd.s32 %v1907, 120
        %1909 = vset.pattern.permute.xlu0 %v1908
        %1910 = vperm.xlu0 %1909, %v1815
        %v1911 = vpop.permute.xlu0 %1910
        %v1912 = vperm.slane %v419, 7
        %v1913 = vlaneseq
        %v1914 = vshrl.u32 %v1913, 7
        %1916 = vset.pattern.permute.xlu0 %v1914
        %1917 = vperm.xlu0 %1916, %v1912
        %v1918 = vpop.permute.xlu0 %1917
        %v1919 = vlaneseq
        %v1920 = vshrl.u32 %v1919, 7
        %v1921 = vadd.s32 %v1920, 8
        %1922 = vset.pattern.permute.xlu0 %v1921
        %1923 = vperm.xlu0 %1922, %v1912
        %v1924 = vpop.permute.xlu0 %1923
        %v1925 = vlaneseq
        %v1926 = vshrl.u32 %v1925, 7
        %v1927 = vadd.s32 %v1926, 16
        %1928 = vset.pattern.permute.xlu0 %v1927
        %1929 = vperm.xlu0 %1928, %v1912
        %v1930 = vpop.permute.xlu0 %1929
        %v1931 = vlaneseq
        %v1932 = vshrl.u32 %v1931, 7
        %v1933 = vadd.s32 %v1932, 24
        %1934 = vset.pattern.permute.xlu0 %v1933
        %1935 = vperm.xlu0 %1934, %v1912
        %v1936 = vpop.permute.xlu0 %1935
        %v1937 = vlaneseq
        %v1938 = vshrl.u32 %v1937, 7
        %v1939 = vadd.s32 %v1938, 32
        %1940 = vset.pattern.permute.xlu0 %v1939
        %1941 = vperm.xlu0 %1940, %v1912
        %v1942 = vpop.permute.xlu0 %1941
        %v1943 = vlaneseq
        %v1944 = vshrl.u32 %v1943, 7
        %v1945 = vadd.s32 %v1944, 40
        %1946 = vset.pattern.permute.xlu0 %v1945
        %1947 = vperm.xlu0 %1946, %v1912
        %v1948 = vpop.permute.xlu0 %1947
        %v1949 = vlaneseq
        %v1950 = vshrl.u32 %v1949, 7
        %v1951 = vadd.s32 %v1950, 48
        %1952 = vset.pattern.permute.xlu0 %v1951
        %1953 = vperm.xlu0 %1952, %v1912
        %v1954 = vpop.permute.xlu0 %1953
        %v1955 = vlaneseq
        %v1956 = vshrl.u32 %v1955, 7
        %v1957 = vadd.s32 %v1956, 56
        %1958 = vset.pattern.permute.xlu0 %v1957
        %1959 = vperm.xlu0 %1958, %v1912
        %v1960 = vpop.permute.xlu0 %1959
        %v1961 = vlaneseq
        %v1962 = vshrl.u32 %v1961, 7
        %v1963 = vadd.s32 %v1962, 64
        %1964 = vset.pattern.permute.xlu0 %v1963
        %1965 = vperm.xlu0 %1964, %v1912
        %v1966 = vpop.permute.xlu0 %1965
        %v1967 = vlaneseq
        %v1968 = vshrl.u32 %v1967, 7
        %v1969 = vadd.s32 %v1968, 72
        %1970 = vset.pattern.permute.xlu0 %v1969
        %1971 = vperm.xlu0 %1970, %v1912
        %v1972 = vpop.permute.xlu0 %1971
        %v1973 = vlaneseq
        %v1974 = vshrl.u32 %v1973, 7
        %v1975 = vadd.s32 %v1974, 80
        %1976 = vset.pattern.permute.xlu0 %v1975
        %1977 = vperm.xlu0 %1976, %v1912
        %v1978 = vpop.permute.xlu0 %1977
        %v1979 = vlaneseq
        %v1980 = vshrl.u32 %v1979, 7
        %v1981 = vadd.s32 %v1980, 88
        %1982 = vset.pattern.permute.xlu0 %v1981
        %1983 = vperm.xlu0 %1982, %v1912
        %v1984 = vpop.permute.xlu0 %1983
        %v1985 = vlaneseq
        %v1986 = vshrl.u32 %v1985, 7
        %v1987 = vadd.s32 %v1986, 96
        %1988 = vset.pattern.permute.xlu0 %v1987
        %1989 = vperm.xlu0 %1988, %v1912
        %v1990 = vpop.permute.xlu0 %1989
        %v1991 = vlaneseq
        %v1992 = vshrl.u32 %v1991, 7
        %v1993 = vadd.s32 %v1992, 104
        %1994 = vset.pattern.permute.xlu0 %v1993
        %1995 = vperm.xlu0 %1994, %v1912
        %v1996 = vpop.permute.xlu0 %1995
        %v1997 = vlaneseq
        %v1998 = vshrl.u32 %v1997, 7
        %v1999 = vadd.s32 %v1998, 112
        %2000 = vset.pattern.permute.xlu0 %v1999
        %2001 = vperm.xlu0 %2000, %v1912
        %v2002 = vpop.permute.xlu0 %2001
        %v2003 = vlaneseq
        %v2004 = vshrl.u32 %v2003, 7
        %v2005 = vadd.s32 %v2004, 120
        %2006 = vset.pattern.permute.xlu0 %v2005
        %2007 = vperm.xlu0 %2006, %v1912
        %v2008 = vpop.permute.xlu0 %2007
        %v2011 = vrot.slane %v415, 1
        %v2012 = vrot.slane %v415, 2
        %v2013 = vrot.slane %v415, 3
        %v2014 = vrot.slane %v415, 4
        %v2015 = vrot.slane %v415, 5
        %v2016 = vrot.slane %v415, 6
        %v2017 = vrot.slane %v415, 7
        %v2018 = vrot.slane %v419, 1
        %v2019 = vrot.slane %v419, 2
        %v2020 = vrot.slane %v419, 3
        %v2021 = vrot.slane %v419, 4
        %v2022 = vrot.slane %v419, 5
        %v2023 = vrot.slane %v419, 6
        %v2024 = vrot.slane %v419, 7
        %v2025 = vperm.slane %v415, 0
        %v2026 = vperm.slane %v2011, 0
        %v2027 = vperm.slane %v2012, 0
        %v2028 = vperm.slane %v2013, 0
        %v2029 = vperm.slane %v2014, 0
        %v2030 = vperm.slane %v2015, 0
        %v2031 = vperm.slane %v2016, 0
        %v2032 = vperm.slane %v2017, 0
        %v2033 = vperm.slane %v419, 0
        %v2034 = vperm.slane %v2018, 0
        %v2035 = vperm.slane %v2019, 0
        %v2036 = vperm.slane %v2020, 0
        %v2037 = vperm.slane %v2021, 0
        %v2038 = vperm.slane %v2022, 0
        %v2039 = vperm.slane %v2023, 0
        %v2040 = vperm.slane %v2024, 0
        %vm2057 = vcmp.lt.f32.partialorder %v2025, %v463
        %vm2058 = vcmp.lt.f32.partialorder %v2025, %v469
        %vm2059 = vcmp.lt.f32.partialorder %v2025, %v475
        %vm2060 = vcmp.lt.f32.partialorder %v2025, %v481
        %vm2061 = vcmp.lt.f32.partialorder %v2025, %v487
        %vm2062 = vcmp.lt.f32.partialorder %v2025, %v493
        %vm2063 = vcmp.lt.f32.partialorder %v2025, %v499
        %vm2064 = vcmp.lt.f32.partialorder %v2025, %v505
        %vm2065 = vcmp.lt.f32.partialorder %v2025, %v511
        %vm2066 = vcmp.lt.f32.partialorder %v2025, %v517
        %vm2067 = vcmp.lt.f32.partialorder %v2025, %v523
        %vm2068 = vcmp.lt.f32.partialorder %v2025, %v529
        %vm2069 = vcmp.lt.f32.partialorder %v2025, %v535
        %vm2070 = vcmp.lt.f32.partialorder %v2025, %v541
        %vm2071 = vcmp.lt.f32.partialorder %v2025, %v547
        %vm2072 = vcmp.lt.f32.partialorder %v2025, %v553
        %vm2073 = vcmp.lt.f32.partialorder %v2026, %v560
        %vm2074 = vcmp.lt.f32.partialorder %v2026, %v566
        %vm2075 = vcmp.lt.f32.partialorder %v2026, %v572
        %vm2076 = vcmp.lt.f32.partialorder %v2026, %v578
        %vm2077 = vcmp.lt.f32.partialorder %v2026, %v584
        %vm2078 = vcmp.lt.f32.partialorder %v2026, %v590
        %vm2079 = vcmp.lt.f32.partialorder %v2026, %v596
        %vm2080 = vcmp.lt.f32.partialorder %v2026, %v602
        %vm2081 = vcmp.lt.f32.partialorder %v2026, %v608
        %vm2082 = vcmp.lt.f32.partialorder %v2026, %v614
        %vm2083 = vcmp.lt.f32.partialorder %v2026, %v620
        %vm2084 = vcmp.lt.f32.partialorder %v2026, %v626
        %vm2085 = vcmp.lt.f32.partialorder %v2026, %v632
        %vm2086 = vcmp.lt.f32.partialorder %v2026, %v638
        %vm2087 = vcmp.lt.f32.partialorder %v2026, %v644
        %vm2088 = vcmp.lt.f32.partialorder %v2026, %v650
        %vm2089 = vcmp.lt.f32.partialorder %v2027, %v657
        %vm2090 = vcmp.lt.f32.partialorder %v2027, %v663
        %vm2091 = vcmp.lt.f32.partialorder %v2027, %v669
        %vm2092 = vcmp.lt.f32.partialorder %v2027, %v675
        %vm2093 = vcmp.lt.f32.partialorder %v2027, %v681
        %vm2094 = vcmp.lt.f32.partialorder %v2027, %v687
        %vm2095 = vcmp.lt.f32.partialorder %v2027, %v693
        %vm2096 = vcmp.lt.f32.partialorder %v2027, %v699
        %vm2097 = vcmp.lt.f32.partialorder %v2027, %v705
        %vm2098 = vcmp.lt.f32.partialorder %v2027, %v711
        %vm2099 = vcmp.lt.f32.partialorder %v2027, %v717
        %vm2100 = vcmp.lt.f32.partialorder %v2027, %v723
        %vm2101 = vcmp.lt.f32.partialorder %v2027, %v729
        %vm2102 = vcmp.lt.f32.partialorder %v2027, %v735
        %vm2103 = vcmp.lt.f32.partialorder %v2027, %v741
        %vm2104 = vcmp.lt.f32.partialorder %v2027, %v747
        %vm2105 = vcmp.lt.f32.partialorder %v2028, %v754
        %vm2106 = vcmp.lt.f32.partialorder %v2028, %v760
        %vm2107 = vcmp.lt.f32.partialorder %v2028, %v766
        %vm2108 = vcmp.lt.f32.partialorder %v2028, %v772
        %vm2109 = vcmp.lt.f32.partialorder %v2028, %v778
        %vm2110 = vcmp.lt.f32.partialorder %v2028, %v784
        %vm2111 = vcmp.lt.f32.partialorder %v2028, %v790
        %vm2112 = vcmp.lt.f32.partialorder %v2028, %v796
        %vm2113 = vcmp.lt.f32.partialorder %v2028, %v802
        %vm2114 = vcmp.lt.f32.partialorder %v2028, %v808
        %vm2115 = vcmp.lt.f32.partialorder %v2028, %v814
        %vm2116 = vcmp.lt.f32.partialorder %v2028, %v820
        %vm2117 = vcmp.lt.f32.partialorder %v2028, %v826
        %vm2118 = vcmp.lt.f32.partialorder %v2028, %v832
        %vm2119 = vcmp.lt.f32.partialorder %v2028, %v838
        %vm2120 = vcmp.lt.f32.partialorder %v2028, %v844
        %vm2121 = vcmp.lt.f32.partialorder %v2029, %v851
        %vm2122 = vcmp.lt.f32.partialorder %v2029, %v857
        %vm2123 = vcmp.lt.f32.partialorder %v2029, %v863
        %vm2124 = vcmp.lt.f32.partialorder %v2029, %v869
        %vm2125 = vcmp.lt.f32.partialorder %v2029, %v875
        %vm2126 = vcmp.lt.f32.partialorder %v2029, %v881
        %vm2127 = vcmp.lt.f32.partialorder %v2029, %v887
        %vm2128 = vcmp.lt.f32.partialorder %v2029, %v893
        %vm2129 = vcmp.lt.f32.partialorder %v2029, %v899
        %vm2130 = vcmp.lt.f32.partialorder %v2029, %v905
        %vm2131 = vcmp.lt.f32.partialorder %v2029, %v911
        %vm2132 = vcmp.lt.f32.partialorder %v2029, %v917
        %vm2133 = vcmp.lt.f32.partialorder %v2029, %v923
        %vm2134 = vcmp.lt.f32.partialorder %v2029, %v929
        %vm2135 = vcmp.lt.f32.partialorder %v2029, %v935
        %vm2136 = vcmp.lt.f32.partialorder %v2029, %v941
        %vm2137 = vcmp.lt.f32.partialorder %v2030, %v948
        %vm2138 = vcmp.lt.f32.partialorder %v2030, %v954
        %vm2139 = vcmp.lt.f32.partialorder %v2030, %v960
        %vm2140 = vcmp.lt.f32.partialorder %v2030, %v966
        %vm2141 = vcmp.lt.f32.partialorder %v2030, %v972
        %vm2142 = vcmp.lt.f32.partialorder %v2030, %v978
        %vm2143 = vcmp.lt.f32.partialorder %v2030, %v984
        %vm2144 = vcmp.lt.f32.partialorder %v2030, %v990
        %vm2145 = vcmp.lt.f32.partialorder %v2030, %v996
        %vm2146 = vcmp.lt.f32.partialorder %v2030, %v1002
        %vm2147 = vcmp.lt.f32.partialorder %v2030, %v1008
        %vm2148 = vcmp.lt.f32.partialorder %v2030, %v1014
        %vm2149 = vcmp.lt.f32.partialorder %v2030, %v1020
        %vm2150 = vcmp.lt.f32.partialorder %v2030, %v1026
        %vm2151 = vcmp.lt.f32.partialorder %v2030, %v1032
        %vm2152 = vcmp.lt.f32.partialorder %v2030, %v1038
        %vm2153 = vcmp.lt.f32.partialorder %v2031, %v1045
        %vm2154 = vcmp.lt.f32.partialorder %v2031, %v1051
        %vm2155 = vcmp.lt.f32.partialorder %v2031, %v1057
        %vm2156 = vcmp.lt.f32.partialorder %v2031, %v1063
        %vm2157 = vcmp.lt.f32.partialorder %v2031, %v1069
        %vm2158 = vcmp.lt.f32.partialorder %v2031, %v1075
        %vm2159 = vcmp.lt.f32.partialorder %v2031, %v1081
        %vm2160 = vcmp.lt.f32.partialorder %v2031, %v1087
        %vm2161 = vcmp.lt.f32.partialorder %v2031, %v1093
        %vm2162 = vcmp.lt.f32.partialorder %v2031, %v1099
        %vm2163 = vcmp.lt.f32.partialorder %v2031, %v1105
        %vm2164 = vcmp.lt.f32.partialorder %v2031, %v1111
        %vm2165 = vcmp.lt.f32.partialorder %v2031, %v1117
        %vm2166 = vcmp.lt.f32.partialorder %v2031, %v1123
        %vm2167 = vcmp.lt.f32.partialorder %v2031, %v1129
        %vm2168 = vcmp.lt.f32.partialorder %v2031, %v1135
        %vm2169 = vcmp.lt.f32.partialorder %v2032, %v1142
        %vm2170 = vcmp.lt.f32.partialorder %v2032, %v1148
        %vm2171 = vcmp.lt.f32.partialorder %v2032, %v1154
        %vm2172 = vcmp.lt.f32.partialorder %v2032, %v1160
        %vm2173 = vcmp.lt.f32.partialorder %v2032, %v1166
        %vm2174 = vcmp.lt.f32.partialorder %v2032, %v1172
        %vm2175 = vcmp.lt.f32.partialorder %v2032, %v1178
        %vm2176 = vcmp.lt.f32.partialorder %v2032, %v1184
        %vm2177 = vcmp.lt.f32.partialorder %v2032, %v1190
        %vm2178 = vcmp.lt.f32.partialorder %v2032, %v1196
        %vm2179 = vcmp.lt.f32.partialorder %v2032, %v1202
        %vm2180 = vcmp.lt.f32.partialorder %v2032, %v1208
        %vm2181 = vcmp.lt.f32.partialorder %v2032, %v1214
        %vm2182 = vcmp.lt.f32.partialorder %v2032, %v1220
        %vm2183 = vcmp.lt.f32.partialorder %v2032, %v1226
        %vm2184 = vcmp.lt.f32.partialorder %v2032, %v1232
        %vm2185 = vcmp.lt.f32.partialorder %v2033, %v1239
        %vm2186 = vcmp.lt.f32.partialorder %v2033, %v1245
        %vm2187 = vcmp.lt.f32.partialorder %v2033, %v1251
        %vm2188 = vcmp.lt.f32.partialorder %v2033, %v1257
        %vm2189 = vcmp.lt.f32.partialorder %v2033, %v1263
        %vm2190 = vcmp.lt.f32.partialorder %v2033, %v1269
        %vm2191 = vcmp.lt.f32.partialorder %v2033, %v1275
        %vm2192 = vcmp.lt.f32.partialorder %v2033, %v1281
        %vm2193 = vcmp.lt.f32.partialorder %v2033, %v1287
        %vm2194 = vcmp.lt.f32.partialorder %v2033, %v1293
        %vm2195 = vcmp.lt.f32.partialorder %v2033, %v1299
        %vm2196 = vcmp.lt.f32.partialorder %v2033, %v1305
        %vm2197 = vcmp.lt.f32.partialorder %v2033, %v1311
        %vm2198 = vcmp.lt.f32.partialorder %v2033, %v1317
        %vm2199 = vcmp.lt.f32.partialorder %v2033, %v1323
        %vm2200 = vcmp.lt.f32.partialorder %v2033, %v1329
        %vm2201 = vcmp.lt.f32.partialorder %v2034, %v1336
        %vm2202 = vcmp.lt.f32.partialorder %v2034, %v1342
        %vm2203 = vcmp.lt.f32.partialorder %v2034, %v1348
        %vm2204 = vcmp.lt.f32.partialorder %v2034, %v1354
        %vm2205 = vcmp.lt.f32.partialorder %v2034, %v1360
        %vm2206 = vcmp.lt.f32.partialorder %v2034, %v1366
        %vm2207 = vcmp.lt.f32.partialorder %v2034, %v1372
        %vm2208 = vcmp.lt.f32.partialorder %v2034, %v1378
        %vm2209 = vcmp.lt.f32.partialorder %v2034, %v1384
        %vm2210 = vcmp.lt.f32.partialorder %v2034, %v1390
        %vm2211 = vcmp.lt.f32.partialorder %v2034, %v1396
        %vm2212 = vcmp.lt.f32.partialorder %v2034, %v1402
        %vm2213 = vcmp.lt.f32.partialorder %v2034, %v1408
        %vm2214 = vcmp.lt.f32.partialorder %v2034, %v1414
        %vm2215 = vcmp.lt.f32.partialorder %v2034, %v1420
        %vm2216 = vcmp.lt.f32.partialorder %v2034, %v1426
        %vm2217 = vcmp.lt.f32.partialorder %v2035, %v1433
        %vm2218 = vcmp.lt.f32.partialorder %v2035, %v1439
        %vm2219 = vcmp.lt.f32.partialorder %v2035, %v1445
        %vm2220 = vcmp.lt.f32.partialorder %v2035, %v1451
        %vm2221 = vcmp.lt.f32.partialorder %v2035, %v1457
        %vm2222 = vcmp.lt.f32.partialorder %v2035, %v1463
        %vm2223 = vcmp.lt.f32.partialorder %v2035, %v1469
        %vm2224 = vcmp.lt.f32.partialorder %v2035, %v1475
        %vm2225 = vcmp.lt.f32.partialorder %v2035, %v1481
        %vm2226 = vcmp.lt.f32.partialorder %v2035, %v1487
        %vm2227 = vcmp.lt.f32.partialorder %v2035, %v1493
        %vm2228 = vcmp.lt.f32.partialorder %v2035, %v1499
        %vm2229 = vcmp.lt.f32.partialorder %v2035, %v1505
        %vm2230 = vcmp.lt.f32.partialorder %v2035, %v1511
        %vm2231 = vcmp.lt.f32.partialorder %v2035, %v1517
        %vm2232 = vcmp.lt.f32.partialorder %v2035, %v1523
        %vm2233 = vcmp.lt.f32.partialorder %v2036, %v1530
        %vm2234 = vcmp.lt.f32.partialorder %v2036, %v1536
        %vm2235 = vcmp.lt.f32.partialorder %v2036, %v1542
        %vm2236 = vcmp.lt.f32.partialorder %v2036, %v1548
        %vm2237 = vcmp.lt.f32.partialorder %v2036, %v1554
        %vm2238 = vcmp.lt.f32.partialorder %v2036, %v1560
        %vm2239 = vcmp.lt.f32.partialorder %v2036, %v1566
        %vm2240 = vcmp.lt.f32.partialorder %v2036, %v1572
        %vm2241 = vcmp.lt.f32.partialorder %v2036, %v1578
        %vm2242 = vcmp.lt.f32.partialorder %v2036, %v1584
        %vm2243 = vcmp.lt.f32.partialorder %v2036, %v1590
        %vm2244 = vcmp.lt.f32.partialorder %v2036, %v1596
        %vm2245 = vcmp.lt.f32.partialorder %v2036, %v1602
        %vm2246 = vcmp.lt.f32.partialorder %v2036, %v1608
        %vm2247 = vcmp.lt.f32.partialorder %v2036, %v1614
        %vm2248 = vcmp.lt.f32.partialorder %v2036, %v1620
        %vm2249 = vcmp.lt.f32.partialorder %v2037, %v1627
        %vm2250 = vcmp.lt.f32.partialorder %v2037, %v1633
        %vm2251 = vcmp.lt.f32.partialorder %v2037, %v1639
        %vm2252 = vcmp.lt.f32.partialorder %v2037, %v1645
        %vm2253 = vcmp.lt.f32.partialorder %v2037, %v1651
        %vm2254 = vcmp.lt.f32.partialorder %v2037, %v1657
        %vm2255 = vcmp.lt.f32.partialorder %v2037, %v1663
        %vm2256 = vcmp.lt.f32.partialorder %v2037, %v1669
        %vm2257 = vcmp.lt.f32.partialorder %v2037, %v1675
        %vm2258 = vcmp.lt.f32.partialorder %v2037, %v1681
        %vm2259 = vcmp.lt.f32.partialorder %v2037, %v1687
        %vm2260 = vcmp.lt.f32.partialorder %v2037, %v1693
        %vm2261 = vcmp.lt.f32.partialorder %v2037, %v1699
        %vm2262 = vcmp.lt.f32.partialorder %v2037, %v1705
        %vm2263 = vcmp.lt.f32.partialorder %v2037, %v1711
        %vm2264 = vcmp.lt.f32.partialorder %v2037, %v1717
        %vm2265 = vcmp.lt.f32.partialorder %v2038, %v1724
        %vm2266 = vcmp.lt.f32.partialorder %v2038, %v1730
        %vm2267 = vcmp.lt.f32.partialorder %v2038, %v1736
        %vm2268 = vcmp.lt.f32.partialorder %v2038, %v1742
        %vm2269 = vcmp.lt.f32.partialorder %v2038, %v1748
        %vm2270 = vcmp.lt.f32.partialorder %v2038, %v1754
        %vm2271 = vcmp.lt.f32.partialorder %v2038, %v1760
        %vm2272 = vcmp.lt.f32.partialorder %v2038, %v1766
        %vm2273 = vcmp.lt.f32.partialorder %v2038, %v1772
        %vm2274 = vcmp.lt.f32.partialorder %v2038, %v1778
        %vm2275 = vcmp.lt.f32.partialorder %v2038, %v1784
        %vm2276 = vcmp.lt.f32.partialorder %v2038, %v1790
        %vm2277 = vcmp.lt.f32.partialorder %v2038, %v1796
        %vm2278 = vcmp.lt.f32.partialorder %v2038, %v1802
        %vm2279 = vcmp.lt.f32.partialorder %v2038, %v1808
        %vm2280 = vcmp.lt.f32.partialorder %v2038, %v1814
        %vm2281 = vcmp.lt.f32.partialorder %v2039, %v1821
        %vm2282 = vcmp.lt.f32.partialorder %v2039, %v1827
        %vm2283 = vcmp.lt.f32.partialorder %v2039, %v1833
        %vm2284 = vcmp.lt.f32.partialorder %v2039, %v1839
        %vm2285 = vcmp.lt.f32.partialorder %v2039, %v1845
        %vm2286 = vcmp.lt.f32.partialorder %v2039, %v1851
        %vm2287 = vcmp.lt.f32.partialorder %v2039, %v1857
        %vm2288 = vcmp.lt.f32.partialorder %v2039, %v1863
        %vm2289 = vcmp.lt.f32.partialorder %v2039, %v1869
        %vm2290 = vcmp.lt.f32.partialorder %v2039, %v1875
        %vm2291 = vcmp.lt.f32.partialorder %v2039, %v1881
        %vm2292 = vcmp.lt.f32.partialorder %v2039, %v1887
        %vm2293 = vcmp.lt.f32.partialorder %v2039, %v1893
        %vm2294 = vcmp.lt.f32.partialorder %v2039, %v1899
        %vm2295 = vcmp.lt.f32.partialorder %v2039, %v1905
        %vm2296 = vcmp.lt.f32.partialorder %v2039, %v1911
        %vm2297 = vcmp.lt.f32.partialorder %v2040, %v1918
        %vm2298 = vcmp.lt.f32.partialorder %v2040, %v1924
        %vm2299 = vcmp.lt.f32.partialorder %v2040, %v1930
        %vm2300 = vcmp.lt.f32.partialorder %v2040, %v1936
        %vm2301 = vcmp.lt.f32.partialorder %v2040, %v1942
        %vm2302 = vcmp.lt.f32.partialorder %v2040, %v1948
        %vm2303 = vcmp.lt.f32.partialorder %v2040, %v1954
        %vm2304 = vcmp.lt.f32.partialorder %v2040, %v1960
        %vm2305 = vcmp.lt.f32.partialorder %v2040, %v1966
        %vm2306 = vcmp.lt.f32.partialorder %v2040, %v1972
        %vm2307 = vcmp.lt.f32.partialorder %v2040, %v1978
        %vm2308 = vcmp.lt.f32.partialorder %v2040, %v1984
        %vm2309 = vcmp.lt.f32.partialorder %v2040, %v1990
        %vm2310 = vcmp.lt.f32.partialorder %v2040, %v1996
        %vm2311 = vcmp.lt.f32.partialorder %v2040, %v2002
        %vm2312 = vcmp.lt.f32.partialorder %v2040, %v2008
        %vm2313 = vcmp.eq.f32.partialorder %v2025, %v463
        %vm2314 = vcmp.eq.f32.partialorder %v2025, %v469
        %vm2315 = vcmp.eq.f32.partialorder %v2025, %v475
        %vm2316 = vcmp.eq.f32.partialorder %v2025, %v481
        %vm2317 = vcmp.eq.f32.partialorder %v2025, %v487
        %vm2318 = vcmp.eq.f32.partialorder %v2025, %v493
        %vm2319 = vcmp.eq.f32.partialorder %v2025, %v499
        %vm2320 = vcmp.eq.f32.partialorder %v2025, %v505
        %vm2321 = vcmp.eq.f32.partialorder %v2025, %v511
        %vm2322 = vcmp.eq.f32.partialorder %v2025, %v517
        %vm2323 = vcmp.eq.f32.partialorder %v2025, %v523
        %vm2324 = vcmp.eq.f32.partialorder %v2025, %v529
        %vm2325 = vcmp.eq.f32.partialorder %v2025, %v535
        %vm2326 = vcmp.eq.f32.partialorder %v2025, %v541
        %vm2327 = vcmp.eq.f32.partialorder %v2025, %v547
        %vm2328 = vcmp.eq.f32.partialorder %v2025, %v553
        %vm2329 = vcmp.eq.f32.partialorder %v2026, %v560
        %vm2330 = vcmp.eq.f32.partialorder %v2026, %v566
        %vm2331 = vcmp.eq.f32.partialorder %v2026, %v572
        %vm2332 = vcmp.eq.f32.partialorder %v2026, %v578
        %vm2333 = vcmp.eq.f32.partialorder %v2026, %v584
        %vm2334 = vcmp.eq.f32.partialorder %v2026, %v590
        %vm2335 = vcmp.eq.f32.partialorder %v2026, %v596
        %vm2336 = vcmp.eq.f32.partialorder %v2026, %v602
        %vm2337 = vcmp.eq.f32.partialorder %v2026, %v608
        %vm2338 = vcmp.eq.f32.partialorder %v2026, %v614
        %vm2339 = vcmp.eq.f32.partialorder %v2026, %v620
        %vm2340 = vcmp.eq.f32.partialorder %v2026, %v626
        %vm2341 = vcmp.eq.f32.partialorder %v2026, %v632
        %vm2342 = vcmp.eq.f32.partialorder %v2026, %v638
        %vm2343 = vcmp.eq.f32.partialorder %v2026, %v644
        %vm2344 = vcmp.eq.f32.partialorder %v2026, %v650
        %vm2345 = vcmp.eq.f32.partialorder %v2027, %v657
        %vm2346 = vcmp.eq.f32.partialorder %v2027, %v663
        %vm2347 = vcmp.eq.f32.partialorder %v2027, %v669
        %vm2348 = vcmp.eq.f32.partialorder %v2027, %v675
        %vm2349 = vcmp.eq.f32.partialorder %v2027, %v681
        %vm2350 = vcmp.eq.f32.partialorder %v2027, %v687
        %vm2351 = vcmp.eq.f32.partialorder %v2027, %v693
        %vm2352 = vcmp.eq.f32.partialorder %v2027, %v699
        %vm2353 = vcmp.eq.f32.partialorder %v2027, %v705
        %vm2354 = vcmp.eq.f32.partialorder %v2027, %v711
        %vm2355 = vcmp.eq.f32.partialorder %v2027, %v717
        %vm2356 = vcmp.eq.f32.partialorder %v2027, %v723
        %vm2357 = vcmp.eq.f32.partialorder %v2027, %v729
        %vm2358 = vcmp.eq.f32.partialorder %v2027, %v735
        %vm2359 = vcmp.eq.f32.partialorder %v2027, %v741
        %vm2360 = vcmp.eq.f32.partialorder %v2027, %v747
        %vm2361 = vcmp.eq.f32.partialorder %v2028, %v754
        %vm2362 = vcmp.eq.f32.partialorder %v2028, %v760
        %vm2363 = vcmp.eq.f32.partialorder %v2028, %v766
        %vm2364 = vcmp.eq.f32.partialorder %v2028, %v772
        %vm2365 = vcmp.eq.f32.partialorder %v2028, %v778
        %vm2366 = vcmp.eq.f32.partialorder %v2028, %v784
        %vm2367 = vcmp.eq.f32.partialorder %v2028, %v790
        %vm2368 = vcmp.eq.f32.partialorder %v2028, %v796
        %vm2369 = vcmp.eq.f32.partialorder %v2028, %v802
        %vm2370 = vcmp.eq.f32.partialorder %v2028, %v808
        %vm2371 = vcmp.eq.f32.partialorder %v2028, %v814
        %vm2372 = vcmp.eq.f32.partialorder %v2028, %v820
        %vm2373 = vcmp.eq.f32.partialorder %v2028, %v826
        %vm2374 = vcmp.eq.f32.partialorder %v2028, %v832
        %vm2375 = vcmp.eq.f32.partialorder %v2028, %v838
        %vm2376 = vcmp.eq.f32.partialorder %v2028, %v844
        %vm2377 = vcmp.eq.f32.partialorder %v2029, %v851
        %vm2378 = vcmp.eq.f32.partialorder %v2029, %v857
        %vm2379 = vcmp.eq.f32.partialorder %v2029, %v863
        %vm2380 = vcmp.eq.f32.partialorder %v2029, %v869
        %vm2381 = vcmp.eq.f32.partialorder %v2029, %v875
        %vm2382 = vcmp.eq.f32.partialorder %v2029, %v881
        %vm2383 = vcmp.eq.f32.partialorder %v2029, %v887
        %vm2384 = vcmp.eq.f32.partialorder %v2029, %v893
        %vm2385 = vcmp.eq.f32.partialorder %v2029, %v899
        %vm2386 = vcmp.eq.f32.partialorder %v2029, %v905
        %vm2387 = vcmp.eq.f32.partialorder %v2029, %v911
        %vm2388 = vcmp.eq.f32.partialorder %v2029, %v917
        %vm2389 = vcmp.eq.f32.partialorder %v2029, %v923
        %vm2390 = vcmp.eq.f32.partialorder %v2029, %v929
        %vm2391 = vcmp.eq.f32.partialorder %v2029, %v935
        %vm2392 = vcmp.eq.f32.partialorder %v2029, %v941
        %vm2393 = vcmp.eq.f32.partialorder %v2030, %v948
        %vm2394 = vcmp.eq.f32.partialorder %v2030, %v954
        %vm2395 = vcmp.eq.f32.partialorder %v2030, %v960
        %vm2396 = vcmp.eq.f32.partialorder %v2030, %v966
        %vm2397 = vcmp.eq.f32.partialorder %v2030, %v972
        %vm2398 = vcmp.eq.f32.partialorder %v2030, %v978
        %vm2399 = vcmp.eq.f32.partialorder %v2030, %v984
        %vm2400 = vcmp.eq.f32.partialorder %v2030, %v990
        %vm2401 = vcmp.eq.f32.partialorder %v2030, %v996
        %vm2402 = vcmp.eq.f32.partialorder %v2030, %v1002
        %vm2403 = vcmp.eq.f32.partialorder %v2030, %v1008
        %vm2404 = vcmp.eq.f32.partialorder %v2030, %v1014
        %vm2405 = vcmp.eq.f32.partialorder %v2030, %v1020
        %vm2406 = vcmp.eq.f32.partialorder %v2030, %v1026
        %vm2407 = vcmp.eq.f32.partialorder %v2030, %v1032
        %vm2408 = vcmp.eq.f32.partialorder %v2030, %v1038
        %vm2409 = vcmp.eq.f32.partialorder %v2031, %v1045
        %vm2410 = vcmp.eq.f32.partialorder %v2031, %v1051
        %vm2411 = vcmp.eq.f32.partialorder %v2031, %v1057
        %vm2412 = vcmp.eq.f32.partialorder %v2031, %v1063
        %vm2413 = vcmp.eq.f32.partialorder %v2031, %v1069
        %vm2414 = vcmp.eq.f32.partialorder %v2031, %v1075
        %vm2415 = vcmp.eq.f32.partialorder %v2031, %v1081
        %vm2416 = vcmp.eq.f32.partialorder %v2031, %v1087
        %vm2417 = vcmp.eq.f32.partialorder %v2031, %v1093
        %vm2418 = vcmp.eq.f32.partialorder %v2031, %v1099
        %vm2419 = vcmp.eq.f32.partialorder %v2031, %v1105
        %vm2420 = vcmp.eq.f32.partialorder %v2031, %v1111
        %vm2421 = vcmp.eq.f32.partialorder %v2031, %v1117
        %vm2422 = vcmp.eq.f32.partialorder %v2031, %v1123
        %vm2423 = vcmp.eq.f32.partialorder %v2031, %v1129
        %vm2424 = vcmp.eq.f32.partialorder %v2031, %v1135
        %vm2425 = vcmp.eq.f32.partialorder %v2032, %v1142
        %vm2426 = vcmp.eq.f32.partialorder %v2032, %v1148
        %vm2427 = vcmp.eq.f32.partialorder %v2032, %v1154
        %vm2428 = vcmp.eq.f32.partialorder %v2032, %v1160
        %vm2429 = vcmp.eq.f32.partialorder %v2032, %v1166
        %vm2430 = vcmp.eq.f32.partialorder %v2032, %v1172
        %vm2431 = vcmp.eq.f32.partialorder %v2032, %v1178
        %vm2432 = vcmp.eq.f32.partialorder %v2032, %v1184
        %vm2433 = vcmp.eq.f32.partialorder %v2032, %v1190
        %vm2434 = vcmp.eq.f32.partialorder %v2032, %v1196
        %vm2435 = vcmp.eq.f32.partialorder %v2032, %v1202
        %vm2436 = vcmp.eq.f32.partialorder %v2032, %v1208
        %vm2437 = vcmp.eq.f32.partialorder %v2032, %v1214
        %vm2438 = vcmp.eq.f32.partialorder %v2032, %v1220
        %vm2439 = vcmp.eq.f32.partialorder %v2032, %v1226
        %vm2440 = vcmp.eq.f32.partialorder %v2032, %v1232
        %vm2441 = vcmp.eq.f32.partialorder %v2033, %v1239
        %vm2442 = vcmp.eq.f32.partialorder %v2033, %v1245
        %vm2443 = vcmp.eq.f32.partialorder %v2033, %v1251
        %vm2444 = vcmp.eq.f32.partialorder %v2033, %v1257
        %vm2445 = vcmp.eq.f32.partialorder %v2033, %v1263
        %vm2446 = vcmp.eq.f32.partialorder %v2033, %v1269
        %vm2447 = vcmp.eq.f32.partialorder %v2033, %v1275
        %vm2448 = vcmp.eq.f32.partialorder %v2033, %v1281
        %vm2449 = vcmp.eq.f32.partialorder %v2033, %v1287
        %vm2450 = vcmp.eq.f32.partialorder %v2033, %v1293
        %vm2451 = vcmp.eq.f32.partialorder %v2033, %v1299
        %vm2452 = vcmp.eq.f32.partialorder %v2033, %v1305
        %vm2453 = vcmp.eq.f32.partialorder %v2033, %v1311
        %vm2454 = vcmp.eq.f32.partialorder %v2033, %v1317
        %vm2455 = vcmp.eq.f32.partialorder %v2033, %v1323
        %vm2456 = vcmp.eq.f32.partialorder %v2033, %v1329
        %vm2457 = vcmp.eq.f32.partialorder %v2034, %v1336
        %vm2458 = vcmp.eq.f32.partialorder %v2034, %v1342
        %vm2459 = vcmp.eq.f32.partialorder %v2034, %v1348
        %vm2460 = vcmp.eq.f32.partialorder %v2034, %v1354
        %vm2461 = vcmp.eq.f32.partialorder %v2034, %v1360
        %vm2462 = vcmp.eq.f32.partialorder %v2034, %v1366
        %vm2463 = vcmp.eq.f32.partialorder %v2034, %v1372
        %vm2464 = vcmp.eq.f32.partialorder %v2034, %v1378
        %vm2465 = vcmp.eq.f32.partialorder %v2034, %v1384
        %vm2466 = vcmp.eq.f32.partialorder %v2034, %v1390
        %vm2467 = vcmp.eq.f32.partialorder %v2034, %v1396
        %vm2468 = vcmp.eq.f32.partialorder %v2034, %v1402
        %vm2469 = vcmp.eq.f32.partialorder %v2034, %v1408
        %vm2470 = vcmp.eq.f32.partialorder %v2034, %v1414
        %vm2471 = vcmp.eq.f32.partialorder %v2034, %v1420
        %vm2472 = vcmp.eq.f32.partialorder %v2034, %v1426
        %vm2473 = vcmp.eq.f32.partialorder %v2035, %v1433
        %vm2474 = vcmp.eq.f32.partialorder %v2035, %v1439
        %vm2475 = vcmp.eq.f32.partialorder %v2035, %v1445
        %vm2476 = vcmp.eq.f32.partialorder %v2035, %v1451
        %vm2477 = vcmp.eq.f32.partialorder %v2035, %v1457
        %vm2478 = vcmp.eq.f32.partialorder %v2035, %v1463
        %vm2479 = vcmp.eq.f32.partialorder %v2035, %v1469
        %vm2480 = vcmp.eq.f32.partialorder %v2035, %v1475
        %vm2481 = vcmp.eq.f32.partialorder %v2035, %v1481
        %vm2482 = vcmp.eq.f32.partialorder %v2035, %v1487
        %vm2483 = vcmp.eq.f32.partialorder %v2035, %v1493
        %vm2484 = vcmp.eq.f32.partialorder %v2035, %v1499
        %vm2485 = vcmp.eq.f32.partialorder %v2035, %v1505
        %vm2486 = vcmp.eq.f32.partialorder %v2035, %v1511
        %vm2487 = vcmp.eq.f32.partialorder %v2035, %v1517
        %vm2488 = vcmp.eq.f32.partialorder %v2035, %v1523
        %vm2489 = vcmp.eq.f32.partialorder %v2036, %v1530
        %vm2490 = vcmp.eq.f32.partialorder %v2036, %v1536
        %vm2491 = vcmp.eq.f32.partialorder %v2036, %v1542
        %vm2492 = vcmp.eq.f32.partialorder %v2036, %v1548
        %vm2493 = vcmp.eq.f32.partialorder %v2036, %v1554
        %vm2494 = vcmp.eq.f32.partialorder %v2036, %v1560
        %vm2495 = vcmp.eq.f32.partialorder %v2036, %v1566
        %vm2496 = vcmp.eq.f32.partialorder %v2036, %v1572
        %vm2497 = vcmp.eq.f32.partialorder %v2036, %v1578
        %vm2498 = vcmp.eq.f32.partialorder %v2036, %v1584
        %vm2499 = vcmp.eq.f32.partialorder %v2036, %v1590
        %vm2500 = vcmp.eq.f32.partialorder %v2036, %v1596
        %vm2501 = vcmp.eq.f32.partialorder %v2036, %v1602
        %vm2502 = vcmp.eq.f32.partialorder %v2036, %v1608
        %vm2503 = vcmp.eq.f32.partialorder %v2036, %v1614
        %vm2504 = vcmp.eq.f32.partialorder %v2036, %v1620
        %vm2505 = vcmp.eq.f32.partialorder %v2037, %v1627
        %vm2506 = vcmp.eq.f32.partialorder %v2037, %v1633
        %vm2507 = vcmp.eq.f32.partialorder %v2037, %v1639
        %vm2508 = vcmp.eq.f32.partialorder %v2037, %v1645
        %vm2509 = vcmp.eq.f32.partialorder %v2037, %v1651
        %vm2510 = vcmp.eq.f32.partialorder %v2037, %v1657
        %vm2511 = vcmp.eq.f32.partialorder %v2037, %v1663
        %vm2512 = vcmp.eq.f32.partialorder %v2037, %v1669
        %vm2513 = vcmp.eq.f32.partialorder %v2037, %v1675
        %vm2514 = vcmp.eq.f32.partialorder %v2037, %v1681
        %vm2515 = vcmp.eq.f32.partialorder %v2037, %v1687
        %vm2516 = vcmp.eq.f32.partialorder %v2037, %v1693
        %vm2517 = vcmp.eq.f32.partialorder %v2037, %v1699
        %vm2518 = vcmp.eq.f32.partialorder %v2037, %v1705
        %vm2519 = vcmp.eq.f32.partialorder %v2037, %v1711
        %vm2520 = vcmp.eq.f32.partialorder %v2037, %v1717
        %vm2521 = vcmp.eq.f32.partialorder %v2038, %v1724
        %vm2522 = vcmp.eq.f32.partialorder %v2038, %v1730
        %vm2523 = vcmp.eq.f32.partialorder %v2038, %v1736
        %vm2524 = vcmp.eq.f32.partialorder %v2038, %v1742
        %vm2525 = vcmp.eq.f32.partialorder %v2038, %v1748
        %vm2526 = vcmp.eq.f32.partialorder %v2038, %v1754
        %vm2527 = vcmp.eq.f32.partialorder %v2038, %v1760
        %vm2528 = vcmp.eq.f32.partialorder %v2038, %v1766
        %vm2529 = vcmp.eq.f32.partialorder %v2038, %v1772
        %vm2530 = vcmp.eq.f32.partialorder %v2038, %v1778
        %vm2531 = vcmp.eq.f32.partialorder %v2038, %v1784
        %vm2532 = vcmp.eq.f32.partialorder %v2038, %v1790
        %vm2533 = vcmp.eq.f32.partialorder %v2038, %v1796
        %vm2534 = vcmp.eq.f32.partialorder %v2038, %v1802
        %vm2535 = vcmp.eq.f32.partialorder %v2038, %v1808
        %vm2536 = vcmp.eq.f32.partialorder %v2038, %v1814
        %vm2537 = vcmp.eq.f32.partialorder %v2039, %v1821
        %vm2538 = vcmp.eq.f32.partialorder %v2039, %v1827
        %vm2539 = vcmp.eq.f32.partialorder %v2039, %v1833
        %vm2540 = vcmp.eq.f32.partialorder %v2039, %v1839
        %vm2541 = vcmp.eq.f32.partialorder %v2039, %v1845
        %vm2542 = vcmp.eq.f32.partialorder %v2039, %v1851
        %vm2543 = vcmp.eq.f32.partialorder %v2039, %v1857
        %vm2544 = vcmp.eq.f32.partialorder %v2039, %v1863
        %vm2545 = vcmp.eq.f32.partialorder %v2039, %v1869
        %vm2546 = vcmp.eq.f32.partialorder %v2039, %v1875
        %vm2547 = vcmp.eq.f32.partialorder %v2039, %v1881
        %vm2548 = vcmp.eq.f32.partialorder %v2039, %v1887
        %vm2549 = vcmp.eq.f32.partialorder %v2039, %v1893
        %vm2550 = vcmp.eq.f32.partialorder %v2039, %v1899
        %vm2551 = vcmp.eq.f32.partialorder %v2039, %v1905
        %vm2552 = vcmp.eq.f32.partialorder %v2039, %v1911
        %vm2553 = vcmp.eq.f32.partialorder %v2040, %v1918
        %vm2554 = vcmp.eq.f32.partialorder %v2040, %v1924
        %vm2555 = vcmp.eq.f32.partialorder %v2040, %v1930
        %vm2556 = vcmp.eq.f32.partialorder %v2040, %v1936
        %vm2557 = vcmp.eq.f32.partialorder %v2040, %v1942
        %vm2558 = vcmp.eq.f32.partialorder %v2040, %v1948
        %vm2559 = vcmp.eq.f32.partialorder %v2040, %v1954
        %vm2560 = vcmp.eq.f32.partialorder %v2040, %v1960
        %vm2561 = vcmp.eq.f32.partialorder %v2040, %v1966
        %vm2562 = vcmp.eq.f32.partialorder %v2040, %v1972
        %vm2563 = vcmp.eq.f32.partialorder %v2040, %v1978
        %vm2564 = vcmp.eq.f32.partialorder %v2040, %v1984
        %vm2565 = vcmp.eq.f32.partialorder %v2040, %v1990
        %vm2566 = vcmp.eq.f32.partialorder %v2040, %v1996
        %vm2567 = vcmp.eq.f32.partialorder %v2040, %v2002
        %vm2568 = vcmp.eq.f32.partialorder %v2040, %v2008
        %v2569 = vsel %vm440, 1, 0
        %v2570 = vsel %vm441, 1, 0
        %v2571 = vsel %vm442, 1, 0
        %v2572 = vsel %vm443, 1, 0
        %v2573 = vsel %vm444, 1, 0
        %v2574 = vsel %vm445, 1, 0
        %v2575 = vsel %vm446, 1, 0
        %v2576 = vsel %vm447, 1, 0
        %v2577 = vsel %vm448, 1, 0
        %v2578 = vsel %vm449, 1, 0
        %v2579 = vsel %vm450, 1, 0
        %v2580 = vsel %vm451, 1, 0
        %v2581 = vsel %vm452, 1, 0
        %v2582 = vsel %vm453, 1, 0
        %v2583 = vsel %vm454, 1, 0
        %v2584 = vsel %vm455, 1, 0
        %vm2585 = vcmp.eq.s32.totalorder %v2569, 1
        %vm2586 = vcmp.eq.s32.totalorder %v2570, 1
        %vm2587 = vcmp.eq.s32.totalorder %v2571, 1
        %vm2588 = vcmp.eq.s32.totalorder %v2572, 1
        %vm2589 = vcmp.eq.s32.totalorder %v2573, 1
        %vm2590 = vcmp.eq.s32.totalorder %v2574, 1
        %vm2591 = vcmp.eq.s32.totalorder %v2575, 1
        %vm2592 = vcmp.eq.s32.totalorder %v2576, 1
        %vm2593 = vcmp.eq.s32.totalorder %v2577, 1
        %vm2594 = vcmp.eq.s32.totalorder %v2578, 1
        %vm2595 = vcmp.eq.s32.totalorder %v2579, 1
        %vm2596 = vcmp.eq.s32.totalorder %v2580, 1
        %vm2597 = vcmp.eq.s32.totalorder %v2581, 1
        %vm2598 = vcmp.eq.s32.totalorder %v2582, 1
        %vm2599 = vcmp.eq.s32.totalorder %v2583, 1
        %vm2600 = vcmp.eq.s32.totalorder %v2584, 1
        %vm2601 = vmand %vm2313, %vm2585
        %vm2602 = vmand %vm2314, %vm2586
        %vm2603 = vmand %vm2315, %vm2587
        %vm2604 = vmand %vm2316, %vm2588
        %vm2605 = vmand %vm2317, %vm2589
        %vm2606 = vmand %vm2318, %vm2590
        %vm2607 = vmand %vm2319, %vm2591
        %vm2608 = vmand %vm2320, %vm2592
        %vm2609 = vmand %vm2321, %vm2593
        %vm2610 = vmand %vm2322, %vm2594
        %vm2611 = vmand %vm2323, %vm2595
        %vm2612 = vmand %vm2324, %vm2596
        %vm2613 = vmand %vm2325, %vm2597
        %vm2614 = vmand %vm2326, %vm2598
        %vm2615 = vmand %vm2327, %vm2599
        %vm2616 = vmand %vm2328, %vm2600
        %vm2617 = vmand %vm2329, %vm2585
        %vm2618 = vmand %vm2330, %vm2586
        %vm2619 = vmand %vm2331, %vm2587
        %vm2620 = vmand %vm2332, %vm2588
        %vm2621 = vmand %vm2333, %vm2589
        %vm2622 = vmand %vm2334, %vm2590
        %vm2623 = vmand %vm2335, %vm2591
        %vm2624 = vmand %vm2336, %vm2592
        %vm2625 = vmand %vm2337, %vm2593
        %vm2626 = vmand %vm2338, %vm2594
        %vm2627 = vmand %vm2339, %vm2595
        %vm2628 = vmand %vm2340, %vm2596
        %vm2629 = vmand %vm2341, %vm2597
        %vm2630 = vmand %vm2342, %vm2598
        %vm2631 = vmand %vm2343, %vm2599
        %vm2632 = vmand %vm2344, %vm2600
        %vm2633 = vmand %vm2345, %vm2585
        %vm2634 = vmand %vm2346, %vm2586
        %vm2635 = vmand %vm2347, %vm2587
        %vm2636 = vmand %vm2348, %vm2588
        %vm2637 = vmand %vm2349, %vm2589
        %vm2638 = vmand %vm2350, %vm2590
        %vm2639 = vmand %vm2351, %vm2591
        %vm2640 = vmand %vm2352, %vm2592
        %vm2641 = vmand %vm2353, %vm2593
        %vm2642 = vmand %vm2354, %vm2594
        %vm2643 = vmand %vm2355, %vm2595
        %vm2644 = vmand %vm2356, %vm2596
        %vm2645 = vmand %vm2357, %vm2597
        %vm2646 = vmand %vm2358, %vm2598
        %vm2647 = vmand %vm2359, %vm2599
        %vm2648 = vmand %vm2360, %vm2600
        %vm2649 = vmand %vm2361, %vm2585
        %vm2650 = vmand %vm2362, %vm2586
        %vm2651 = vmand %vm2363, %vm2587
        %vm2652 = vmand %vm2364, %vm2588
        %vm2653 = vmand %vm2365, %vm2589
        %vm2654 = vmand %vm2366, %vm2590
        %vm2655 = vmand %vm2367, %vm2591
        %vm2656 = vmand %vm2368, %vm2592
        %vm2657 = vmand %vm2369, %vm2593
        %vm2658 = vmand %vm2370, %vm2594
        %vm2659 = vmand %vm2371, %vm2595
        %vm2660 = vmand %vm2372, %vm2596
        %vm2661 = vmand %vm2373, %vm2597
        %vm2662 = vmand %vm2374, %vm2598
        %vm2663 = vmand %vm2375, %vm2599
        %vm2664 = vmand %vm2376, %vm2600
        %vm2665 = vmand %vm2377, %vm2585
        %vm2666 = vmand %vm2378, %vm2586
        %vm2667 = vmand %vm2379, %vm2587
        %vm2668 = vmand %vm2380, %vm2588
        %vm2669 = vmand %vm2381, %vm2589
        %vm2670 = vmand %vm2382, %vm2590
        %vm2671 = vmand %vm2383, %vm2591
        %vm2672 = vmand %vm2384, %vm2592
        %vm2673 = vmand %vm2385, %vm2593
        %vm2674 = vmand %vm2386, %vm2594
        %vm2675 = vmand %vm2387, %vm2595
        %vm2676 = vmand %vm2388, %vm2596
        %vm2677 = vmand %vm2389, %vm2597
        %vm2678 = vmand %vm2390, %vm2598
        %vm2679 = vmand %vm2391, %vm2599
        %vm2680 = vmand %vm2392, %vm2600
        %vm2681 = vmand %vm2393, %vm2585
        %vm2682 = vmand %vm2394, %vm2586
        %vm2683 = vmand %vm2395, %vm2587
        %vm2684 = vmand %vm2396, %vm2588
        %vm2685 = vmand %vm2397, %vm2589
        %vm2686 = vmand %vm2398, %vm2590
        %vm2687 = vmand %vm2399, %vm2591
        %vm2688 = vmand %vm2400, %vm2592
        %vm2689 = vmand %vm2401, %vm2593
        %vm2690 = vmand %vm2402, %vm2594
        %vm2691 = vmand %vm2403, %vm2595
        %vm2692 = vmand %vm2404, %vm2596
        %vm2693 = vmand %vm2405, %vm2597
        %vm2694 = vmand %vm2406, %vm2598
        %vm2695 = vmand %vm2407, %vm2599
        %vm2696 = vmand %vm2408, %vm2600
        %vm2697 = vmand %vm2409, %vm2585
        %vm2698 = vmand %vm2410, %vm2586
        %vm2699 = vmand %vm2411, %vm2587
        %vm2700 = vmand %vm2412, %vm2588
        %vm2701 = vmand %vm2413, %vm2589
        %vm2702 = vmand %vm2414, %vm2590
        %vm2703 = vmand %vm2415, %vm2591
        %vm2704 = vmand %vm2416, %vm2592
        %vm2705 = vmand %vm2417, %vm2593
        %vm2706 = vmand %vm2418, %vm2594
        %vm2707 = vmand %vm2419, %vm2595
        %vm2708 = vmand %vm2420, %vm2596
        %vm2709 = vmand %vm2421, %vm2597
        %vm2710 = vmand %vm2422, %vm2598
        %vm2711 = vmand %vm2423, %vm2599
        %vm2712 = vmand %vm2424, %vm2600
        %vm2713 = vmand %vm2425, %vm2585
        %vm2714 = vmand %vm2426, %vm2586
        %vm2715 = vmand %vm2427, %vm2587
        %vm2716 = vmand %vm2428, %vm2588
        %vm2717 = vmand %vm2429, %vm2589
        %vm2718 = vmand %vm2430, %vm2590
        %vm2719 = vmand %vm2431, %vm2591
        %vm2720 = vmand %vm2432, %vm2592
        %vm2721 = vmand %vm2433, %vm2593
        %vm2722 = vmand %vm2434, %vm2594
        %vm2723 = vmand %vm2435, %vm2595
        %vm2724 = vmand %vm2436, %vm2596
        %vm2725 = vmand %vm2437, %vm2597
        %vm2726 = vmand %vm2438, %vm2598
        %vm2727 = vmand %vm2439, %vm2599
        %vm2728 = vmand %vm2440, %vm2600
        %vm2729 = vmand %vm2441, %vm2585
        %vm2730 = vmand %vm2442, %vm2586
        %vm2731 = vmand %vm2443, %vm2587
        %vm2732 = vmand %vm2444, %vm2588
        %vm2733 = vmand %vm2445, %vm2589
        %vm2734 = vmand %vm2446, %vm2590
        %vm2735 = vmand %vm2447, %vm2591
        %vm2736 = vmand %vm2448, %vm2592
        %vm2737 = vmand %vm2449, %vm2593
        %vm2738 = vmand %vm2450, %vm2594
        %vm2739 = vmand %vm2451, %vm2595
        %vm2740 = vmand %vm2452, %vm2596
        %vm2741 = vmand %vm2453, %vm2597
        %vm2742 = vmand %vm2454, %vm2598
        %vm2743 = vmand %vm2455, %vm2599
        %vm2744 = vmand %vm2456, %vm2600
        %vm2745 = vmand %vm2457, %vm2585
        %vm2746 = vmand %vm2458, %vm2586
        %vm2747 = vmand %vm2459, %vm2587
        %vm2748 = vmand %vm2460, %vm2588
        %vm2749 = vmand %vm2461, %vm2589
        %vm2750 = vmand %vm2462, %vm2590
        %vm2751 = vmand %vm2463, %vm2591
        %vm2752 = vmand %vm2464, %vm2592
        %vm2753 = vmand %vm2465, %vm2593
        %vm2754 = vmand %vm2466, %vm2594
        %vm2755 = vmand %vm2467, %vm2595
        %vm2756 = vmand %vm2468, %vm2596
        %vm2757 = vmand %vm2469, %vm2597
        %vm2758 = vmand %vm2470, %vm2598
        %vm2759 = vmand %vm2471, %vm2599
        %vm2760 = vmand %vm2472, %vm2600
        %vm2761 = vmand %vm2473, %vm2585
        %vm2762 = vmand %vm2474, %vm2586
        %vm2763 = vmand %vm2475, %vm2587
        %vm2764 = vmand %vm2476, %vm2588
        %vm2765 = vmand %vm2477, %vm2589
        %vm2766 = vmand %vm2478, %vm2590
        %vm2767 = vmand %vm2479, %vm2591
        %vm2768 = vmand %vm2480, %vm2592
        %vm2769 = vmand %vm2481, %vm2593
        %vm2770 = vmand %vm2482, %vm2594
        %vm2771 = vmand %vm2483, %vm2595
        %vm2772 = vmand %vm2484, %vm2596
        %vm2773 = vmand %vm2485, %vm2597
        %vm2774 = vmand %vm2486, %vm2598
        %vm2775 = vmand %vm2487, %vm2599
        %vm2776 = vmand %vm2488, %vm2600
        %vm2777 = vmand %vm2489, %vm2585
        %vm2778 = vmand %vm2490, %vm2586
        %vm2779 = vmand %vm2491, %vm2587
        %vm2780 = vmand %vm2492, %vm2588
        %vm2781 = vmand %vm2493, %vm2589
        %vm2782 = vmand %vm2494, %vm2590
        %vm2783 = vmand %vm2495, %vm2591
        %vm2784 = vmand %vm2496, %vm2592
        %vm2785 = vmand %vm2497, %vm2593
        %vm2786 = vmand %vm2498, %vm2594
        %vm2787 = vmand %vm2499, %vm2595
        %vm2788 = vmand %vm2500, %vm2596
        %vm2789 = vmand %vm2501, %vm2597
        %vm2790 = vmand %vm2502, %vm2598
        %vm2791 = vmand %vm2503, %vm2599
        %vm2792 = vmand %vm2504, %vm2600
        %vm2793 = vmand %vm2505, %vm2585
        %vm2794 = vmand %vm2506, %vm2586
        %vm2795 = vmand %vm2507, %vm2587
        %vm2796 = vmand %vm2508, %vm2588
        %vm2797 = vmand %vm2509, %vm2589
        %vm2798 = vmand %vm2510, %vm2590
        %vm2799 = vmand %vm2511, %vm2591
        %vm2800 = vmand %vm2512, %vm2592
        %vm2801 = vmand %vm2513, %vm2593
        %vm2802 = vmand %vm2514, %vm2594
        %vm2803 = vmand %vm2515, %vm2595
        %vm2804 = vmand %vm2516, %vm2596
        %vm2805 = vmand %vm2517, %vm2597
        %vm2806 = vmand %vm2518, %vm2598
        %vm2807 = vmand %vm2519, %vm2599
        %vm2808 = vmand %vm2520, %vm2600
        %vm2809 = vmand %vm2521, %vm2585
        %vm2810 = vmand %vm2522, %vm2586
        %vm2811 = vmand %vm2523, %vm2587
        %vm2812 = vmand %vm2524, %vm2588
        %vm2813 = vmand %vm2525, %vm2589
        %vm2814 = vmand %vm2526, %vm2590
        %vm2815 = vmand %vm2527, %vm2591
        %vm2816 = vmand %vm2528, %vm2592
        %vm2817 = vmand %vm2529, %vm2593
        %vm2818 = vmand %vm2530, %vm2594
        %vm2819 = vmand %vm2531, %vm2595
        %vm2820 = vmand %vm2532, %vm2596
        %vm2821 = vmand %vm2533, %vm2597
        %vm2822 = vmand %vm2534, %vm2598
        %vm2823 = vmand %vm2535, %vm2599
        %vm2824 = vmand %vm2536, %vm2600
        %vm2825 = vmand %vm2537, %vm2585
        %vm2826 = vmand %vm2538, %vm2586
        %vm2827 = vmand %vm2539, %vm2587
        %vm2828 = vmand %vm2540, %vm2588
        %vm2829 = vmand %vm2541, %vm2589
        %vm2830 = vmand %vm2542, %vm2590
        %vm2831 = vmand %vm2543, %vm2591
        %vm2832 = vmand %vm2544, %vm2592
        %vm2833 = vmand %vm2545, %vm2593
        %vm2834 = vmand %vm2546, %vm2594
        %vm2835 = vmand %vm2547, %vm2595
        %vm2836 = vmand %vm2548, %vm2596
        %vm2837 = vmand %vm2549, %vm2597
        %vm2838 = vmand %vm2550, %vm2598
        %vm2839 = vmand %vm2551, %vm2599
        %vm2840 = vmand %vm2552, %vm2600
        %vm2841 = vmand %vm2553, %vm2585
        %vm2842 = vmand %vm2554, %vm2586
        %vm2843 = vmand %vm2555, %vm2587
        %vm2844 = vmand %vm2556, %vm2588
        %vm2845 = vmand %vm2557, %vm2589
        %vm2846 = vmand %vm2558, %vm2590
        %vm2847 = vmand %vm2559, %vm2591
        %vm2848 = vmand %vm2560, %vm2592
        %vm2849 = vmand %vm2561, %vm2593
        %vm2850 = vmand %vm2562, %vm2594
        %vm2851 = vmand %vm2563, %vm2595
        %vm2852 = vmand %vm2564, %vm2596
        %vm2853 = vmand %vm2565, %vm2597
        %vm2854 = vmand %vm2566, %vm2598
        %vm2855 = vmand %vm2567, %vm2599
        %vm2856 = vmand %vm2568, %vm2600
        %vm2857 = vmor %vm2057, %vm2601
        %vm2858 = vmor %vm2058, %vm2602
        %vm2859 = vmor %vm2059, %vm2603
        %vm2860 = vmor %vm2060, %vm2604
        %vm2861 = vmor %vm2061, %vm2605
        %vm2862 = vmor %vm2062, %vm2606
        %vm2863 = vmor %vm2063, %vm2607
        %vm2864 = vmor %vm2064, %vm2608
        %vm2865 = vmor %vm2065, %vm2609
        %vm2866 = vmor %vm2066, %vm2610
        %vm2867 = vmor %vm2067, %vm2611
        %vm2868 = vmor %vm2068, %vm2612
        %vm2869 = vmor %vm2069, %vm2613
        %vm2870 = vmor %vm2070, %vm2614
        %vm2871 = vmor %vm2071, %vm2615
        %vm2872 = vmor %vm2072, %vm2616
        %vm2873 = vmor %vm2073, %vm2617
        %vm2874 = vmor %vm2074, %vm2618
        %vm2875 = vmor %vm2075, %vm2619
        %vm2876 = vmor %vm2076, %vm2620
        %vm2877 = vmor %vm2077, %vm2621
        %vm2878 = vmor %vm2078, %vm2622
        %vm2879 = vmor %vm2079, %vm2623
        %vm2880 = vmor %vm2080, %vm2624
        %vm2881 = vmor %vm2081, %vm2625
        %vm2882 = vmor %vm2082, %vm2626
        %vm2883 = vmor %vm2083, %vm2627
        %vm2884 = vmor %vm2084, %vm2628
        %vm2885 = vmor %vm2085, %vm2629
        %vm2886 = vmor %vm2086, %vm2630
        %vm2887 = vmor %vm2087, %vm2631
        %vm2888 = vmor %vm2088, %vm2632
        %vm2889 = vmor %vm2089, %vm2633
        %vm2890 = vmor %vm2090, %vm2634
        %vm2891 = vmor %vm2091, %vm2635
        %vm2892 = vmor %vm2092, %vm2636
        %vm2893 = vmor %vm2093, %vm2637
        %vm2894 = vmor %vm2094, %vm2638
        %vm2895 = vmor %vm2095, %vm2639
        %vm2896 = vmor %vm2096, %vm2640
        %vm2897 = vmor %vm2097, %vm2641
        %vm2898 = vmor %vm2098, %vm2642
        %vm2899 = vmor %vm2099, %vm2643
        %vm2900 = vmor %vm2100, %vm2644
        %vm2901 = vmor %vm2101, %vm2645
        %vm2902 = vmor %vm2102, %vm2646
        %vm2903 = vmor %vm2103, %vm2647
        %vm2904 = vmor %vm2104, %vm2648
        %vm2905 = vmor %vm2105, %vm2649
        %vm2906 = vmor %vm2106, %vm2650
        %vm2907 = vmor %vm2107, %vm2651
        %vm2908 = vmor %vm2108, %vm2652
        %vm2909 = vmor %vm2109, %vm2653
        %vm2910 = vmor %vm2110, %vm2654
        %vm2911 = vmor %vm2111, %vm2655
        %vm2912 = vmor %vm2112, %vm2656
        %vm2913 = vmor %vm2113, %vm2657
        %vm2914 = vmor %vm2114, %vm2658
        %vm2915 = vmor %vm2115, %vm2659
        %vm2916 = vmor %vm2116, %vm2660
        %vm2917 = vmor %vm2117, %vm2661
        %vm2918 = vmor %vm2118, %vm2662
        %vm2919 = vmor %vm2119, %vm2663
        %vm2920 = vmor %vm2120, %vm2664
        %vm2921 = vmor %vm2121, %vm2665
        %vm2922 = vmor %vm2122, %vm2666
        %vm2923 = vmor %vm2123, %vm2667
        %vm2924 = vmor %vm2124, %vm2668
        %vm2925 = vmor %vm2125, %vm2669
        %vm2926 = vmor %vm2126, %vm2670
        %vm2927 = vmor %vm2127, %vm2671
        %vm2928 = vmor %vm2128, %vm2672
        %vm2929 = vmor %vm2129, %vm2673
        %vm2930 = vmor %vm2130, %vm2674
        %vm2931 = vmor %vm2131, %vm2675
        %vm2932 = vmor %vm2132, %vm2676
        %vm2933 = vmor %vm2133, %vm2677
        %vm2934 = vmor %vm2134, %vm2678
        %vm2935 = vmor %vm2135, %vm2679
        %vm2936 = vmor %vm2136, %vm2680
        %vm2937 = vmor %vm2137, %vm2681
        %vm2938 = vmor %vm2138, %vm2682
        %vm2939 = vmor %vm2139, %vm2683
        %vm2940 = vmor %vm2140, %vm2684
        %vm2941 = vmor %vm2141, %vm2685
        %vm2942 = vmor %vm2142, %vm2686
        %vm2943 = vmor %vm2143, %vm2687
        %vm2944 = vmor %vm2144, %vm2688
        %vm2945 = vmor %vm2145, %vm2689
        %vm2946 = vmor %vm2146, %vm2690
        %vm2947 = vmor %vm2147, %vm2691
        %vm2948 = vmor %vm2148, %vm2692
        %vm2949 = vmor %vm2149, %vm2693
        %vm2950 = vmor %vm2150, %vm2694
        %vm2951 = vmor %vm2151, %vm2695
        %vm2952 = vmor %vm2152, %vm2696
        %vm2953 = vmor %vm2153, %vm2697
        %vm2954 = vmor %vm2154, %vm2698
        %vm2955 = vmor %vm2155, %vm2699
        %vm2956 = vmor %vm2156, %vm2700
        %vm2957 = vmor %vm2157, %vm2701
        %vm2958 = vmor %vm2158, %vm2702
        %vm2959 = vmor %vm2159, %vm2703
        %vm2960 = vmor %vm2160, %vm2704
        %vm2961 = vmor %vm2161, %vm2705
        %vm2962 = vmor %vm2162, %vm2706
        %vm2963 = vmor %vm2163, %vm2707
        %vm2964 = vmor %vm2164, %vm2708
        %vm2965 = vmor %vm2165, %vm2709
        %vm2966 = vmor %vm2166, %vm2710
        %vm2967 = vmor %vm2167, %vm2711
        %vm2968 = vmor %vm2168, %vm2712
        %vm2969 = vmor %vm2169, %vm2713
        %vm2970 = vmor %vm2170, %vm2714
        %vm2971 = vmor %vm2171, %vm2715
        %vm2972 = vmor %vm2172, %vm2716
        %vm2973 = vmor %vm2173, %vm2717
        %vm2974 = vmor %vm2174, %vm2718
        %vm2975 = vmor %vm2175, %vm2719
        %vm2976 = vmor %vm2176, %vm2720
        %vm2977 = vmor %vm2177, %vm2721
        %vm2978 = vmor %vm2178, %vm2722
        %vm2979 = vmor %vm2179, %vm2723
        %vm2980 = vmor %vm2180, %vm2724
        %vm2981 = vmor %vm2181, %vm2725
        %vm2982 = vmor %vm2182, %vm2726
        %vm2983 = vmor %vm2183, %vm2727
        %vm2984 = vmor %vm2184, %vm2728
        %vm2985 = vmor %vm2185, %vm2729
        %vm2986 = vmor %vm2186, %vm2730
        %vm2987 = vmor %vm2187, %vm2731
        %vm2988 = vmor %vm2188, %vm2732
        %vm2989 = vmor %vm2189, %vm2733
        %vm2990 = vmor %vm2190, %vm2734
        %vm2991 = vmor %vm2191, %vm2735
        %vm2992 = vmor %vm2192, %vm2736
        %vm2993 = vmor %vm2193, %vm2737
        %vm2994 = vmor %vm2194, %vm2738
        %vm2995 = vmor %vm2195, %vm2739
        %vm2996 = vmor %vm2196, %vm2740
        %vm2997 = vmor %vm2197, %vm2741
        %vm2998 = vmor %vm2198, %vm2742
        %vm2999 = vmor %vm2199, %vm2743
        %vm3000 = vmor %vm2200, %vm2744
        %vm3001 = vmor %vm2201, %vm2745
        %vm3002 = vmor %vm2202, %vm2746
        %vm3003 = vmor %vm2203, %vm2747
        %vm3004 = vmor %vm2204, %vm2748
        %vm3005 = vmor %vm2205, %vm2749
        %vm3006 = vmor %vm2206, %vm2750
        %vm3007 = vmor %vm2207, %vm2751
        %vm3008 = vmor %vm2208, %vm2752
        %vm3009 = vmor %vm2209, %vm2753
        %vm3010 = vmor %vm2210, %vm2754
        %vm3011 = vmor %vm2211, %vm2755
        %vm3012 = vmor %vm2212, %vm2756
        %vm3013 = vmor %vm2213, %vm2757
        %vm3014 = vmor %vm2214, %vm2758
        %vm3015 = vmor %vm2215, %vm2759
        %vm3016 = vmor %vm2216, %vm2760
        %vm3017 = vmor %vm2217, %vm2761
        %vm3018 = vmor %vm2218, %vm2762
        %vm3019 = vmor %vm2219, %vm2763
        %vm3020 = vmor %vm2220, %vm2764
        %vm3021 = vmor %vm2221, %vm2765
        %vm3022 = vmor %vm2222, %vm2766
        %vm3023 = vmor %vm2223, %vm2767
        %vm3024 = vmor %vm2224, %vm2768
        %vm3025 = vmor %vm2225, %vm2769
        %vm3026 = vmor %vm2226, %vm2770
        %vm3027 = vmor %vm2227, %vm2771
        %vm3028 = vmor %vm2228, %vm2772
        %vm3029 = vmor %vm2229, %vm2773
        %vm3030 = vmor %vm2230, %vm2774
        %vm3031 = vmor %vm2231, %vm2775
        %vm3032 = vmor %vm2232, %vm2776
        %vm3033 = vmor %vm2233, %vm2777
        %vm3034 = vmor %vm2234, %vm2778
        %vm3035 = vmor %vm2235, %vm2779
        %vm3036 = vmor %vm2236, %vm2780
        %vm3037 = vmor %vm2237, %vm2781
        %vm3038 = vmor %vm2238, %vm2782
        %vm3039 = vmor %vm2239, %vm2783
        %vm3040 = vmor %vm2240, %vm2784
        %vm3041 = vmor %vm2241, %vm2785
        %vm3042 = vmor %vm2242, %vm2786
        %vm3043 = vmor %vm2243, %vm2787
        %vm3044 = vmor %vm2244, %vm2788
        %vm3045 = vmor %vm2245, %vm2789
        %vm3046 = vmor %vm2246, %vm2790
        %vm3047 = vmor %vm2247, %vm2791
        %vm3048 = vmor %vm2248, %vm2792
        %vm3049 = vmor %vm2249, %vm2793
        %vm3050 = vmor %vm2250, %vm2794
        %vm3051 = vmor %vm2251, %vm2795
        %vm3052 = vmor %vm2252, %vm2796
        %vm3053 = vmor %vm2253, %vm2797
        %vm3054 = vmor %vm2254, %vm2798
        %vm3055 = vmor %vm2255, %vm2799
        %vm3056 = vmor %vm2256, %vm2800
        %vm3057 = vmor %vm2257, %vm2801
        %vm3058 = vmor %vm2258, %vm2802
        %vm3059 = vmor %vm2259, %vm2803
        %vm3060 = vmor %vm2260, %vm2804
        %vm3061 = vmor %vm2261, %vm2805
        %vm3062 = vmor %vm2262, %vm2806
        %vm3063 = vmor %vm2263, %vm2807
        %vm3064 = vmor %vm2264, %vm2808
        %vm3065 = vmor %vm2265, %vm2809
        %vm3066 = vmor %vm2266, %vm2810
        %vm3067 = vmor %vm2267, %vm2811
        %vm3068 = vmor %vm2268, %vm2812
        %vm3069 = vmor %vm2269, %vm2813
        %vm3070 = vmor %vm2270, %vm2814
        %vm3071 = vmor %vm2271, %vm2815
        %vm3072 = vmor %vm2272, %vm2816
        %vm3073 = vmor %vm2273, %vm2817
        %vm3074 = vmor %vm2274, %vm2818
        %vm3075 = vmor %vm2275, %vm2819
        %vm3076 = vmor %vm2276, %vm2820
        %vm3077 = vmor %vm2277, %vm2821
        %vm3078 = vmor %vm2278, %vm2822
        %vm3079 = vmor %vm2279, %vm2823
        %vm3080 = vmor %vm2280, %vm2824
        %vm3081 = vmor %vm2281, %vm2825
        %vm3082 = vmor %vm2282, %vm2826
        %vm3083 = vmor %vm2283, %vm2827
        %vm3084 = vmor %vm2284, %vm2828
        %vm3085 = vmor %vm2285, %vm2829
        %vm3086 = vmor %vm2286, %vm2830
        %vm3087 = vmor %vm2287, %vm2831
        %vm3088 = vmor %vm2288, %vm2832
        %vm3089 = vmor %vm2289, %vm2833
        %vm3090 = vmor %vm2290, %vm2834
        %vm3091 = vmor %vm2291, %vm2835
        %vm3092 = vmor %vm2292, %vm2836
        %vm3093 = vmor %vm2293, %vm2837
        %vm3094 = vmor %vm2294, %vm2838
        %vm3095 = vmor %vm2295, %vm2839
        %vm3096 = vmor %vm2296, %vm2840
        %vm3097 = vmor %vm2297, %vm2841
        %vm3098 = vmor %vm2298, %vm2842
        %vm3099 = vmor %vm2299, %vm2843
        %vm3100 = vmor %vm2300, %vm2844
        %vm3101 = vmor %vm2301, %vm2845
        %vm3102 = vmor %vm2302, %vm2846
        %vm3103 = vmor %vm2303, %vm2847
        %vm3104 = vmor %vm2304, %vm2848
        %vm3105 = vmor %vm2305, %vm2849
        %vm3106 = vmor %vm2306, %vm2850
        %vm3107 = vmor %vm2307, %vm2851
        %vm3108 = vmor %vm2308, %vm2852
        %vm3109 = vmor %vm2309, %vm2853
        %vm3110 = vmor %vm2310, %vm2854
        %vm3111 = vmor %vm2311, %vm2855
        %vm3112 = vmor %vm2312, %vm2856
        %v3113 = vsel %vm2857, 1, 0
        %v3114 = vsel %vm2858, 1, 0
        %v3115 = vsel %vm2859, 1, 0
        %v3116 = vsel %vm2860, 1, 0
        %v3117 = vsel %vm2861, 1, 0
        %v3118 = vsel %vm2862, 1, 0
        %v3119 = vsel %vm2863, 1, 0
        %v3120 = vsel %vm2864, 1, 0
        %v3121 = vsel %vm2865, 1, 0
        %v3122 = vsel %vm2866, 1, 0
        %v3123 = vsel %vm2867, 1, 0
        %v3124 = vsel %vm2868, 1, 0
        %v3125 = vsel %vm2869, 1, 0
        %v3126 = vsel %vm2870, 1, 0
        %v3127 = vsel %vm2871, 1, 0
        %v3128 = vsel %vm2872, 1, 0
        %v3129 = vsel %vm2873, 1, 0
        %v3130 = vsel %vm2874, 1, 0
        %v3131 = vsel %vm2875, 1, 0
        %v3132 = vsel %vm2876, 1, 0
        %v3133 = vsel %vm2877, 1, 0
        %v3134 = vsel %vm2878, 1, 0
        %v3135 = vsel %vm2879, 1, 0
        %v3136 = vsel %vm2880, 1, 0
        %v3137 = vsel %vm2881, 1, 0
        %v3138 = vsel %vm2882, 1, 0
        %v3139 = vsel %vm2883, 1, 0
        %v3140 = vsel %vm2884, 1, 0
        %v3141 = vsel %vm2885, 1, 0
        %v3142 = vsel %vm2886, 1, 0
        %v3143 = vsel %vm2887, 1, 0
        %v3144 = vsel %vm2888, 1, 0
        %v3145 = vsel %vm2889, 1, 0
        %v3146 = vsel %vm2890, 1, 0
        %v3147 = vsel %vm2891, 1, 0
        %v3148 = vsel %vm2892, 1, 0
        %v3149 = vsel %vm2893, 1, 0
        %v3150 = vsel %vm2894, 1, 0
        %v3151 = vsel %vm2895, 1, 0
        %v3152 = vsel %vm2896, 1, 0
        %v3153 = vsel %vm2897, 1, 0
        %v3154 = vsel %vm2898, 1, 0
        %v3155 = vsel %vm2899, 1, 0
        %v3156 = vsel %vm2900, 1, 0
        %v3157 = vsel %vm2901, 1, 0
        %v3158 = vsel %vm2902, 1, 0
        %v3159 = vsel %vm2903, 1, 0
        %v3160 = vsel %vm2904, 1, 0
        %v3161 = vsel %vm2905, 1, 0
        %v3162 = vsel %vm2906, 1, 0
        %v3163 = vsel %vm2907, 1, 0
        %v3164 = vsel %vm2908, 1, 0
        %v3165 = vsel %vm2909, 1, 0
        %v3166 = vsel %vm2910, 1, 0
        %v3167 = vsel %vm2911, 1, 0
        %v3168 = vsel %vm2912, 1, 0
        %v3169 = vsel %vm2913, 1, 0
        %v3170 = vsel %vm2914, 1, 0
        %v3171 = vsel %vm2915, 1, 0
        %v3172 = vsel %vm2916, 1, 0
        %v3173 = vsel %vm2917, 1, 0
        %v3174 = vsel %vm2918, 1, 0
        %v3175 = vsel %vm2919, 1, 0
        %v3176 = vsel %vm2920, 1, 0
        %v3177 = vsel %vm2921, 1, 0
        %v3178 = vsel %vm2922, 1, 0
        %v3179 = vsel %vm2923, 1, 0
        %v3180 = vsel %vm2924, 1, 0
        %v3181 = vsel %vm2925, 1, 0
        %v3182 = vsel %vm2926, 1, 0
        %v3183 = vsel %vm2927, 1, 0
        %v3184 = vsel %vm2928, 1, 0
        %v3185 = vsel %vm2929, 1, 0
        %v3186 = vsel %vm2930, 1, 0
        %v3187 = vsel %vm2931, 1, 0
        %v3188 = vsel %vm2932, 1, 0
        %v3189 = vsel %vm2933, 1, 0
        %v3190 = vsel %vm2934, 1, 0
        %v3191 = vsel %vm2935, 1, 0
        %v3192 = vsel %vm2936, 1, 0
        %v3193 = vsel %vm2937, 1, 0
        %v3194 = vsel %vm2938, 1, 0
        %v3195 = vsel %vm2939, 1, 0
        %v3196 = vsel %vm2940, 1, 0
        %v3197 = vsel %vm2941, 1, 0
        %v3198 = vsel %vm2942, 1, 0
        %v3199 = vsel %vm2943, 1, 0
        %v3200 = vsel %vm2944, 1, 0
        %v3201 = vsel %vm2945, 1, 0
        %v3202 = vsel %vm2946, 1, 0
        %v3203 = vsel %vm2947, 1, 0
        %v3204 = vsel %vm2948, 1, 0
        %v3205 = vsel %vm2949, 1, 0
        %v3206 = vsel %vm2950, 1, 0
        %v3207 = vsel %vm2951, 1, 0
        %v3208 = vsel %vm2952, 1, 0
        %v3209 = vsel %vm2953, 1, 0
        %v3210 = vsel %vm2954, 1, 0
        %v3211 = vsel %vm2955, 1, 0
        %v3212 = vsel %vm2956, 1, 0
        %v3213 = vsel %vm2957, 1, 0
        %v3214 = vsel %vm2958, 1, 0
        %v3215 = vsel %vm2959, 1, 0
        %v3216 = vsel %vm2960, 1, 0
        %v3217 = vsel %vm2961, 1, 0
        %v3218 = vsel %vm2962, 1, 0
        %v3219 = vsel %vm2963, 1, 0
        %v3220 = vsel %vm2964, 1, 0
        %v3221 = vsel %vm2965, 1, 0
        %v3222 = vsel %vm2966, 1, 0
        %v3223 = vsel %vm2967, 1, 0
        %v3224 = vsel %vm2968, 1, 0
        %v3225 = vsel %vm2969, 1, 0
        %v3226 = vsel %vm2970, 1, 0
        %v3227 = vsel %vm2971, 1, 0
        %v3228 = vsel %vm2972, 1, 0
        %v3229 = vsel %vm2973, 1, 0
        %v3230 = vsel %vm2974, 1, 0
        %v3231 = vsel %vm2975, 1, 0
        %v3232 = vsel %vm2976, 1, 0
        %v3233 = vsel %vm2977, 1, 0
        %v3234 = vsel %vm2978, 1, 0
        %v3235 = vsel %vm2979, 1, 0
        %v3236 = vsel %vm2980, 1, 0
        %v3237 = vsel %vm2981, 1, 0
        %v3238 = vsel %vm2982, 1, 0
        %v3239 = vsel %vm2983, 1, 0
        %v3240 = vsel %vm2984, 1, 0
        %v3241 = vsel %vm2985, 1, 0
        %v3242 = vsel %vm2986, 1, 0
        %v3243 = vsel %vm2987, 1, 0
        %v3244 = vsel %vm2988, 1, 0
        %v3245 = vsel %vm2989, 1, 0
        %v3246 = vsel %vm2990, 1, 0
        %v3247 = vsel %vm2991, 1, 0
        %v3248 = vsel %vm2992, 1, 0
        %v3249 = vsel %vm2993, 1, 0
        %v3250 = vsel %vm2994, 1, 0
        %v3251 = vsel %vm2995, 1, 0
        %v3252 = vsel %vm2996, 1, 0
        %v3253 = vsel %vm2997, 1, 0
        %v3254 = vsel %vm2998, 1, 0
        %v3255 = vsel %vm2999, 1, 0
        %v3256 = vsel %vm3000, 1, 0
        %v3257 = vsel %vm3001, 1, 0
        %v3258 = vsel %vm3002, 1, 0
        %v3259 = vsel %vm3003, 1, 0
        %v3260 = vsel %vm3004, 1, 0
        %v3261 = vsel %vm3005, 1, 0
        %v3262 = vsel %vm3006, 1, 0
        %v3263 = vsel %vm3007, 1, 0
        %v3264 = vsel %vm3008, 1, 0
        %v3265 = vsel %vm3009, 1, 0
        %v3266 = vsel %vm3010, 1, 0
        %v3267 = vsel %vm3011, 1, 0
        %v3268 = vsel %vm3012, 1, 0
        %v3269 = vsel %vm3013, 1, 0
        %v3270 = vsel %vm3014, 1, 0
        %v3271 = vsel %vm3015, 1, 0
        %v3272 = vsel %vm3016, 1, 0
        %v3273 = vsel %vm3017, 1, 0
        %v3274 = vsel %vm3018, 1, 0
        %v3275 = vsel %vm3019, 1, 0
        %v3276 = vsel %vm3020, 1, 0
        %v3277 = vsel %vm3021, 1, 0
        %v3278 = vsel %vm3022, 1, 0
        %v3279 = vsel %vm3023, 1, 0
        %v3280 = vsel %vm3024, 1, 0
        %v3281 = vsel %vm3025, 1, 0
        %v3282 = vsel %vm3026, 1, 0
        %v3283 = vsel %vm3027, 1, 0
        %v3284 = vsel %vm3028, 1, 0
        %v3285 = vsel %vm3029, 1, 0
        %v3286 = vsel %vm3030, 1, 0
        %v3287 = vsel %vm3031, 1, 0
        %v3288 = vsel %vm3032, 1, 0
        %v3289 = vsel %vm3033, 1, 0
        %v3290 = vsel %vm3034, 1, 0
        %v3291 = vsel %vm3035, 1, 0
        %v3292 = vsel %vm3036, 1, 0
        %v3293 = vsel %vm3037, 1, 0
        %v3294 = vsel %vm3038, 1, 0
        %v3295 = vsel %vm3039, 1, 0
        %v3296 = vsel %vm3040, 1, 0
        %v3297 = vsel %vm3041, 1, 0
        %v3298 = vsel %vm3042, 1, 0
        %v3299 = vsel %vm3043, 1, 0
        %v3300 = vsel %vm3044, 1, 0
        %v3301 = vsel %vm3045, 1, 0
        %v3302 = vsel %vm3046, 1, 0
        %v3303 = vsel %vm3047, 1, 0
        %v3304 = vsel %vm3048, 1, 0
        %v3305 = vsel %vm3049, 1, 0
        %v3306 = vsel %vm3050, 1, 0
        %v3307 = vsel %vm3051, 1, 0
        %v3308 = vsel %vm3052, 1, 0
        %v3309 = vsel %vm3053, 1, 0
        %v3310 = vsel %vm3054, 1, 0
        %v3311 = vsel %vm3055, 1, 0
        %v3312 = vsel %vm3056, 1, 0
        %v3313 = vsel %vm3057, 1, 0
        %v3314 = vsel %vm3058, 1, 0
        %v3315 = vsel %vm3059, 1, 0
        %v3316 = vsel %vm3060, 1, 0
        %v3317 = vsel %vm3061, 1, 0
        %v3318 = vsel %vm3062, 1, 0
        %v3319 = vsel %vm3063, 1, 0
        %v3320 = vsel %vm3064, 1, 0
        %v3321 = vsel %vm3065, 1, 0
        %v3322 = vsel %vm3066, 1, 0
        %v3323 = vsel %vm3067, 1, 0
        %v3324 = vsel %vm3068, 1, 0
        %v3325 = vsel %vm3069, 1, 0
        %v3326 = vsel %vm3070, 1, 0
        %v3327 = vsel %vm3071, 1, 0
        %v3328 = vsel %vm3072, 1, 0
        %v3329 = vsel %vm3073, 1, 0
        %v3330 = vsel %vm3074, 1, 0
        %v3331 = vsel %vm3075, 1, 0
        %v3332 = vsel %vm3076, 1, 0
        %v3333 = vsel %vm3077, 1, 0
        %v3334 = vsel %vm3078, 1, 0
        %v3335 = vsel %vm3079, 1, 0
        %v3336 = vsel %vm3080, 1, 0
        %v3337 = vsel %vm3081, 1, 0
        %v3338 = vsel %vm3082, 1, 0
        %v3339 = vsel %vm3083, 1, 0
        %v3340 = vsel %vm3084, 1, 0
        %v3341 = vsel %vm3085, 1, 0
        %v3342 = vsel %vm3086, 1, 0
        %v3343 = vsel %vm3087, 1, 0
        %v3344 = vsel %vm3088, 1, 0
        %v3345 = vsel %vm3089, 1, 0
        %v3346 = vsel %vm3090, 1, 0
        %v3347 = vsel %vm3091, 1, 0
        %v3348 = vsel %vm3092, 1, 0
        %v3349 = vsel %vm3093, 1, 0
        %v3350 = vsel %vm3094, 1, 0
        %v3351 = vsel %vm3095, 1, 0
        %v3352 = vsel %vm3096, 1, 0
        %v3353 = vsel %vm3097, 1, 0
        %v3354 = vsel %vm3098, 1, 0
        %v3355 = vsel %vm3099, 1, 0
        %v3356 = vsel %vm3100, 1, 0
        %v3357 = vsel %vm3101, 1, 0
        %v3358 = vsel %vm3102, 1, 0
        %v3359 = vsel %vm3103, 1, 0
        %v3360 = vsel %vm3104, 1, 0
        %v3361 = vsel %vm3105, 1, 0
        %v3362 = vsel %vm3106, 1, 0
        %v3363 = vsel %vm3107, 1, 0
        %v3364 = vsel %vm3108, 1, 0
        %v3365 = vsel %vm3109, 1, 0
        %v3366 = vsel %vm3110, 1, 0
        %v3367 = vsel %vm3111, 1, 0
        %v3368 = vsel %vm3112, 1, 0
        %v3369 = vcvt.s32.f32 %v3113
        %v3370 = vcvt.s32.f32 %v3114
        %v3371 = vcvt.s32.f32 %v3115
        %v3372 = vcvt.s32.f32 %v3116
        %v3373 = vcvt.s32.f32 %v3117
        %v3374 = vcvt.s32.f32 %v3118
        %v3375 = vcvt.s32.f32 %v3119
        %v3376 = vcvt.s32.f32 %v3120
        %v3377 = vcvt.s32.f32 %v3121
        %v3378 = vcvt.s32.f32 %v3122
        %v3379 = vcvt.s32.f32 %v3123
        %v3380 = vcvt.s32.f32 %v3124
        %v3381 = vcvt.s32.f32 %v3125
        %v3382 = vcvt.s32.f32 %v3126
        %v3383 = vcvt.s32.f32 %v3127
        %v3384 = vcvt.s32.f32 %v3128
        %v3385 = vcvt.s32.f32 %v3129
        %v3386 = vcvt.s32.f32 %v3130
        %v3387 = vcvt.s32.f32 %v3131
        %v3388 = vcvt.s32.f32 %v3132
        %v3389 = vcvt.s32.f32 %v3133
        %v3390 = vcvt.s32.f32 %v3134
        %v3391 = vcvt.s32.f32 %v3135
        %v3392 = vcvt.s32.f32 %v3136
        %v3393 = vcvt.s32.f32 %v3137
        %v3394 = vcvt.s32.f32 %v3138
        %v3395 = vcvt.s32.f32 %v3139
        %v3396 = vcvt.s32.f32 %v3140
        %v3397 = vcvt.s32.f32 %v3141
        %v3398 = vcvt.s32.f32 %v3142
        %v3399 = vcvt.s32.f32 %v3143
        %v3400 = vcvt.s32.f32 %v3144
        %v3401 = vcvt.s32.f32 %v3145
        %v3402 = vcvt.s32.f32 %v3146
        %v3403 = vcvt.s32.f32 %v3147
        %v3404 = vcvt.s32.f32 %v3148
        %v3405 = vcvt.s32.f32 %v3149
        %v3406 = vcvt.s32.f32 %v3150
        %v3407 = vcvt.s32.f32 %v3151
        %v3408 = vcvt.s32.f32 %v3152
        %v3409 = vcvt.s32.f32 %v3153
        %v3410 = vcvt.s32.f32 %v3154
        %v3411 = vcvt.s32.f32 %v3155
        %v3412 = vcvt.s32.f32 %v3156
        %v3413 = vcvt.s32.f32 %v3157
        %v3414 = vcvt.s32.f32 %v3158
        %v3415 = vcvt.s32.f32 %v3159
        %v3416 = vcvt.s32.f32 %v3160
        %v3417 = vcvt.s32.f32 %v3161
        %v3418 = vcvt.s32.f32 %v3162
        %v3419 = vcvt.s32.f32 %v3163
        %v3420 = vcvt.s32.f32 %v3164
        %v3421 = vcvt.s32.f32 %v3165
        %v3422 = vcvt.s32.f32 %v3166
        %v3423 = vcvt.s32.f32 %v3167
        %v3424 = vcvt.s32.f32 %v3168
        %v3425 = vcvt.s32.f32 %v3169
        %v3426 = vcvt.s32.f32 %v3170
        %v3427 = vcvt.s32.f32 %v3171
        %v3428 = vcvt.s32.f32 %v3172
        %v3429 = vcvt.s32.f32 %v3173
        %v3430 = vcvt.s32.f32 %v3174
        %v3431 = vcvt.s32.f32 %v3175
        %v3432 = vcvt.s32.f32 %v3176
        %v3433 = vcvt.s32.f32 %v3177
        %v3434 = vcvt.s32.f32 %v3178
        %v3435 = vcvt.s32.f32 %v3179
        %v3436 = vcvt.s32.f32 %v3180
        %v3437 = vcvt.s32.f32 %v3181
        %v3438 = vcvt.s32.f32 %v3182
        %v3439 = vcvt.s32.f32 %v3183
        %v3440 = vcvt.s32.f32 %v3184
        %v3441 = vcvt.s32.f32 %v3185
        %v3442 = vcvt.s32.f32 %v3186
        %v3443 = vcvt.s32.f32 %v3187
        %v3444 = vcvt.s32.f32 %v3188
        %v3445 = vcvt.s32.f32 %v3189
        %v3446 = vcvt.s32.f32 %v3190
        %v3447 = vcvt.s32.f32 %v3191
        %v3448 = vcvt.s32.f32 %v3192
        %v3449 = vcvt.s32.f32 %v3193
        %v3450 = vcvt.s32.f32 %v3194
        %v3451 = vcvt.s32.f32 %v3195
        %v3452 = vcvt.s32.f32 %v3196
        %v3453 = vcvt.s32.f32 %v3197
        %v3454 = vcvt.s32.f32 %v3198
        %v3455 = vcvt.s32.f32 %v3199
        %v3456 = vcvt.s32.f32 %v3200
        %v3457 = vcvt.s32.f32 %v3201
        %v3458 = vcvt.s32.f32 %v3202
        %v3459 = vcvt.s32.f32 %v3203
        %v3460 = vcvt.s32.f32 %v3204
        %v3461 = vcvt.s32.f32 %v3205
        %v3462 = vcvt.s32.f32 %v3206
        %v3463 = vcvt.s32.f32 %v3207
        %v3464 = vcvt.s32.f32 %v3208
        %v3465 = vcvt.s32.f32 %v3209
        %v3466 = vcvt.s32.f32 %v3210
        %v3467 = vcvt.s32.f32 %v3211
        %v3468 = vcvt.s32.f32 %v3212
        %v3469 = vcvt.s32.f32 %v3213
        %v3470 = vcvt.s32.f32 %v3214
        %v3471 = vcvt.s32.f32 %v3215
        %v3472 = vcvt.s32.f32 %v3216
        %v3473 = vcvt.s32.f32 %v3217
        %v3474 = vcvt.s32.f32 %v3218
        %v3475 = vcvt.s32.f32 %v3219
        %v3476 = vcvt.s32.f32 %v3220
        %v3477 = vcvt.s32.f32 %v3221
        %v3478 = vcvt.s32.f32 %v3222
        %v3479 = vcvt.s32.f32 %v3223
        %v3480 = vcvt.s32.f32 %v3224
        %v3481 = vcvt.s32.f32 %v3225
        %v3482 = vcvt.s32.f32 %v3226
        %v3483 = vcvt.s32.f32 %v3227
        %v3484 = vcvt.s32.f32 %v3228
        %v3485 = vcvt.s32.f32 %v3229
        %v3486 = vcvt.s32.f32 %v3230
        %v3487 = vcvt.s32.f32 %v3231
        %v3488 = vcvt.s32.f32 %v3232
        %v3489 = vcvt.s32.f32 %v3233
        %v3490 = vcvt.s32.f32 %v3234
        %v3491 = vcvt.s32.f32 %v3235
        %v3492 = vcvt.s32.f32 %v3236
        %v3493 = vcvt.s32.f32 %v3237
        %v3494 = vcvt.s32.f32 %v3238
        %v3495 = vcvt.s32.f32 %v3239
        %v3496 = vcvt.s32.f32 %v3240
        %v3497 = vcvt.s32.f32 %v3241
        %v3498 = vcvt.s32.f32 %v3242
        %v3499 = vcvt.s32.f32 %v3243
        %v3500 = vcvt.s32.f32 %v3244
        %v3501 = vcvt.s32.f32 %v3245
        %v3502 = vcvt.s32.f32 %v3246
        %v3503 = vcvt.s32.f32 %v3247
        %v3504 = vcvt.s32.f32 %v3248
        %v3505 = vcvt.s32.f32 %v3249
        %v3506 = vcvt.s32.f32 %v3250
        %v3507 = vcvt.s32.f32 %v3251
        %v3508 = vcvt.s32.f32 %v3252
        %v3509 = vcvt.s32.f32 %v3253
        %v3510 = vcvt.s32.f32 %v3254
        %v3511 = vcvt.s32.f32 %v3255
        %v3512 = vcvt.s32.f32 %v3256
        %v3513 = vcvt.s32.f32 %v3257
        %v3514 = vcvt.s32.f32 %v3258
        %v3515 = vcvt.s32.f32 %v3259
        %v3516 = vcvt.s32.f32 %v3260
        %v3517 = vcvt.s32.f32 %v3261
        %v3518 = vcvt.s32.f32 %v3262
        %v3519 = vcvt.s32.f32 %v3263
        %v3520 = vcvt.s32.f32 %v3264
        %v3521 = vcvt.s32.f32 %v3265
        %v3522 = vcvt.s32.f32 %v3266
        %v3523 = vcvt.s32.f32 %v3267
        %v3524 = vcvt.s32.f32 %v3268
        %v3525 = vcvt.s32.f32 %v3269
        %v3526 = vcvt.s32.f32 %v3270
        %v3527 = vcvt.s32.f32 %v3271
        %v3528 = vcvt.s32.f32 %v3272
        %v3529 = vcvt.s32.f32 %v3273
        %v3530 = vcvt.s32.f32 %v3274
        %v3531 = vcvt.s32.f32 %v3275
        %v3532 = vcvt.s32.f32 %v3276
        %v3533 = vcvt.s32.f32 %v3277
        %v3534 = vcvt.s32.f32 %v3278
        %v3535 = vcvt.s32.f32 %v3279
        %v3536 = vcvt.s32.f32 %v3280
        %v3537 = vcvt.s32.f32 %v3281
        %v3538 = vcvt.s32.f32 %v3282
        %v3539 = vcvt.s32.f32 %v3283
        %v3540 = vcvt.s32.f32 %v3284
        %v3541 = vcvt.s32.f32 %v3285
        %v3542 = vcvt.s32.f32 %v3286
        %v3543 = vcvt.s32.f32 %v3287
        %v3544 = vcvt.s32.f32 %v3288
        %v3545 = vcvt.s32.f32 %v3289
        %v3546 = vcvt.s32.f32 %v3290
        %v3547 = vcvt.s32.f32 %v3291
        %v3548 = vcvt.s32.f32 %v3292
        %v3549 = vcvt.s32.f32 %v3293
        %v3550 = vcvt.s32.f32 %v3294
        %v3551 = vcvt.s32.f32 %v3295
        %v3552 = vcvt.s32.f32 %v3296
        %v3553 = vcvt.s32.f32 %v3297
        %v3554 = vcvt.s32.f32 %v3298
        %v3555 = vcvt.s32.f32 %v3299
        %v3556 = vcvt.s32.f32 %v3300
        %v3557 = vcvt.s32.f32 %v3301
        %v3558 = vcvt.s32.f32 %v3302
        %v3559 = vcvt.s32.f32 %v3303
        %v3560 = vcvt.s32.f32 %v3304
        %v3561 = vcvt.s32.f32 %v3305
        %v3562 = vcvt.s32.f32 %v3306
        %v3563 = vcvt.s32.f32 %v3307
        %v3564 = vcvt.s32.f32 %v3308
        %v3565 = vcvt.s32.f32 %v3309
        %v3566 = vcvt.s32.f32 %v3310
        %v3567 = vcvt.s32.f32 %v3311
        %v3568 = vcvt.s32.f32 %v3312
        %v3569 = vcvt.s32.f32 %v3313
        %v3570 = vcvt.s32.f32 %v3314
        %v3571 = vcvt.s32.f32 %v3315
        %v3572 = vcvt.s32.f32 %v3316
        %v3573 = vcvt.s32.f32 %v3317
        %v3574 = vcvt.s32.f32 %v3318
        %v3575 = vcvt.s32.f32 %v3319
        %v3576 = vcvt.s32.f32 %v3320
        %v3577 = vcvt.s32.f32 %v3321
        %v3578 = vcvt.s32.f32 %v3322
        %v3579 = vcvt.s32.f32 %v3323
        %v3580 = vcvt.s32.f32 %v3324
        %v3581 = vcvt.s32.f32 %v3325
        %v3582 = vcvt.s32.f32 %v3326
        %v3583 = vcvt.s32.f32 %v3327
        %v3584 = vcvt.s32.f32 %v3328
        %v3585 = vcvt.s32.f32 %v3329
        %v3586 = vcvt.s32.f32 %v3330
        %v3587 = vcvt.s32.f32 %v3331
        %v3588 = vcvt.s32.f32 %v3332
        %v3589 = vcvt.s32.f32 %v3333
        %v3590 = vcvt.s32.f32 %v3334
        %v3591 = vcvt.s32.f32 %v3335
        %v3592 = vcvt.s32.f32 %v3336
        %v3593 = vcvt.s32.f32 %v3337
        %v3594 = vcvt.s32.f32 %v3338
        %v3595 = vcvt.s32.f32 %v3339
        %v3596 = vcvt.s32.f32 %v3340
        %v3597 = vcvt.s32.f32 %v3341
        %v3598 = vcvt.s32.f32 %v3342
        %v3599 = vcvt.s32.f32 %v3343
        %v3600 = vcvt.s32.f32 %v3344
        %v3601 = vcvt.s32.f32 %v3345
        %v3602 = vcvt.s32.f32 %v3346
        %v3603 = vcvt.s32.f32 %v3347
        %v3604 = vcvt.s32.f32 %v3348
        %v3605 = vcvt.s32.f32 %v3349
        %v3606 = vcvt.s32.f32 %v3350
        %v3607 = vcvt.s32.f32 %v3351
        %v3608 = vcvt.s32.f32 %v3352
        %v3609 = vcvt.s32.f32 %v3353
        %v3610 = vcvt.s32.f32 %v3354
        %v3611 = vcvt.s32.f32 %v3355
        %v3612 = vcvt.s32.f32 %v3356
        %v3613 = vcvt.s32.f32 %v3357
        %v3614 = vcvt.s32.f32 %v3358
        %v3615 = vcvt.s32.f32 %v3359
        %v3616 = vcvt.s32.f32 %v3360
        %v3617 = vcvt.s32.f32 %v3361
        %v3618 = vcvt.s32.f32 %v3362
        %v3619 = vcvt.s32.f32 %v3363
        %v3620 = vcvt.s32.f32 %v3364
        %v3621 = vcvt.s32.f32 %v3365
        %v3622 = vcvt.s32.f32 %v3366
        %v3623 = vcvt.s32.f32 %v3367
        %v3624 = vcvt.s32.f32 %v3368
        %3625 = vadd.xlane.f32.xlu0 %v3369
        %v3626 = vpop.xlane.xlu0 %3625
        %3627 = vadd.xlane.f32.xlu0 %v3370
        %v3628 = vpop.xlane.xlu0 %3627
        %3629 = vadd.xlane.f32.xlu0 %v3371
        %v3630 = vpop.xlane.xlu0 %3629
        %3631 = vadd.xlane.f32.xlu0 %v3372
        %v3632 = vpop.xlane.xlu0 %3631
        %3633 = vadd.xlane.f32.xlu0 %v3373
        %v3634 = vpop.xlane.xlu0 %3633
        %3635 = vadd.xlane.f32.xlu0 %v3374
        %v3636 = vpop.xlane.xlu0 %3635
        %3637 = vadd.xlane.f32.xlu0 %v3375
        %v3638 = vpop.xlane.xlu0 %3637
        %3639 = vadd.xlane.f32.xlu0 %v3376
        %v3640 = vpop.xlane.xlu0 %3639
        %3641 = vadd.xlane.f32.xlu0 %v3377
        %v3642 = vpop.xlane.xlu0 %3641
        %3643 = vadd.xlane.f32.xlu0 %v3378
        %v3644 = vpop.xlane.xlu0 %3643
        %3645 = vadd.xlane.f32.xlu0 %v3379
        %v3646 = vpop.xlane.xlu0 %3645
        %3647 = vadd.xlane.f32.xlu0 %v3380
        %v3648 = vpop.xlane.xlu0 %3647
        %3649 = vadd.xlane.f32.xlu0 %v3381
        %v3650 = vpop.xlane.xlu0 %3649
        %3651 = vadd.xlane.f32.xlu0 %v3382
        %v3652 = vpop.xlane.xlu0 %3651
        %3653 = vadd.xlane.f32.xlu0 %v3383
        %v3654 = vpop.xlane.xlu0 %3653
        %3655 = vadd.xlane.f32.xlu0 %v3384
        %v3656 = vpop.xlane.xlu0 %3655
        %3657 = vadd.xlane.f32.xlu0 %v3385
        %v3658 = vpop.xlane.xlu0 %3657
        %3659 = vadd.xlane.f32.xlu0 %v3386
        %v3660 = vpop.xlane.xlu0 %3659
        %3661 = vadd.xlane.f32.xlu0 %v3387
        %v3662 = vpop.xlane.xlu0 %3661
        %3663 = vadd.xlane.f32.xlu0 %v3388
        %v3664 = vpop.xlane.xlu0 %3663
        %3665 = vadd.xlane.f32.xlu0 %v3389
        %v3666 = vpop.xlane.xlu0 %3665
        %3667 = vadd.xlane.f32.xlu0 %v3390
        %v3668 = vpop.xlane.xlu0 %3667
        %3669 = vadd.xlane.f32.xlu0 %v3391
        %v3670 = vpop.xlane.xlu0 %3669
        %3671 = vadd.xlane.f32.xlu0 %v3392
        %v3672 = vpop.xlane.xlu0 %3671
        %3673 = vadd.xlane.f32.xlu0 %v3393
        %v3674 = vpop.xlane.xlu0 %3673
        %3675 = vadd.xlane.f32.xlu0 %v3394
        %v3676 = vpop.xlane.xlu0 %3675
        %3677 = vadd.xlane.f32.xlu0 %v3395
        %v3678 = vpop.xlane.xlu0 %3677
        %3679 = vadd.xlane.f32.xlu0 %v3396
        %v3680 = vpop.xlane.xlu0 %3679
        %3681 = vadd.xlane.f32.xlu0 %v3397
        %v3682 = vpop.xlane.xlu0 %3681
        %3683 = vadd.xlane.f32.xlu0 %v3398
        %v3684 = vpop.xlane.xlu0 %3683
        %3685 = vadd.xlane.f32.xlu0 %v3399
        %v3686 = vpop.xlane.xlu0 %3685
        %3687 = vadd.xlane.f32.xlu0 %v3400
        %v3688 = vpop.xlane.xlu0 %3687
        %3689 = vadd.xlane.f32.xlu0 %v3401
        %v3690 = vpop.xlane.xlu0 %3689
        %3691 = vadd.xlane.f32.xlu0 %v3402
        %v3692 = vpop.xlane.xlu0 %3691
        %3693 = vadd.xlane.f32.xlu0 %v3403
        %v3694 = vpop.xlane.xlu0 %3693
        %3695 = vadd.xlane.f32.xlu0 %v3404
        %v3696 = vpop.xlane.xlu0 %3695
        %3697 = vadd.xlane.f32.xlu0 %v3405
        %v3698 = vpop.xlane.xlu0 %3697
        %3699 = vadd.xlane.f32.xlu0 %v3406
        %v3700 = vpop.xlane.xlu0 %3699
        %3701 = vadd.xlane.f32.xlu0 %v3407
        %v3702 = vpop.xlane.xlu0 %3701
        %3703 = vadd.xlane.f32.xlu0 %v3408
        %v3704 = vpop.xlane.xlu0 %3703
        %3705 = vadd.xlane.f32.xlu0 %v3409
        %v3706 = vpop.xlane.xlu0 %3705
        %3707 = vadd.xlane.f32.xlu0 %v3410
        %v3708 = vpop.xlane.xlu0 %3707
        %3709 = vadd.xlane.f32.xlu0 %v3411
        %v3710 = vpop.xlane.xlu0 %3709
        %3711 = vadd.xlane.f32.xlu0 %v3412
        %v3712 = vpop.xlane.xlu0 %3711
        %3713 = vadd.xlane.f32.xlu0 %v3413
        %v3714 = vpop.xlane.xlu0 %3713
        %3715 = vadd.xlane.f32.xlu0 %v3414
        %v3716 = vpop.xlane.xlu0 %3715
        %3717 = vadd.xlane.f32.xlu0 %v3415
        %v3718 = vpop.xlane.xlu0 %3717
        %3719 = vadd.xlane.f32.xlu0 %v3416
        %v3720 = vpop.xlane.xlu0 %3719
        %3721 = vadd.xlane.f32.xlu0 %v3417
        %v3722 = vpop.xlane.xlu0 %3721
        %3723 = vadd.xlane.f32.xlu0 %v3418
        %v3724 = vpop.xlane.xlu0 %3723
        %3725 = vadd.xlane.f32.xlu0 %v3419
        %v3726 = vpop.xlane.xlu0 %3725
        %3727 = vadd.xlane.f32.xlu0 %v3420
        %v3728 = vpop.xlane.xlu0 %3727
        %3729 = vadd.xlane.f32.xlu0 %v3421
        %v3730 = vpop.xlane.xlu0 %3729
        %3731 = vadd.xlane.f32.xlu0 %v3422
        %v3732 = vpop.xlane.xlu0 %3731
        %3733 = vadd.xlane.f32.xlu0 %v3423
        %v3734 = vpop.xlane.xlu0 %3733
        %3735 = vadd.xlane.f32.xlu0 %v3424
        %v3736 = vpop.xlane.xlu0 %3735
        %3737 = vadd.xlane.f32.xlu0 %v3425
        %v3738 = vpop.xlane.xlu0 %3737
        %3739 = vadd.xlane.f32.xlu0 %v3426
        %v3740 = vpop.xlane.xlu0 %3739
        %3741 = vadd.xlane.f32.xlu0 %v3427
        %v3742 = vpop.xlane.xlu0 %3741
        %3743 = vadd.xlane.f32.xlu0 %v3428
        %v3744 = vpop.xlane.xlu0 %3743
        %3745 = vadd.xlane.f32.xlu0 %v3429
        %v3746 = vpop.xlane.xlu0 %3745
        %3747 = vadd.xlane.f32.xlu0 %v3430
        %v3748 = vpop.xlane.xlu0 %3747
        %3749 = vadd.xlane.f32.xlu0 %v3431
        %v3750 = vpop.xlane.xlu0 %3749
        %3751 = vadd.xlane.f32.xlu0 %v3432
        %v3752 = vpop.xlane.xlu0 %3751
        %3753 = vadd.xlane.f32.xlu0 %v3433
        %v3754 = vpop.xlane.xlu0 %3753
        %3755 = vadd.xlane.f32.xlu0 %v3434
        %v3756 = vpop.xlane.xlu0 %3755
        %3757 = vadd.xlane.f32.xlu0 %v3435
        %v3758 = vpop.xlane.xlu0 %3757
        %3759 = vadd.xlane.f32.xlu0 %v3436
        %v3760 = vpop.xlane.xlu0 %3759
        %3761 = vadd.xlane.f32.xlu0 %v3437
        %v3762 = vpop.xlane.xlu0 %3761
        %3763 = vadd.xlane.f32.xlu0 %v3438
        %v3764 = vpop.xlane.xlu0 %3763
        %3765 = vadd.xlane.f32.xlu0 %v3439
        %v3766 = vpop.xlane.xlu0 %3765
        %3767 = vadd.xlane.f32.xlu0 %v3440
        %v3768 = vpop.xlane.xlu0 %3767
        %3769 = vadd.xlane.f32.xlu0 %v3441
        %v3770 = vpop.xlane.xlu0 %3769
        %3771 = vadd.xlane.f32.xlu0 %v3442
        %v3772 = vpop.xlane.xlu0 %3771
        %3773 = vadd.xlane.f32.xlu0 %v3443
        %v3774 = vpop.xlane.xlu0 %3773
        %3775 = vadd.xlane.f32.xlu0 %v3444
        %v3776 = vpop.xlane.xlu0 %3775
        %3777 = vadd.xlane.f32.xlu0 %v3445
        %v3778 = vpop.xlane.xlu0 %3777
        %3779 = vadd.xlane.f32.xlu0 %v3446
        %v3780 = vpop.xlane.xlu0 %3779
        %3781 = vadd.xlane.f32.xlu0 %v3447
        %v3782 = vpop.xlane.xlu0 %3781
        %3783 = vadd.xlane.f32.xlu0 %v3448
        %v3784 = vpop.xlane.xlu0 %3783
        %3785 = vadd.xlane.f32.xlu0 %v3449
        %v3786 = vpop.xlane.xlu0 %3785
        %3787 = vadd.xlane.f32.xlu0 %v3450
        %v3788 = vpop.xlane.xlu0 %3787
        %3789 = vadd.xlane.f32.xlu0 %v3451
        %v3790 = vpop.xlane.xlu0 %3789
        %3791 = vadd.xlane.f32.xlu0 %v3452
        %v3792 = vpop.xlane.xlu0 %3791
        %3793 = vadd.xlane.f32.xlu0 %v3453
        %v3794 = vpop.xlane.xlu0 %3793
        %3795 = vadd.xlane.f32.xlu0 %v3454
        %v3796 = vpop.xlane.xlu0 %3795
        %3797 = vadd.xlane.f32.xlu0 %v3455
        %v3798 = vpop.xlane.xlu0 %3797
        %3799 = vadd.xlane.f32.xlu0 %v3456
        %v3800 = vpop.xlane.xlu0 %3799
        %3801 = vadd.xlane.f32.xlu0 %v3457
        %v3802 = vpop.xlane.xlu0 %3801
        %3803 = vadd.xlane.f32.xlu0 %v3458
        %v3804 = vpop.xlane.xlu0 %3803
        %3805 = vadd.xlane.f32.xlu0 %v3459
        %v3806 = vpop.xlane.xlu0 %3805
        %3807 = vadd.xlane.f32.xlu0 %v3460
        %v3808 = vpop.xlane.xlu0 %3807
        %3809 = vadd.xlane.f32.xlu0 %v3461
        %v3810 = vpop.xlane.xlu0 %3809
        %3811 = vadd.xlane.f32.xlu0 %v3462
        %v3812 = vpop.xlane.xlu0 %3811
        %3813 = vadd.xlane.f32.xlu0 %v3463
        %v3814 = vpop.xlane.xlu0 %3813
        %3815 = vadd.xlane.f32.xlu0 %v3464
        %v3816 = vpop.xlane.xlu0 %3815
        %3817 = vadd.xlane.f32.xlu0 %v3465
        %v3818 = vpop.xlane.xlu0 %3817
        %3819 = vadd.xlane.f32.xlu0 %v3466
        %v3820 = vpop.xlane.xlu0 %3819
        %3821 = vadd.xlane.f32.xlu0 %v3467
        %v3822 = vpop.xlane.xlu0 %3821
        %3823 = vadd.xlane.f32.xlu0 %v3468
        %v3824 = vpop.xlane.xlu0 %3823
        %3825 = vadd.xlane.f32.xlu0 %v3469
        %v3826 = vpop.xlane.xlu0 %3825
        %3827 = vadd.xlane.f32.xlu0 %v3470
        %v3828 = vpop.xlane.xlu0 %3827
        %3829 = vadd.xlane.f32.xlu0 %v3471
        %v3830 = vpop.xlane.xlu0 %3829
        %3831 = vadd.xlane.f32.xlu0 %v3472
        %v3832 = vpop.xlane.xlu0 %3831
        %3833 = vadd.xlane.f32.xlu0 %v3473
        %v3834 = vpop.xlane.xlu0 %3833
        %3835 = vadd.xlane.f32.xlu0 %v3474
        %v3836 = vpop.xlane.xlu0 %3835
        %3837 = vadd.xlane.f32.xlu0 %v3475
        %v3838 = vpop.xlane.xlu0 %3837
        %3839 = vadd.xlane.f32.xlu0 %v3476
        %v3840 = vpop.xlane.xlu0 %3839
        %3841 = vadd.xlane.f32.xlu0 %v3477
        %v3842 = vpop.xlane.xlu0 %3841
        %3843 = vadd.xlane.f32.xlu0 %v3478
        %v3844 = vpop.xlane.xlu0 %3843
        %3845 = vadd.xlane.f32.xlu0 %v3479
        %v3846 = vpop.xlane.xlu0 %3845
        %3847 = vadd.xlane.f32.xlu0 %v3480
        %v3848 = vpop.xlane.xlu0 %3847
        %3849 = vadd.xlane.f32.xlu0 %v3481
        %v3850 = vpop.xlane.xlu0 %3849
        %3851 = vadd.xlane.f32.xlu0 %v3482
        %v3852 = vpop.xlane.xlu0 %3851
        %3853 = vadd.xlane.f32.xlu0 %v3483
        %v3854 = vpop.xlane.xlu0 %3853
        %3855 = vadd.xlane.f32.xlu0 %v3484
        %v3856 = vpop.xlane.xlu0 %3855
        %3857 = vadd.xlane.f32.xlu0 %v3485
        %v3858 = vpop.xlane.xlu0 %3857
        %3859 = vadd.xlane.f32.xlu0 %v3486
        %v3860 = vpop.xlane.xlu0 %3859
        %3861 = vadd.xlane.f32.xlu0 %v3487
        %v3862 = vpop.xlane.xlu0 %3861
        %3863 = vadd.xlane.f32.xlu0 %v3488
        %v3864 = vpop.xlane.xlu0 %3863
        %3865 = vadd.xlane.f32.xlu0 %v3489
        %v3866 = vpop.xlane.xlu0 %3865
        %3867 = vadd.xlane.f32.xlu0 %v3490
        %v3868 = vpop.xlane.xlu0 %3867
        %3869 = vadd.xlane.f32.xlu0 %v3491
        %v3870 = vpop.xlane.xlu0 %3869
        %3871 = vadd.xlane.f32.xlu0 %v3492
        %v3872 = vpop.xlane.xlu0 %3871
        %3873 = vadd.xlane.f32.xlu0 %v3493
        %v3874 = vpop.xlane.xlu0 %3873
        %3875 = vadd.xlane.f32.xlu0 %v3494
        %v3876 = vpop.xlane.xlu0 %3875
        %3877 = vadd.xlane.f32.xlu0 %v3495
        %v3878 = vpop.xlane.xlu0 %3877
        %3879 = vadd.xlane.f32.xlu0 %v3496
        %v3880 = vpop.xlane.xlu0 %3879
        %3881 = vadd.xlane.f32.xlu0 %v3497
        %v3882 = vpop.xlane.xlu0 %3881
        %3883 = vadd.xlane.f32.xlu0 %v3498
        %v3884 = vpop.xlane.xlu0 %3883
        %3885 = vadd.xlane.f32.xlu0 %v3499
        %v3886 = vpop.xlane.xlu0 %3885
        %3887 = vadd.xlane.f32.xlu0 %v3500
        %v3888 = vpop.xlane.xlu0 %3887
        %3889 = vadd.xlane.f32.xlu0 %v3501
        %v3890 = vpop.xlane.xlu0 %3889
        %3891 = vadd.xlane.f32.xlu0 %v3502
        %v3892 = vpop.xlane.xlu0 %3891
        %3893 = vadd.xlane.f32.xlu0 %v3503
        %v3894 = vpop.xlane.xlu0 %3893
        %3895 = vadd.xlane.f32.xlu0 %v3504
        %v3896 = vpop.xlane.xlu0 %3895
        %3897 = vadd.xlane.f32.xlu0 %v3505
        %v3898 = vpop.xlane.xlu0 %3897
        %3899 = vadd.xlane.f32.xlu0 %v3506
        %v3900 = vpop.xlane.xlu0 %3899
        %3901 = vadd.xlane.f32.xlu0 %v3507
        %v3902 = vpop.xlane.xlu0 %3901
        %3903 = vadd.xlane.f32.xlu0 %v3508
        %v3904 = vpop.xlane.xlu0 %3903
        %3905 = vadd.xlane.f32.xlu0 %v3509
        %v3906 = vpop.xlane.xlu0 %3905
        %3907 = vadd.xlane.f32.xlu0 %v3510
        %v3908 = vpop.xlane.xlu0 %3907
        %3909 = vadd.xlane.f32.xlu0 %v3511
        %v3910 = vpop.xlane.xlu0 %3909
        %3911 = vadd.xlane.f32.xlu0 %v3512
        %v3912 = vpop.xlane.xlu0 %3911
        %3913 = vadd.xlane.f32.xlu0 %v3513
        %v3914 = vpop.xlane.xlu0 %3913
        %3915 = vadd.xlane.f32.xlu0 %v3514
        %v3916 = vpop.xlane.xlu0 %3915
        %3917 = vadd.xlane.f32.xlu0 %v3515
        %v3918 = vpop.xlane.xlu0 %3917
        %3919 = vadd.xlane.f32.xlu0 %v3516
        %v3920 = vpop.xlane.xlu0 %3919
        %3921 = vadd.xlane.f32.xlu0 %v3517
        %v3922 = vpop.xlane.xlu0 %3921
        %3923 = vadd.xlane.f32.xlu0 %v3518
        %v3924 = vpop.xlane.xlu0 %3923
        %3925 = vadd.xlane.f32.xlu0 %v3519
        %v3926 = vpop.xlane.xlu0 %3925
        %3927 = vadd.xlane.f32.xlu0 %v3520
        %v3928 = vpop.xlane.xlu0 %3927
        %3929 = vadd.xlane.f32.xlu0 %v3521
        %v3930 = vpop.xlane.xlu0 %3929
        %3931 = vadd.xlane.f32.xlu0 %v3522
        %v3932 = vpop.xlane.xlu0 %3931
        %3933 = vadd.xlane.f32.xlu0 %v3523
        %v3934 = vpop.xlane.xlu0 %3933
        %3935 = vadd.xlane.f32.xlu0 %v3524
        %v3936 = vpop.xlane.xlu0 %3935
        %3937 = vadd.xlane.f32.xlu0 %v3525
        %v3938 = vpop.xlane.xlu0 %3937
        %3939 = vadd.xlane.f32.xlu0 %v3526
        %v3940 = vpop.xlane.xlu0 %3939
        %3941 = vadd.xlane.f32.xlu0 %v3527
        %v3942 = vpop.xlane.xlu0 %3941
        %3943 = vadd.xlane.f32.xlu0 %v3528
        %v3944 = vpop.xlane.xlu0 %3943
        %3945 = vadd.xlane.f32.xlu0 %v3529
        %v3946 = vpop.xlane.xlu0 %3945
        %3947 = vadd.xlane.f32.xlu0 %v3530
        %v3948 = vpop.xlane.xlu0 %3947
        %3949 = vadd.xlane.f32.xlu0 %v3531
        %v3950 = vpop.xlane.xlu0 %3949
        %3951 = vadd.xlane.f32.xlu0 %v3532
        %v3952 = vpop.xlane.xlu0 %3951
        %3953 = vadd.xlane.f32.xlu0 %v3533
        %v3954 = vpop.xlane.xlu0 %3953
        %3955 = vadd.xlane.f32.xlu0 %v3534
        %v3956 = vpop.xlane.xlu0 %3955
        %3957 = vadd.xlane.f32.xlu0 %v3535
        %v3958 = vpop.xlane.xlu0 %3957
        %3959 = vadd.xlane.f32.xlu0 %v3536
        %v3960 = vpop.xlane.xlu0 %3959
        %3961 = vadd.xlane.f32.xlu0 %v3537
        %v3962 = vpop.xlane.xlu0 %3961
        %3963 = vadd.xlane.f32.xlu0 %v3538
        %v3964 = vpop.xlane.xlu0 %3963
        %3965 = vadd.xlane.f32.xlu0 %v3539
        %v3966 = vpop.xlane.xlu0 %3965
        %3967 = vadd.xlane.f32.xlu0 %v3540
        %v3968 = vpop.xlane.xlu0 %3967
        %3969 = vadd.xlane.f32.xlu0 %v3541
        %v3970 = vpop.xlane.xlu0 %3969
        %3971 = vadd.xlane.f32.xlu0 %v3542
        %v3972 = vpop.xlane.xlu0 %3971
        %3973 = vadd.xlane.f32.xlu0 %v3543
        %v3974 = vpop.xlane.xlu0 %3973
        %3975 = vadd.xlane.f32.xlu0 %v3544
        %v3976 = vpop.xlane.xlu0 %3975
        %3977 = vadd.xlane.f32.xlu0 %v3545
        %v3978 = vpop.xlane.xlu0 %3977
        %3979 = vadd.xlane.f32.xlu0 %v3546
        %v3980 = vpop.xlane.xlu0 %3979
        %3981 = vadd.xlane.f32.xlu0 %v3547
        %v3982 = vpop.xlane.xlu0 %3981
        %3983 = vadd.xlane.f32.xlu0 %v3548
        %v3984 = vpop.xlane.xlu0 %3983
        %3985 = vadd.xlane.f32.xlu0 %v3549
        %v3986 = vpop.xlane.xlu0 %3985
        %3987 = vadd.xlane.f32.xlu0 %v3550
        %v3988 = vpop.xlane.xlu0 %3987
        %3989 = vadd.xlane.f32.xlu0 %v3551
        %v3990 = vpop.xlane.xlu0 %3989
        %3991 = vadd.xlane.f32.xlu0 %v3552
        %v3992 = vpop.xlane.xlu0 %3991
        %3993 = vadd.xlane.f32.xlu0 %v3553
        %v3994 = vpop.xlane.xlu0 %3993
        %3995 = vadd.xlane.f32.xlu0 %v3554
        %v3996 = vpop.xlane.xlu0 %3995
        %3997 = vadd.xlane.f32.xlu0 %v3555
        %v3998 = vpop.xlane.xlu0 %3997
        %3999 = vadd.xlane.f32.xlu0 %v3556
        %v4000 = vpop.xlane.xlu0 %3999
        %4001 = vadd.xlane.f32.xlu0 %v3557
        %v4002 = vpop.xlane.xlu0 %4001
        %4003 = vadd.xlane.f32.xlu0 %v3558
        %v4004 = vpop.xlane.xlu0 %4003
        %4005 = vadd.xlane.f32.xlu0 %v3559
        %v4006 = vpop.xlane.xlu0 %4005
        %4007 = vadd.xlane.f32.xlu0 %v3560
        %v4008 = vpop.xlane.xlu0 %4007
        %4009 = vadd.xlane.f32.xlu0 %v3561
        %v4010 = vpop.xlane.xlu0 %4009
        %4011 = vadd.xlane.f32.xlu0 %v3562
        %v4012 = vpop.xlane.xlu0 %4011
        %4013 = vadd.xlane.f32.xlu0 %v3563
        %v4014 = vpop.xlane.xlu0 %4013
        %4015 = vadd.xlane.f32.xlu0 %v3564
        %v4016 = vpop.xlane.xlu0 %4015
        %4017 = vadd.xlane.f32.xlu0 %v3565
        %v4018 = vpop.xlane.xlu0 %4017
        %4019 = vadd.xlane.f32.xlu0 %v3566
        %v4020 = vpop.xlane.xlu0 %4019
        %4021 = vadd.xlane.f32.xlu0 %v3567
        %v4022 = vpop.xlane.xlu0 %4021
        %4023 = vadd.xlane.f32.xlu0 %v3568
        %v4024 = vpop.xlane.xlu0 %4023
        %4025 = vadd.xlane.f32.xlu0 %v3569
        %v4026 = vpop.xlane.xlu0 %4025
        %4027 = vadd.xlane.f32.xlu0 %v3570
        %v4028 = vpop.xlane.xlu0 %4027
        %4029 = vadd.xlane.f32.xlu0 %v3571
        %v4030 = vpop.xlane.xlu0 %4029
        %4031 = vadd.xlane.f32.xlu0 %v3572
        %v4032 = vpop.xlane.xlu0 %4031
        %4033 = vadd.xlane.f32.xlu0 %v3573
        %v4034 = vpop.xlane.xlu0 %4033
        %4035 = vadd.xlane.f32.xlu0 %v3574
        %v4036 = vpop.xlane.xlu0 %4035
        %4037 = vadd.xlane.f32.xlu0 %v3575
        %v4038 = vpop.xlane.xlu0 %4037
        %4039 = vadd.xlane.f32.xlu0 %v3576
        %v4040 = vpop.xlane.xlu0 %4039
        %4041 = vadd.xlane.f32.xlu0 %v3577
        %v4042 = vpop.xlane.xlu0 %4041
        %4043 = vadd.xlane.f32.xlu0 %v3578
        %v4044 = vpop.xlane.xlu0 %4043
        %4045 = vadd.xlane.f32.xlu0 %v3579
        %v4046 = vpop.xlane.xlu0 %4045
        %4047 = vadd.xlane.f32.xlu0 %v3580
        %v4048 = vpop.xlane.xlu0 %4047
        %4049 = vadd.xlane.f32.xlu0 %v3581
        %v4050 = vpop.xlane.xlu0 %4049
        %4051 = vadd.xlane.f32.xlu0 %v3582
        %v4052 = vpop.xlane.xlu0 %4051
        %4053 = vadd.xlane.f32.xlu0 %v3583
        %v4054 = vpop.xlane.xlu0 %4053
        %4055 = vadd.xlane.f32.xlu0 %v3584
        %v4056 = vpop.xlane.xlu0 %4055
        %4057 = vadd.xlane.f32.xlu0 %v3585
        %v4058 = vpop.xlane.xlu0 %4057
        %4059 = vadd.xlane.f32.xlu0 %v3586
        %v4060 = vpop.xlane.xlu0 %4059
        %4061 = vadd.xlane.f32.xlu0 %v3587
        %v4062 = vpop.xlane.xlu0 %4061
        %4063 = vadd.xlane.f32.xlu0 %v3588
        %v4064 = vpop.xlane.xlu0 %4063
        %4065 = vadd.xlane.f32.xlu0 %v3589
        %v4066 = vpop.xlane.xlu0 %4065
        %4067 = vadd.xlane.f32.xlu0 %v3590
        %v4068 = vpop.xlane.xlu0 %4067
        %4069 = vadd.xlane.f32.xlu0 %v3591
        %v4070 = vpop.xlane.xlu0 %4069
        %4071 = vadd.xlane.f32.xlu0 %v3592
        %v4072 = vpop.xlane.xlu0 %4071
        %4073 = vadd.xlane.f32.xlu0 %v3593
        %v4074 = vpop.xlane.xlu0 %4073
        %4075 = vadd.xlane.f32.xlu0 %v3594
        %v4076 = vpop.xlane.xlu0 %4075
        %4077 = vadd.xlane.f32.xlu0 %v3595
        %v4078 = vpop.xlane.xlu0 %4077
        %4079 = vadd.xlane.f32.xlu0 %v3596
        %v4080 = vpop.xlane.xlu0 %4079
        %4081 = vadd.xlane.f32.xlu0 %v3597
        %v4082 = vpop.xlane.xlu0 %4081
        %4083 = vadd.xlane.f32.xlu0 %v3598
        %v4084 = vpop.xlane.xlu0 %4083
        %4085 = vadd.xlane.f32.xlu0 %v3599
        %v4086 = vpop.xlane.xlu0 %4085
        %4087 = vadd.xlane.f32.xlu0 %v3600
        %v4088 = vpop.xlane.xlu0 %4087
        %4089 = vadd.xlane.f32.xlu0 %v3601
        %v4090 = vpop.xlane.xlu0 %4089
        %4091 = vadd.xlane.f32.xlu0 %v3602
        %v4092 = vpop.xlane.xlu0 %4091
        %4093 = vadd.xlane.f32.xlu0 %v3603
        %v4094 = vpop.xlane.xlu0 %4093
        %4095 = vadd.xlane.f32.xlu0 %v3604
        %v4096 = vpop.xlane.xlu0 %4095
        %4097 = vadd.xlane.f32.xlu0 %v3605
        %v4098 = vpop.xlane.xlu0 %4097
        %4099 = vadd.xlane.f32.xlu0 %v3606
        %v4100 = vpop.xlane.xlu0 %4099
        %4101 = vadd.xlane.f32.xlu0 %v3607
        %v4102 = vpop.xlane.xlu0 %4101
        %4103 = vadd.xlane.f32.xlu0 %v3608
        %v4104 = vpop.xlane.xlu0 %4103
        %4105 = vadd.xlane.f32.xlu0 %v3609
        %v4106 = vpop.xlane.xlu0 %4105
        %4107 = vadd.xlane.f32.xlu0 %v3610
        %v4108 = vpop.xlane.xlu0 %4107
        %4109 = vadd.xlane.f32.xlu0 %v3611
        %v4110 = vpop.xlane.xlu0 %4109
        %4111 = vadd.xlane.f32.xlu0 %v3612
        %v4112 = vpop.xlane.xlu0 %4111
        %4113 = vadd.xlane.f32.xlu0 %v3613
        %v4114 = vpop.xlane.xlu0 %4113
        %4115 = vadd.xlane.f32.xlu0 %v3614
        %v4116 = vpop.xlane.xlu0 %4115
        %4117 = vadd.xlane.f32.xlu0 %v3615
        %v4118 = vpop.xlane.xlu0 %4117
        %4119 = vadd.xlane.f32.xlu0 %v3616
        %v4120 = vpop.xlane.xlu0 %4119
        %4121 = vadd.xlane.f32.xlu0 %v3617
        %v4122 = vpop.xlane.xlu0 %4121
        %4123 = vadd.xlane.f32.xlu0 %v3618
        %v4124 = vpop.xlane.xlu0 %4123
        %4125 = vadd.xlane.f32.xlu0 %v3619
        %v4126 = vpop.xlane.xlu0 %4125
        %4127 = vadd.xlane.f32.xlu0 %v3620
        %v4128 = vpop.xlane.xlu0 %4127
        %4129 = vadd.xlane.f32.xlu0 %v3621
        %v4130 = vpop.xlane.xlu0 %4129
        %4131 = vadd.xlane.f32.xlu0 %v3622
        %v4132 = vpop.xlane.xlu0 %4131
        %4133 = vadd.xlane.f32.xlu0 %v3623
        %v4134 = vpop.xlane.xlu0 %4133
        %4135 = vadd.xlane.f32.xlu0 %v3624
        %v4136 = vpop.xlane.xlu0 %4135
        %vm4137 = vcmp.eq.f32.partialorder %v3626, %v456
        %vm4138 = vcmp.eq.f32.partialorder %v3628, %v456
        %vm4139 = vcmp.eq.f32.partialorder %v3630, %v456
        %vm4140 = vcmp.eq.f32.partialorder %v3632, %v456
        %vm4141 = vcmp.eq.f32.partialorder %v3634, %v456
        %vm4142 = vcmp.eq.f32.partialorder %v3636, %v456
        %vm4143 = vcmp.eq.f32.partialorder %v3638, %v456
        %vm4144 = vcmp.eq.f32.partialorder %v3640, %v456
        %vm4145 = vcmp.eq.f32.partialorder %v3642, %v456
        %vm4146 = vcmp.eq.f32.partialorder %v3644, %v456
        %vm4147 = vcmp.eq.f32.partialorder %v3646, %v456
        %vm4148 = vcmp.eq.f32.partialorder %v3648, %v456
        %vm4149 = vcmp.eq.f32.partialorder %v3650, %v456
        %vm4150 = vcmp.eq.f32.partialorder %v3652, %v456
        %vm4151 = vcmp.eq.f32.partialorder %v3654, %v456
        %vm4152 = vcmp.eq.f32.partialorder %v3656, %v456
        %vm4153 = vcmp.eq.f32.partialorder %v3658, %v456
        %vm4154 = vcmp.eq.f32.partialorder %v3660, %v456
        %vm4155 = vcmp.eq.f32.partialorder %v3662, %v456
        %vm4156 = vcmp.eq.f32.partialorder %v3664, %v456
        %vm4157 = vcmp.eq.f32.partialorder %v3666, %v456
        %vm4158 = vcmp.eq.f32.partialorder %v3668, %v456
        %vm4159 = vcmp.eq.f32.partialorder %v3670, %v456
        %vm4160 = vcmp.eq.f32.partialorder %v3672, %v456
        %vm4161 = vcmp.eq.f32.partialorder %v3674, %v456
        %vm4162 = vcmp.eq.f32.partialorder %v3676, %v456
        %vm4163 = vcmp.eq.f32.partialorder %v3678, %v456
        %vm4164 = vcmp.eq.f32.partialorder %v3680, %v456
        %vm4165 = vcmp.eq.f32.partialorder %v3682, %v456
        %vm4166 = vcmp.eq.f32.partialorder %v3684, %v456
        %vm4167 = vcmp.eq.f32.partialorder %v3686, %v456
        %vm4168 = vcmp.eq.f32.partialorder %v3688, %v456
        %vm4169 = vcmp.eq.f32.partialorder %v3690, %v456
        %vm4170 = vcmp.eq.f32.partialorder %v3692, %v456
        %vm4171 = vcmp.eq.f32.partialorder %v3694, %v456
        %vm4172 = vcmp.eq.f32.partialorder %v3696, %v456
        %vm4173 = vcmp.eq.f32.partialorder %v3698, %v456
        %vm4174 = vcmp.eq.f32.partialorder %v3700, %v456
        %vm4175 = vcmp.eq.f32.partialorder %v3702, %v456
        %vm4176 = vcmp.eq.f32.partialorder %v3704, %v456
        %vm4177 = vcmp.eq.f32.partialorder %v3706, %v456
        %vm4178 = vcmp.eq.f32.partialorder %v3708, %v456
        %vm4179 = vcmp.eq.f32.partialorder %v3710, %v456
        %vm4180 = vcmp.eq.f32.partialorder %v3712, %v456
        %vm4181 = vcmp.eq.f32.partialorder %v3714, %v456
        %vm4182 = vcmp.eq.f32.partialorder %v3716, %v456
        %vm4183 = vcmp.eq.f32.partialorder %v3718, %v456
        %vm4184 = vcmp.eq.f32.partialorder %v3720, %v456
        %vm4185 = vcmp.eq.f32.partialorder %v3722, %v456
        %vm4186 = vcmp.eq.f32.partialorder %v3724, %v456
        %vm4187 = vcmp.eq.f32.partialorder %v3726, %v456
        %vm4188 = vcmp.eq.f32.partialorder %v3728, %v456
        %vm4189 = vcmp.eq.f32.partialorder %v3730, %v456
        %vm4190 = vcmp.eq.f32.partialorder %v3732, %v456
        %vm4191 = vcmp.eq.f32.partialorder %v3734, %v456
        %vm4192 = vcmp.eq.f32.partialorder %v3736, %v456
        %vm4193 = vcmp.eq.f32.partialorder %v3738, %v456
        %vm4194 = vcmp.eq.f32.partialorder %v3740, %v456
        %vm4195 = vcmp.eq.f32.partialorder %v3742, %v456
        %vm4196 = vcmp.eq.f32.partialorder %v3744, %v456
        %vm4197 = vcmp.eq.f32.partialorder %v3746, %v456
        %vm4198 = vcmp.eq.f32.partialorder %v3748, %v456
        %vm4199 = vcmp.eq.f32.partialorder %v3750, %v456
        %vm4200 = vcmp.eq.f32.partialorder %v3752, %v456
        %vm4201 = vcmp.eq.f32.partialorder %v3754, %v456
        %vm4202 = vcmp.eq.f32.partialorder %v3756, %v456
        %vm4203 = vcmp.eq.f32.partialorder %v3758, %v456
        %vm4204 = vcmp.eq.f32.partialorder %v3760, %v456
        %vm4205 = vcmp.eq.f32.partialorder %v3762, %v456
        %vm4206 = vcmp.eq.f32.partialorder %v3764, %v456
        %vm4207 = vcmp.eq.f32.partialorder %v3766, %v456
        %vm4208 = vcmp.eq.f32.partialorder %v3768, %v456
        %vm4209 = vcmp.eq.f32.partialorder %v3770, %v456
        %vm4210 = vcmp.eq.f32.partialorder %v3772, %v456
        %vm4211 = vcmp.eq.f32.partialorder %v3774, %v456
        %vm4212 = vcmp.eq.f32.partialorder %v3776, %v456
        %vm4213 = vcmp.eq.f32.partialorder %v3778, %v456
        %vm4214 = vcmp.eq.f32.partialorder %v3780, %v456
        %vm4215 = vcmp.eq.f32.partialorder %v3782, %v456
        %vm4216 = vcmp.eq.f32.partialorder %v3784, %v456
        %vm4217 = vcmp.eq.f32.partialorder %v3786, %v456
        %vm4218 = vcmp.eq.f32.partialorder %v3788, %v456
        %vm4219 = vcmp.eq.f32.partialorder %v3790, %v456
        %vm4220 = vcmp.eq.f32.partialorder %v3792, %v456
        %vm4221 = vcmp.eq.f32.partialorder %v3794, %v456
        %vm4222 = vcmp.eq.f32.partialorder %v3796, %v456
        %vm4223 = vcmp.eq.f32.partialorder %v3798, %v456
        %vm4224 = vcmp.eq.f32.partialorder %v3800, %v456
        %vm4225 = vcmp.eq.f32.partialorder %v3802, %v456
        %vm4226 = vcmp.eq.f32.partialorder %v3804, %v456
        %vm4227 = vcmp.eq.f32.partialorder %v3806, %v456
        %vm4228 = vcmp.eq.f32.partialorder %v3808, %v456
        %vm4229 = vcmp.eq.f32.partialorder %v3810, %v456
        %vm4230 = vcmp.eq.f32.partialorder %v3812, %v456
        %vm4231 = vcmp.eq.f32.partialorder %v3814, %v456
        %vm4232 = vcmp.eq.f32.partialorder %v3816, %v456
        %vm4233 = vcmp.eq.f32.partialorder %v3818, %v456
        %vm4234 = vcmp.eq.f32.partialorder %v3820, %v456
        %vm4235 = vcmp.eq.f32.partialorder %v3822, %v456
        %vm4236 = vcmp.eq.f32.partialorder %v3824, %v456
        %vm4237 = vcmp.eq.f32.partialorder %v3826, %v456
        %vm4238 = vcmp.eq.f32.partialorder %v3828, %v456
        %vm4239 = vcmp.eq.f32.partialorder %v3830, %v456
        %vm4240 = vcmp.eq.f32.partialorder %v3832, %v456
        %vm4241 = vcmp.eq.f32.partialorder %v3834, %v456
        %vm4242 = vcmp.eq.f32.partialorder %v3836, %v456
        %vm4243 = vcmp.eq.f32.partialorder %v3838, %v456
        %vm4244 = vcmp.eq.f32.partialorder %v3840, %v456
        %vm4245 = vcmp.eq.f32.partialorder %v3842, %v456
        %vm4246 = vcmp.eq.f32.partialorder %v3844, %v456
        %vm4247 = vcmp.eq.f32.partialorder %v3846, %v456
        %vm4248 = vcmp.eq.f32.partialorder %v3848, %v456
        %vm4249 = vcmp.eq.f32.partialorder %v3850, %v456
        %vm4250 = vcmp.eq.f32.partialorder %v3852, %v456
        %vm4251 = vcmp.eq.f32.partialorder %v3854, %v456
        %vm4252 = vcmp.eq.f32.partialorder %v3856, %v456
        %vm4253 = vcmp.eq.f32.partialorder %v3858, %v456
        %vm4254 = vcmp.eq.f32.partialorder %v3860, %v456
        %vm4255 = vcmp.eq.f32.partialorder %v3862, %v456
        %vm4256 = vcmp.eq.f32.partialorder %v3864, %v456
        %vm4257 = vcmp.eq.f32.partialorder %v3866, %v456
        %vm4258 = vcmp.eq.f32.partialorder %v3868, %v456
        %vm4259 = vcmp.eq.f32.partialorder %v3870, %v456
        %vm4260 = vcmp.eq.f32.partialorder %v3872, %v456
        %vm4261 = vcmp.eq.f32.partialorder %v3874, %v456
        %vm4262 = vcmp.eq.f32.partialorder %v3876, %v456
        %vm4263 = vcmp.eq.f32.partialorder %v3878, %v456
        %vm4264 = vcmp.eq.f32.partialorder %v3880, %v456
        %vm4265 = vcmp.eq.f32.partialorder %v3882, %v456
        %vm4266 = vcmp.eq.f32.partialorder %v3884, %v456
        %vm4267 = vcmp.eq.f32.partialorder %v3886, %v456
        %vm4268 = vcmp.eq.f32.partialorder %v3888, %v456
        %vm4269 = vcmp.eq.f32.partialorder %v3890, %v456
        %vm4270 = vcmp.eq.f32.partialorder %v3892, %v456
        %vm4271 = vcmp.eq.f32.partialorder %v3894, %v456
        %vm4272 = vcmp.eq.f32.partialorder %v3896, %v456
        %vm4273 = vcmp.eq.f32.partialorder %v3898, %v456
        %vm4274 = vcmp.eq.f32.partialorder %v3900, %v456
        %vm4275 = vcmp.eq.f32.partialorder %v3902, %v456
        %vm4276 = vcmp.eq.f32.partialorder %v3904, %v456
        %vm4277 = vcmp.eq.f32.partialorder %v3906, %v456
        %vm4278 = vcmp.eq.f32.partialorder %v3908, %v456
        %vm4279 = vcmp.eq.f32.partialorder %v3910, %v456
        %vm4280 = vcmp.eq.f32.partialorder %v3912, %v456
        %vm4281 = vcmp.eq.f32.partialorder %v3914, %v456
        %vm4282 = vcmp.eq.f32.partialorder %v3916, %v456
        %vm4283 = vcmp.eq.f32.partialorder %v3918, %v456
        %vm4284 = vcmp.eq.f32.partialorder %v3920, %v456
        %vm4285 = vcmp.eq.f32.partialorder %v3922, %v456
        %vm4286 = vcmp.eq.f32.partialorder %v3924, %v456
        %vm4287 = vcmp.eq.f32.partialorder %v3926, %v456
        %vm4288 = vcmp.eq.f32.partialorder %v3928, %v456
        %vm4289 = vcmp.eq.f32.partialorder %v3930, %v456
        %vm4290 = vcmp.eq.f32.partialorder %v3932, %v456
        %vm4291 = vcmp.eq.f32.partialorder %v3934, %v456
        %vm4292 = vcmp.eq.f32.partialorder %v3936, %v456
        %vm4293 = vcmp.eq.f32.partialorder %v3938, %v456
        %vm4294 = vcmp.eq.f32.partialorder %v3940, %v456
        %vm4295 = vcmp.eq.f32.partialorder %v3942, %v456
        %vm4296 = vcmp.eq.f32.partialorder %v3944, %v456
        %vm4297 = vcmp.eq.f32.partialorder %v3946, %v456
        %vm4298 = vcmp.eq.f32.partialorder %v3948, %v456
        %vm4299 = vcmp.eq.f32.partialorder %v3950, %v456
        %vm4300 = vcmp.eq.f32.partialorder %v3952, %v456
        %vm4301 = vcmp.eq.f32.partialorder %v3954, %v456
        %vm4302 = vcmp.eq.f32.partialorder %v3956, %v456
        %vm4303 = vcmp.eq.f32.partialorder %v3958, %v456
        %vm4304 = vcmp.eq.f32.partialorder %v3960, %v456
        %vm4305 = vcmp.eq.f32.partialorder %v3962, %v456
        %vm4306 = vcmp.eq.f32.partialorder %v3964, %v456
        %vm4307 = vcmp.eq.f32.partialorder %v3966, %v456
        %vm4308 = vcmp.eq.f32.partialorder %v3968, %v456
        %vm4309 = vcmp.eq.f32.partialorder %v3970, %v456
        %vm4310 = vcmp.eq.f32.partialorder %v3972, %v456
        %vm4311 = vcmp.eq.f32.partialorder %v3974, %v456
        %vm4312 = vcmp.eq.f32.partialorder %v3976, %v456
        %vm4313 = vcmp.eq.f32.partialorder %v3978, %v456
        %vm4314 = vcmp.eq.f32.partialorder %v3980, %v456
        %vm4315 = vcmp.eq.f32.partialorder %v3982, %v456
        %vm4316 = vcmp.eq.f32.partialorder %v3984, %v456
        %vm4317 = vcmp.eq.f32.partialorder %v3986, %v456
        %vm4318 = vcmp.eq.f32.partialorder %v3988, %v456
        %vm4319 = vcmp.eq.f32.partialorder %v3990, %v456
        %vm4320 = vcmp.eq.f32.partialorder %v3992, %v456
        %vm4321 = vcmp.eq.f32.partialorder %v3994, %v456
        %vm4322 = vcmp.eq.f32.partialorder %v3996, %v456
        %vm4323 = vcmp.eq.f32.partialorder %v3998, %v456
        %vm4324 = vcmp.eq.f32.partialorder %v4000, %v456
        %vm4325 = vcmp.eq.f32.partialorder %v4002, %v456
        %vm4326 = vcmp.eq.f32.partialorder %v4004, %v456
        %vm4327 = vcmp.eq.f32.partialorder %v4006, %v456
        %vm4328 = vcmp.eq.f32.partialorder %v4008, %v456
        %vm4329 = vcmp.eq.f32.partialorder %v4010, %v456
        %vm4330 = vcmp.eq.f32.partialorder %v4012, %v456
        %vm4331 = vcmp.eq.f32.partialorder %v4014, %v456
        %vm4332 = vcmp.eq.f32.partialorder %v4016, %v456
        %vm4333 = vcmp.eq.f32.partialorder %v4018, %v456
        %vm4334 = vcmp.eq.f32.partialorder %v4020, %v456
        %vm4335 = vcmp.eq.f32.partialorder %v4022, %v456
        %vm4336 = vcmp.eq.f32.partialorder %v4024, %v456
        %vm4337 = vcmp.eq.f32.partialorder %v4026, %v456
        %vm4338 = vcmp.eq.f32.partialorder %v4028, %v456
        %vm4339 = vcmp.eq.f32.partialorder %v4030, %v456
        %vm4340 = vcmp.eq.f32.partialorder %v4032, %v456
        %vm4341 = vcmp.eq.f32.partialorder %v4034, %v456
        %vm4342 = vcmp.eq.f32.partialorder %v4036, %v456
        %vm4343 = vcmp.eq.f32.partialorder %v4038, %v456
        %vm4344 = vcmp.eq.f32.partialorder %v4040, %v456
        %vm4345 = vcmp.eq.f32.partialorder %v4042, %v456
        %vm4346 = vcmp.eq.f32.partialorder %v4044, %v456
        %vm4347 = vcmp.eq.f32.partialorder %v4046, %v456
        %vm4348 = vcmp.eq.f32.partialorder %v4048, %v456
        %vm4349 = vcmp.eq.f32.partialorder %v4050, %v456
        %vm4350 = vcmp.eq.f32.partialorder %v4052, %v456
        %vm4351 = vcmp.eq.f32.partialorder %v4054, %v456
        %vm4352 = vcmp.eq.f32.partialorder %v4056, %v456
        %vm4353 = vcmp.eq.f32.partialorder %v4058, %v456
        %vm4354 = vcmp.eq.f32.partialorder %v4060, %v456
        %vm4355 = vcmp.eq.f32.partialorder %v4062, %v456
        %vm4356 = vcmp.eq.f32.partialorder %v4064, %v456
        %vm4357 = vcmp.eq.f32.partialorder %v4066, %v456
        %vm4358 = vcmp.eq.f32.partialorder %v4068, %v456
        %vm4359 = vcmp.eq.f32.partialorder %v4070, %v456
        %vm4360 = vcmp.eq.f32.partialorder %v4072, %v456
        %vm4361 = vcmp.eq.f32.partialorder %v4074, %v456
        %vm4362 = vcmp.eq.f32.partialorder %v4076, %v456
        %vm4363 = vcmp.eq.f32.partialorder %v4078, %v456
        %vm4364 = vcmp.eq.f32.partialorder %v4080, %v456
        %vm4365 = vcmp.eq.f32.partialorder %v4082, %v456
        %vm4366 = vcmp.eq.f32.partialorder %v4084, %v456
        %vm4367 = vcmp.eq.f32.partialorder %v4086, %v456
        %vm4368 = vcmp.eq.f32.partialorder %v4088, %v456
        %vm4369 = vcmp.eq.f32.partialorder %v4090, %v456
        %vm4370 = vcmp.eq.f32.partialorder %v4092, %v456
        %vm4371 = vcmp.eq.f32.partialorder %v4094, %v456
        %vm4372 = vcmp.eq.f32.partialorder %v4096, %v456
        %vm4373 = vcmp.eq.f32.partialorder %v4098, %v456
        %vm4374 = vcmp.eq.f32.partialorder %v4100, %v456
        %vm4375 = vcmp.eq.f32.partialorder %v4102, %v456
        %vm4376 = vcmp.eq.f32.partialorder %v4104, %v456
        %vm4377 = vcmp.eq.f32.partialorder %v4106, %v456
        %vm4378 = vcmp.eq.f32.partialorder %v4108, %v456
        %vm4379 = vcmp.eq.f32.partialorder %v4110, %v456
        %vm4380 = vcmp.eq.f32.partialorder %v4112, %v456
        %vm4381 = vcmp.eq.f32.partialorder %v4114, %v456
        %vm4382 = vcmp.eq.f32.partialorder %v4116, %v456
        %vm4383 = vcmp.eq.f32.partialorder %v4118, %v456
        %vm4384 = vcmp.eq.f32.partialorder %v4120, %v456
        %vm4385 = vcmp.eq.f32.partialorder %v4122, %v456
        %vm4386 = vcmp.eq.f32.partialorder %v4124, %v456
        %vm4387 = vcmp.eq.f32.partialorder %v4126, %v456
        %vm4388 = vcmp.eq.f32.partialorder %v4128, %v456
        %vm4389 = vcmp.eq.f32.partialorder %v4130, %v456
        %vm4390 = vcmp.eq.f32.partialorder %v4132, %v456
        %vm4391 = vcmp.eq.f32.partialorder %v4134, %v456
        %vm4392 = vcmp.eq.f32.partialorder %v4136, %v456
        %v4393 = vsel %vm4137, 1, 0
        %v4394 = vsel %vm4138, 1, 0
        %v4395 = vsel %vm4139, 1, 0
        %v4396 = vsel %vm4140, 1, 0
        %v4397 = vsel %vm4141, 1, 0
        %v4398 = vsel %vm4142, 1, 0
        %v4399 = vsel %vm4143, 1, 0
        %v4400 = vsel %vm4144, 1, 0
        %v4401 = vsel %vm4145, 1, 0
        %v4402 = vsel %vm4146, 1, 0
        %v4403 = vsel %vm4147, 1, 0
        %v4404 = vsel %vm4148, 1, 0
        %v4405 = vsel %vm4149, 1, 0
        %v4406 = vsel %vm4150, 1, 0
        %v4407 = vsel %vm4151, 1, 0
        %v4408 = vsel %vm4152, 1, 0
        %v4409 = vsel %vm4153, 1, 0
        %v4410 = vsel %vm4154, 1, 0
        %v4411 = vsel %vm4155, 1, 0
        %v4412 = vsel %vm4156, 1, 0
        %v4413 = vsel %vm4157, 1, 0
        %v4414 = vsel %vm4158, 1, 0
        %v4415 = vsel %vm4159, 1, 0
        %v4416 = vsel %vm4160, 1, 0
        %v4417 = vsel %vm4161, 1, 0
        %v4418 = vsel %vm4162, 1, 0
        %v4419 = vsel %vm4163, 1, 0
        %v4420 = vsel %vm4164, 1, 0
        %v4421 = vsel %vm4165, 1, 0
        %v4422 = vsel %vm4166, 1, 0
        %v4423 = vsel %vm4167, 1, 0
        %v4424 = vsel %vm4168, 1, 0
        %v4425 = vsel %vm4169, 1, 0
        %v4426 = vsel %vm4170, 1, 0
        %v4427 = vsel %vm4171, 1, 0
        %v4428 = vsel %vm4172, 1, 0
        %v4429 = vsel %vm4173, 1, 0
        %v4430 = vsel %vm4174, 1, 0
        %v4431 = vsel %vm4175, 1, 0
        %v4432 = vsel %vm4176, 1, 0
        %v4433 = vsel %vm4177, 1, 0
        %v4434 = vsel %vm4178, 1, 0
        %v4435 = vsel %vm4179, 1, 0
        %v4436 = vsel %vm4180, 1, 0
        %v4437 = vsel %vm4181, 1, 0
        %v4438 = vsel %vm4182, 1, 0
        %v4439 = vsel %vm4183, 1, 0
        %v4440 = vsel %vm4184, 1, 0
        %v4441 = vsel %vm4185, 1, 0
        %v4442 = vsel %vm4186, 1, 0
        %v4443 = vsel %vm4187, 1, 0
        %v4444 = vsel %vm4188, 1, 0
        %v4445 = vsel %vm4189, 1, 0
        %v4446 = vsel %vm4190, 1, 0
        %v4447 = vsel %vm4191, 1, 0
        %v4448 = vsel %vm4192, 1, 0
        %v4449 = vsel %vm4193, 1, 0
        %v4450 = vsel %vm4194, 1, 0
        %v4451 = vsel %vm4195, 1, 0
        %v4452 = vsel %vm4196, 1, 0
        %v4453 = vsel %vm4197, 1, 0
        %v4454 = vsel %vm4198, 1, 0
        %v4455 = vsel %vm4199, 1, 0
        %v4456 = vsel %vm4200, 1, 0
        %v4457 = vsel %vm4201, 1, 0
        %v4458 = vsel %vm4202, 1, 0
        %v4459 = vsel %vm4203, 1, 0
        %v4460 = vsel %vm4204, 1, 0
        %v4461 = vsel %vm4205, 1, 0
        %v4462 = vsel %vm4206, 1, 0
        %v4463 = vsel %vm4207, 1, 0
        %v4464 = vsel %vm4208, 1, 0
        %v4465 = vsel %vm4209, 1, 0
        %v4466 = vsel %vm4210, 1, 0
        %v4467 = vsel %vm4211, 1, 0
        %v4468 = vsel %vm4212, 1, 0
        %v4469 = vsel %vm4213, 1, 0
        %v4470 = vsel %vm4214, 1, 0
        %v4471 = vsel %vm4215, 1, 0
        %v4472 = vsel %vm4216, 1, 0
        %v4473 = vsel %vm4217, 1, 0
        %v4474 = vsel %vm4218, 1, 0
        %v4475 = vsel %vm4219, 1, 0
        %v4476 = vsel %vm4220, 1, 0
        %v4477 = vsel %vm4221, 1, 0
        %v4478 = vsel %vm4222, 1, 0
        %v4479 = vsel %vm4223, 1, 0
        %v4480 = vsel %vm4224, 1, 0
        %v4481 = vsel %vm4225, 1, 0
        %v4482 = vsel %vm4226, 1, 0
        %v4483 = vsel %vm4227, 1, 0
        %v4484 = vsel %vm4228, 1, 0
        %v4485 = vsel %vm4229, 1, 0
        %v4486 = vsel %vm4230, 1, 0
        %v4487 = vsel %vm4231, 1, 0
        %v4488 = vsel %vm4232, 1, 0
        %v4489 = vsel %vm4233, 1, 0
        %v4490 = vsel %vm4234, 1, 0
        %v4491 = vsel %vm4235, 1, 0
        %v4492 = vsel %vm4236, 1, 0
        %v4493 = vsel %vm4237, 1, 0
        %v4494 = vsel %vm4238, 1, 0
        %v4495 = vsel %vm4239, 1, 0
        %v4496 = vsel %vm4240, 1, 0
        %v4497 = vsel %vm4241, 1, 0
        %v4498 = vsel %vm4242, 1, 0
        %v4499 = vsel %vm4243, 1, 0
        %v4500 = vsel %vm4244, 1, 0
        %v4501 = vsel %vm4245, 1, 0
        %v4502 = vsel %vm4246, 1, 0
        %v4503 = vsel %vm4247, 1, 0
        %v4504 = vsel %vm4248, 1, 0
        %v4505 = vsel %vm4249, 1, 0
        %v4506 = vsel %vm4250, 1, 0
        %v4507 = vsel %vm4251, 1, 0
        %v4508 = vsel %vm4252, 1, 0
        %v4509 = vsel %vm4253, 1, 0
        %v4510 = vsel %vm4254, 1, 0
        %v4511 = vsel %vm4255, 1, 0
        %v4512 = vsel %vm4256, 1, 0
        %v4513 = vsel %vm4257, 1, 0
        %v4514 = vsel %vm4258, 1, 0
        %v4515 = vsel %vm4259, 1, 0
        %v4516 = vsel %vm4260, 1, 0
        %v4517 = vsel %vm4261, 1, 0
        %v4518 = vsel %vm4262, 1, 0
        %v4519 = vsel %vm4263, 1, 0
        %v4520 = vsel %vm4264, 1, 0
        %v4521 = vsel %vm4265, 1, 0
        %v4522 = vsel %vm4266, 1, 0
        %v4523 = vsel %vm4267, 1, 0
        %v4524 = vsel %vm4268, 1, 0
        %v4525 = vsel %vm4269, 1, 0
        %v4526 = vsel %vm4270, 1, 0
        %v4527 = vsel %vm4271, 1, 0
        %v4528 = vsel %vm4272, 1, 0
        %v4529 = vsel %vm4273, 1, 0
        %v4530 = vsel %vm4274, 1, 0
        %v4531 = vsel %vm4275, 1, 0
        %v4532 = vsel %vm4276, 1, 0
        %v4533 = vsel %vm4277, 1, 0
        %v4534 = vsel %vm4278, 1, 0
        %v4535 = vsel %vm4279, 1, 0
        %v4536 = vsel %vm4280, 1, 0
        %v4537 = vsel %vm4281, 1, 0
        %v4538 = vsel %vm4282, 1, 0
        %v4539 = vsel %vm4283, 1, 0
        %v4540 = vsel %vm4284, 1, 0
        %v4541 = vsel %vm4285, 1, 0
        %v4542 = vsel %vm4286, 1, 0
        %v4543 = vsel %vm4287, 1, 0
        %v4544 = vsel %vm4288, 1, 0
        %v4545 = vsel %vm4289, 1, 0
        %v4546 = vsel %vm4290, 1, 0
        %v4547 = vsel %vm4291, 1, 0
        %v4548 = vsel %vm4292, 1, 0
        %v4549 = vsel %vm4293, 1, 0
        %v4550 = vsel %vm4294, 1, 0
        %v4551 = vsel %vm4295, 1, 0
        %v4552 = vsel %vm4296, 1, 0
        %v4553 = vsel %vm4297, 1, 0
        %v4554 = vsel %vm4298, 1, 0
        %v4555 = vsel %vm4299, 1, 0
        %v4556 = vsel %vm4300, 1, 0
        %v4557 = vsel %vm4301, 1, 0
        %v4558 = vsel %vm4302, 1, 0
        %v4559 = vsel %vm4303, 1, 0
        %v4560 = vsel %vm4304, 1, 0
        %v4561 = vsel %vm4305, 1, 0
        %v4562 = vsel %vm4306, 1, 0
        %v4563 = vsel %vm4307, 1, 0
        %v4564 = vsel %vm4308, 1, 0
        %v4565 = vsel %vm4309, 1, 0
        %v4566 = vsel %vm4310, 1, 0
        %v4567 = vsel %vm4311, 1, 0
        %v4568 = vsel %vm4312, 1, 0
        %v4569 = vsel %vm4313, 1, 0
        %v4570 = vsel %vm4314, 1, 0
        %v4571 = vsel %vm4315, 1, 0
        %v4572 = vsel %vm4316, 1, 0
        %v4573 = vsel %vm4317, 1, 0
        %v4574 = vsel %vm4318, 1, 0
        %v4575 = vsel %vm4319, 1, 0
        %v4576 = vsel %vm4320, 1, 0
        %v4577 = vsel %vm4321, 1, 0
        %v4578 = vsel %vm4322, 1, 0
        %v4579 = vsel %vm4323, 1, 0
        %v4580 = vsel %vm4324, 1, 0
        %v4581 = vsel %vm4325, 1, 0
        %v4582 = vsel %vm4326, 1, 0
        %v4583 = vsel %vm4327, 1, 0
        %v4584 = vsel %vm4328, 1, 0
        %v4585 = vsel %vm4329, 1, 0
        %v4586 = vsel %vm4330, 1, 0
        %v4587 = vsel %vm4331, 1, 0
        %v4588 = vsel %vm4332, 1, 0
        %v4589 = vsel %vm4333, 1, 0
        %v4590 = vsel %vm4334, 1, 0
        %v4591 = vsel %vm4335, 1, 0
        %v4592 = vsel %vm4336, 1, 0
        %v4593 = vsel %vm4337, 1, 0
        %v4594 = vsel %vm4338, 1, 0
        %v4595 = vsel %vm4339, 1, 0
        %v4596 = vsel %vm4340, 1, 0
        %v4597 = vsel %vm4341, 1, 0
        %v4598 = vsel %vm4342, 1, 0
        %v4599 = vsel %vm4343, 1, 0
        %v4600 = vsel %vm4344, 1, 0
        %v4601 = vsel %vm4345, 1, 0
        %v4602 = vsel %vm4346, 1, 0
        %v4603 = vsel %vm4347, 1, 0
        %v4604 = vsel %vm4348, 1, 0
        %v4605 = vsel %vm4349, 1, 0
        %v4606 = vsel %vm4350, 1, 0
        %v4607 = vsel %vm4351, 1, 0
        %v4608 = vsel %vm4352, 1, 0
        %v4609 = vsel %vm4353, 1, 0
        %v4610 = vsel %vm4354, 1, 0
        %v4611 = vsel %vm4355, 1, 0
        %v4612 = vsel %vm4356, 1, 0
        %v4613 = vsel %vm4357, 1, 0
        %v4614 = vsel %vm4358, 1, 0
        %v4615 = vsel %vm4359, 1, 0
        %v4616 = vsel %vm4360, 1, 0
        %v4617 = vsel %vm4361, 1, 0
        %v4618 = vsel %vm4362, 1, 0
        %v4619 = vsel %vm4363, 1, 0
        %v4620 = vsel %vm4364, 1, 0
        %v4621 = vsel %vm4365, 1, 0
        %v4622 = vsel %vm4366, 1, 0
        %v4623 = vsel %vm4367, 1, 0
        %v4624 = vsel %vm4368, 1, 0
        %v4625 = vsel %vm4369, 1, 0
        %v4626 = vsel %vm4370, 1, 0
        %v4627 = vsel %vm4371, 1, 0
        %v4628 = vsel %vm4372, 1, 0
        %v4629 = vsel %vm4373, 1, 0
        %v4630 = vsel %vm4374, 1, 0
        %v4631 = vsel %vm4375, 1, 0
        %v4632 = vsel %vm4376, 1, 0
        %v4633 = vsel %vm4377, 1, 0
        %v4634 = vsel %vm4378, 1, 0
        %v4635 = vsel %vm4379, 1, 0
        %v4636 = vsel %vm4380, 1, 0
        %v4637 = vsel %vm4381, 1, 0
        %v4638 = vsel %vm4382, 1, 0
        %v4639 = vsel %vm4383, 1, 0
        %v4640 = vsel %vm4384, 1, 0
        %v4641 = vsel %vm4385, 1, 0
        %v4642 = vsel %vm4386, 1, 0
        %v4643 = vsel %vm4387, 1, 0
        %v4644 = vsel %vm4388, 1, 0
        %v4645 = vsel %vm4389, 1, 0
        %v4646 = vsel %vm4390, 1, 0
        %v4647 = vsel %vm4391, 1, 0
        %v4648 = vsel %vm4392, 1, 0
        %v4649 = vcvt.s32.f32 %v4393
        %v4650 = vcvt.s32.f32 %v4394
        %v4651 = vcvt.s32.f32 %v4395
        %v4652 = vcvt.s32.f32 %v4396
        %v4653 = vcvt.s32.f32 %v4397
        %v4654 = vcvt.s32.f32 %v4398
        %v4655 = vcvt.s32.f32 %v4399
        %v4656 = vcvt.s32.f32 %v4400
        %v4657 = vcvt.s32.f32 %v4401
        %v4658 = vcvt.s32.f32 %v4402
        %v4659 = vcvt.s32.f32 %v4403
        %v4660 = vcvt.s32.f32 %v4404
        %v4661 = vcvt.s32.f32 %v4405
        %v4662 = vcvt.s32.f32 %v4406
        %v4663 = vcvt.s32.f32 %v4407
        %v4664 = vcvt.s32.f32 %v4408
        %v4665 = vcvt.s32.f32 %v4409
        %v4666 = vcvt.s32.f32 %v4410
        %v4667 = vcvt.s32.f32 %v4411
        %v4668 = vcvt.s32.f32 %v4412
        %v4669 = vcvt.s32.f32 %v4413
        %v4670 = vcvt.s32.f32 %v4414
        %v4671 = vcvt.s32.f32 %v4415
        %v4672 = vcvt.s32.f32 %v4416
        %v4673 = vcvt.s32.f32 %v4417
        %v4674 = vcvt.s32.f32 %v4418
        %v4675 = vcvt.s32.f32 %v4419
        %v4676 = vcvt.s32.f32 %v4420
        %v4677 = vcvt.s32.f32 %v4421
        %v4678 = vcvt.s32.f32 %v4422
        %v4679 = vcvt.s32.f32 %v4423
        %v4680 = vcvt.s32.f32 %v4424
        %v4681 = vcvt.s32.f32 %v4425
        %v4682 = vcvt.s32.f32 %v4426
        %v4683 = vcvt.s32.f32 %v4427
        %v4684 = vcvt.s32.f32 %v4428
        %v4685 = vcvt.s32.f32 %v4429
        %v4686 = vcvt.s32.f32 %v4430
        %v4687 = vcvt.s32.f32 %v4431
        %v4688 = vcvt.s32.f32 %v4432
        %v4689 = vcvt.s32.f32 %v4433
        %v4690 = vcvt.s32.f32 %v4434
        %v4691 = vcvt.s32.f32 %v4435
        %v4692 = vcvt.s32.f32 %v4436
        %v4693 = vcvt.s32.f32 %v4437
        %v4694 = vcvt.s32.f32 %v4438
        %v4695 = vcvt.s32.f32 %v4439
        %v4696 = vcvt.s32.f32 %v4440
        %v4697 = vcvt.s32.f32 %v4441
        %v4698 = vcvt.s32.f32 %v4442
        %v4699 = vcvt.s32.f32 %v4443
        %v4700 = vcvt.s32.f32 %v4444
        %v4701 = vcvt.s32.f32 %v4445
        %v4702 = vcvt.s32.f32 %v4446
        %v4703 = vcvt.s32.f32 %v4447
        %v4704 = vcvt.s32.f32 %v4448
        %v4705 = vcvt.s32.f32 %v4449
        %v4706 = vcvt.s32.f32 %v4450
        %v4707 = vcvt.s32.f32 %v4451
        %v4708 = vcvt.s32.f32 %v4452
        %v4709 = vcvt.s32.f32 %v4453
        %v4710 = vcvt.s32.f32 %v4454
        %v4711 = vcvt.s32.f32 %v4455
        %v4712 = vcvt.s32.f32 %v4456
        %v4713 = vcvt.s32.f32 %v4457
        %v4714 = vcvt.s32.f32 %v4458
        %v4715 = vcvt.s32.f32 %v4459
        %v4716 = vcvt.s32.f32 %v4460
        %v4717 = vcvt.s32.f32 %v4461
        %v4718 = vcvt.s32.f32 %v4462
        %v4719 = vcvt.s32.f32 %v4463
        %v4720 = vcvt.s32.f32 %v4464
        %v4721 = vcvt.s32.f32 %v4465
        %v4722 = vcvt.s32.f32 %v4466
        %v4723 = vcvt.s32.f32 %v4467
        %v4724 = vcvt.s32.f32 %v4468
        %v4725 = vcvt.s32.f32 %v4469
        %v4726 = vcvt.s32.f32 %v4470
        %v4727 = vcvt.s32.f32 %v4471
        %v4728 = vcvt.s32.f32 %v4472
        %v4729 = vcvt.s32.f32 %v4473
        %v4730 = vcvt.s32.f32 %v4474
        %v4731 = vcvt.s32.f32 %v4475
        %v4732 = vcvt.s32.f32 %v4476
        %v4733 = vcvt.s32.f32 %v4477
        %v4734 = vcvt.s32.f32 %v4478
        %v4735 = vcvt.s32.f32 %v4479
        %v4736 = vcvt.s32.f32 %v4480
        %v4737 = vcvt.s32.f32 %v4481
        %v4738 = vcvt.s32.f32 %v4482
        %v4739 = vcvt.s32.f32 %v4483
        %v4740 = vcvt.s32.f32 %v4484
        %v4741 = vcvt.s32.f32 %v4485
        %v4742 = vcvt.s32.f32 %v4486
        %v4743 = vcvt.s32.f32 %v4487
        %v4744 = vcvt.s32.f32 %v4488
        %v4745 = vcvt.s32.f32 %v4489
        %v4746 = vcvt.s32.f32 %v4490
        %v4747 = vcvt.s32.f32 %v4491
        %v4748 = vcvt.s32.f32 %v4492
        %v4749 = vcvt.s32.f32 %v4493
        %v4750 = vcvt.s32.f32 %v4494
        %v4751 = vcvt.s32.f32 %v4495
        %v4752 = vcvt.s32.f32 %v4496
        %v4753 = vcvt.s32.f32 %v4497
        %v4754 = vcvt.s32.f32 %v4498
        %v4755 = vcvt.s32.f32 %v4499
        %v4756 = vcvt.s32.f32 %v4500
        %v4757 = vcvt.s32.f32 %v4501
        %v4758 = vcvt.s32.f32 %v4502
        %v4759 = vcvt.s32.f32 %v4503
        %v4760 = vcvt.s32.f32 %v4504
        %v4761 = vcvt.s32.f32 %v4505
        %v4762 = vcvt.s32.f32 %v4506
        %v4763 = vcvt.s32.f32 %v4507
        %v4764 = vcvt.s32.f32 %v4508
        %v4765 = vcvt.s32.f32 %v4509
        %v4766 = vcvt.s32.f32 %v4510
        %v4767 = vcvt.s32.f32 %v4511
        %v4768 = vcvt.s32.f32 %v4512
        %v4769 = vcvt.s32.f32 %v4513
        %v4770 = vcvt.s32.f32 %v4514
        %v4771 = vcvt.s32.f32 %v4515
        %v4772 = vcvt.s32.f32 %v4516
        %v4773 = vcvt.s32.f32 %v4517
        %v4774 = vcvt.s32.f32 %v4518
        %v4775 = vcvt.s32.f32 %v4519
        %v4776 = vcvt.s32.f32 %v4520
        %v4777 = vcvt.s32.f32 %v4521
        %v4778 = vcvt.s32.f32 %v4522
        %v4779 = vcvt.s32.f32 %v4523
        %v4780 = vcvt.s32.f32 %v4524
        %v4781 = vcvt.s32.f32 %v4525
        %v4782 = vcvt.s32.f32 %v4526
        %v4783 = vcvt.s32.f32 %v4527
        %v4784 = vcvt.s32.f32 %v4528
        %v4785 = vcvt.s32.f32 %v4529
        %v4786 = vcvt.s32.f32 %v4530
        %v4787 = vcvt.s32.f32 %v4531
        %v4788 = vcvt.s32.f32 %v4532
        %v4789 = vcvt.s32.f32 %v4533
        %v4790 = vcvt.s32.f32 %v4534
        %v4791 = vcvt.s32.f32 %v4535
        %v4792 = vcvt.s32.f32 %v4536
        %v4793 = vcvt.s32.f32 %v4537
        %v4794 = vcvt.s32.f32 %v4538
        %v4795 = vcvt.s32.f32 %v4539
        %v4796 = vcvt.s32.f32 %v4540
        %v4797 = vcvt.s32.f32 %v4541
        %v4798 = vcvt.s32.f32 %v4542
        %v4799 = vcvt.s32.f32 %v4543
        %v4800 = vcvt.s32.f32 %v4544
        %v4801 = vcvt.s32.f32 %v4545
        %v4802 = vcvt.s32.f32 %v4546
        %v4803 = vcvt.s32.f32 %v4547
        %v4804 = vcvt.s32.f32 %v4548
        %v4805 = vcvt.s32.f32 %v4549
        %v4806 = vcvt.s32.f32 %v4550
        %v4807 = vcvt.s32.f32 %v4551
        %v4808 = vcvt.s32.f32 %v4552
        %v4809 = vcvt.s32.f32 %v4553
        %v4810 = vcvt.s32.f32 %v4554
        %v4811 = vcvt.s32.f32 %v4555
        %v4812 = vcvt.s32.f32 %v4556
        %v4813 = vcvt.s32.f32 %v4557
        %v4814 = vcvt.s32.f32 %v4558
        %v4815 = vcvt.s32.f32 %v4559
        %v4816 = vcvt.s32.f32 %v4560
        %v4817 = vcvt.s32.f32 %v4561
        %v4818 = vcvt.s32.f32 %v4562
        %v4819 = vcvt.s32.f32 %v4563
        %v4820 = vcvt.s32.f32 %v4564
        %v4821 = vcvt.s32.f32 %v4565
        %v4822 = vcvt.s32.f32 %v4566
        %v4823 = vcvt.s32.f32 %v4567
        %v4824 = vcvt.s32.f32 %v4568
        %v4825 = vcvt.s32.f32 %v4569
        %v4826 = vcvt.s32.f32 %v4570
        %v4827 = vcvt.s32.f32 %v4571
        %v4828 = vcvt.s32.f32 %v4572
        %v4829 = vcvt.s32.f32 %v4573
        %v4830 = vcvt.s32.f32 %v4574
        %v4831 = vcvt.s32.f32 %v4575
        %v4832 = vcvt.s32.f32 %v4576
        %v4833 = vcvt.s32.f32 %v4577
        %v4834 = vcvt.s32.f32 %v4578
        %v4835 = vcvt.s32.f32 %v4579
        %v4836 = vcvt.s32.f32 %v4580
        %v4837 = vcvt.s32.f32 %v4581
        %v4838 = vcvt.s32.f32 %v4582
        %v4839 = vcvt.s32.f32 %v4583
        %v4840 = vcvt.s32.f32 %v4584
        %v4841 = vcvt.s32.f32 %v4585
        %v4842 = vcvt.s32.f32 %v4586
        %v4843 = vcvt.s32.f32 %v4587
        %v4844 = vcvt.s32.f32 %v4588
        %v4845 = vcvt.s32.f32 %v4589
        %v4846 = vcvt.s32.f32 %v4590
        %v4847 = vcvt.s32.f32 %v4591
        %v4848 = vcvt.s32.f32 %v4592
        %v4849 = vcvt.s32.f32 %v4593
        %v4850 = vcvt.s32.f32 %v4594
        %v4851 = vcvt.s32.f32 %v4595
        %v4852 = vcvt.s32.f32 %v4596
        %v4853 = vcvt.s32.f32 %v4597
        %v4854 = vcvt.s32.f32 %v4598
        %v4855 = vcvt.s32.f32 %v4599
        %v4856 = vcvt.s32.f32 %v4600
        %v4857 = vcvt.s32.f32 %v4601
        %v4858 = vcvt.s32.f32 %v4602
        %v4859 = vcvt.s32.f32 %v4603
        %v4860 = vcvt.s32.f32 %v4604
        %v4861 = vcvt.s32.f32 %v4605
        %v4862 = vcvt.s32.f32 %v4606
        %v4863 = vcvt.s32.f32 %v4607
        %v4864 = vcvt.s32.f32 %v4608
        %v4865 = vcvt.s32.f32 %v4609
        %v4866 = vcvt.s32.f32 %v4610
        %v4867 = vcvt.s32.f32 %v4611
        %v4868 = vcvt.s32.f32 %v4612
        %v4869 = vcvt.s32.f32 %v4613
        %v4870 = vcvt.s32.f32 %v4614
        %v4871 = vcvt.s32.f32 %v4615
        %v4872 = vcvt.s32.f32 %v4616
        %v4873 = vcvt.s32.f32 %v4617
        %v4874 = vcvt.s32.f32 %v4618
        %v4875 = vcvt.s32.f32 %v4619
        %v4876 = vcvt.s32.f32 %v4620
        %v4877 = vcvt.s32.f32 %v4621
        %v4878 = vcvt.s32.f32 %v4622
        %v4879 = vcvt.s32.f32 %v4623
        %v4880 = vcvt.s32.f32 %v4624
        %v4881 = vcvt.s32.f32 %v4625
        %v4882 = vcvt.s32.f32 %v4626
        %v4883 = vcvt.s32.f32 %v4627
        %v4884 = vcvt.s32.f32 %v4628
        %v4885 = vcvt.s32.f32 %v4629
        %v4886 = vcvt.s32.f32 %v4630
        %v4887 = vcvt.s32.f32 %v4631
        %v4888 = vcvt.s32.f32 %v4632
        %v4889 = vcvt.s32.f32 %v4633
        %v4890 = vcvt.s32.f32 %v4634
        %v4891 = vcvt.s32.f32 %v4635
        %v4892 = vcvt.s32.f32 %v4636
        %v4893 = vcvt.s32.f32 %v4637
        %v4894 = vcvt.s32.f32 %v4638
        %v4895 = vcvt.s32.f32 %v4639
        %v4896 = vcvt.s32.f32 %v4640
        %v4897 = vcvt.s32.f32 %v4641
        %v4898 = vcvt.s32.f32 %v4642
        %v4899 = vcvt.s32.f32 %v4643
        %v4900 = vcvt.s32.f32 %v4644
        %v4901 = vcvt.s32.f32 %v4645
        %v4902 = vcvt.s32.f32 %v4646
        %v4903 = vcvt.s32.f32 %v4647
        %v4904 = vcvt.s32.f32 %v4648
        %v4905 = vpack.c.bf16 %v4649, %v4649
        %v4906 = vpack.c.bf16 %v4650, %v4650
        %v4907 = vpack.c.bf16 %v4651, %v4651
        %v4908 = vpack.c.bf16 %v4652, %v4652
        %v4909 = vpack.c.bf16 %v4653, %v4653
        %v4910 = vpack.c.bf16 %v4654, %v4654
        %v4911 = vpack.c.bf16 %v4655, %v4655
        %v4912 = vpack.c.bf16 %v4656, %v4656
        %v4913 = vpack.c.bf16 %v4657, %v4657
        %v4914 = vpack.c.bf16 %v4658, %v4658
        %v4915 = vpack.c.bf16 %v4659, %v4659
        %v4916 = vpack.c.bf16 %v4660, %v4660
        %v4917 = vpack.c.bf16 %v4661, %v4661
        %v4918 = vpack.c.bf16 %v4662, %v4662
        %v4919 = vpack.c.bf16 %v4663, %v4663
        %v4920 = vpack.c.bf16 %v4664, %v4664
        %v4921 = vpack.c.bf16 %v4665, %v4665
        %v4922 = vpack.c.bf16 %v4666, %v4666
        %v4923 = vpack.c.bf16 %v4667, %v4667
        %v4924 = vpack.c.bf16 %v4668, %v4668
        %v4925 = vpack.c.bf16 %v4669, %v4669
        %v4926 = vpack.c.bf16 %v4670, %v4670
        %v4927 = vpack.c.bf16 %v4671, %v4671
        %v4928 = vpack.c.bf16 %v4672, %v4672
        %v4929 = vpack.c.bf16 %v4673, %v4673
        %v4930 = vpack.c.bf16 %v4674, %v4674
        %v4931 = vpack.c.bf16 %v4675, %v4675
        %v4932 = vpack.c.bf16 %v4676, %v4676
        %v4933 = vpack.c.bf16 %v4677, %v4677
        %v4934 = vpack.c.bf16 %v4678, %v4678
        %v4935 = vpack.c.bf16 %v4679, %v4679
        %v4936 = vpack.c.bf16 %v4680, %v4680
        %v4937 = vpack.c.bf16 %v4681, %v4681
        %v4938 = vpack.c.bf16 %v4682, %v4682
        %v4939 = vpack.c.bf16 %v4683, %v4683
        %v4940 = vpack.c.bf16 %v4684, %v4684
        %v4941 = vpack.c.bf16 %v4685, %v4685
        %v4942 = vpack.c.bf16 %v4686, %v4686
        %v4943 = vpack.c.bf16 %v4687, %v4687
        %v4944 = vpack.c.bf16 %v4688, %v4688
        %v4945 = vpack.c.bf16 %v4689, %v4689
        %v4946 = vpack.c.bf16 %v4690, %v4690
        %v4947 = vpack.c.bf16 %v4691, %v4691
        %v4948 = vpack.c.bf16 %v4692, %v4692
        %v4949 = vpack.c.bf16 %v4693, %v4693
        %v4950 = vpack.c.bf16 %v4694, %v4694
        %v4951 = vpack.c.bf16 %v4695, %v4695
        %v4952 = vpack.c.bf16 %v4696, %v4696
        %v4953 = vpack.c.bf16 %v4697, %v4697
        %v4954 = vpack.c.bf16 %v4698, %v4698
        %v4955 = vpack.c.bf16 %v4699, %v4699
        %v4956 = vpack.c.bf16 %v4700, %v4700
        %v4957 = vpack.c.bf16 %v4701, %v4701
        %v4958 = vpack.c.bf16 %v4702, %v4702
        %v4959 = vpack.c.bf16 %v4703, %v4703
        %v4960 = vpack.c.bf16 %v4704, %v4704
        %v4961 = vpack.c.bf16 %v4705, %v4705
        %v4962 = vpack.c.bf16 %v4706, %v4706
        %v4963 = vpack.c.bf16 %v4707, %v4707
        %v4964 = vpack.c.bf16 %v4708, %v4708
        %v4965 = vpack.c.bf16 %v4709, %v4709
        %v4966 = vpack.c.bf16 %v4710, %v4710
        %v4967 = vpack.c.bf16 %v4711, %v4711
        %v4968 = vpack.c.bf16 %v4712, %v4712
        %v4969 = vpack.c.bf16 %v4713, %v4713
        %v4970 = vpack.c.bf16 %v4714, %v4714
        %v4971 = vpack.c.bf16 %v4715, %v4715
        %v4972 = vpack.c.bf16 %v4716, %v4716
        %v4973 = vpack.c.bf16 %v4717, %v4717
        %v4974 = vpack.c.bf16 %v4718, %v4718
        %v4975 = vpack.c.bf16 %v4719, %v4719
        %v4976 = vpack.c.bf16 %v4720, %v4720
        %v4977 = vpack.c.bf16 %v4721, %v4721
        %v4978 = vpack.c.bf16 %v4722, %v4722
        %v4979 = vpack.c.bf16 %v4723, %v4723
        %v4980 = vpack.c.bf16 %v4724, %v4724
        %v4981 = vpack.c.bf16 %v4725, %v4725
        %v4982 = vpack.c.bf16 %v4726, %v4726
        %v4983 = vpack.c.bf16 %v4727, %v4727
        %v4984 = vpack.c.bf16 %v4728, %v4728
        %v4985 = vpack.c.bf16 %v4729, %v4729
        %v4986 = vpack.c.bf16 %v4730, %v4730
        %v4987 = vpack.c.bf16 %v4731, %v4731
        %v4988 = vpack.c.bf16 %v4732, %v4732
        %v4989 = vpack.c.bf16 %v4733, %v4733
        %v4990 = vpack.c.bf16 %v4734, %v4734
        %v4991 = vpack.c.bf16 %v4735, %v4735
        %v4992 = vpack.c.bf16 %v4736, %v4736
        %v4993 = vpack.c.bf16 %v4737, %v4737
        %v4994 = vpack.c.bf16 %v4738, %v4738
        %v4995 = vpack.c.bf16 %v4739, %v4739
        %v4996 = vpack.c.bf16 %v4740, %v4740
        %v4997 = vpack.c.bf16 %v4741, %v4741
        %v4998 = vpack.c.bf16 %v4742, %v4742
        %v4999 = vpack.c.bf16 %v4743, %v4743
        %v5000 = vpack.c.bf16 %v4744, %v4744
        %v5001 = vpack.c.bf16 %v4745, %v4745
        %v5002 = vpack.c.bf16 %v4746, %v4746
        %v5003 = vpack.c.bf16 %v4747, %v4747
        %v5004 = vpack.c.bf16 %v4748, %v4748
        %v5005 = vpack.c.bf16 %v4749, %v4749
        %v5006 = vpack.c.bf16 %v4750, %v4750
        %v5007 = vpack.c.bf16 %v4751, %v4751
        %v5008 = vpack.c.bf16 %v4752, %v4752
        %v5009 = vpack.c.bf16 %v4753, %v4753
        %v5010 = vpack.c.bf16 %v4754, %v4754
        %v5011 = vpack.c.bf16 %v4755, %v4755
        %v5012 = vpack.c.bf16 %v4756, %v4756
        %v5013 = vpack.c.bf16 %v4757, %v4757
        %v5014 = vpack.c.bf16 %v4758, %v4758
        %v5015 = vpack.c.bf16 %v4759, %v4759
        %v5016 = vpack.c.bf16 %v4760, %v4760
        %v5017 = vpack.c.bf16 %v4761, %v4761
        %v5018 = vpack.c.bf16 %v4762, %v4762
        %v5019 = vpack.c.bf16 %v4763, %v4763
        %v5020 = vpack.c.bf16 %v4764, %v4764
        %v5021 = vpack.c.bf16 %v4765, %v4765
        %v5022 = vpack.c.bf16 %v4766, %v4766
        %v5023 = vpack.c.bf16 %v4767, %v4767
        %v5024 = vpack.c.bf16 %v4768, %v4768
        %v5025 = vpack.c.bf16 %v4769, %v4769
        %v5026 = vpack.c.bf16 %v4770, %v4770
        %v5027 = vpack.c.bf16 %v4771, %v4771
        %v5028 = vpack.c.bf16 %v4772, %v4772
        %v5029 = vpack.c.bf16 %v4773, %v4773
        %v5030 = vpack.c.bf16 %v4774, %v4774
        %v5031 = vpack.c.bf16 %v4775, %v4775
        %v5032 = vpack.c.bf16 %v4776, %v4776
        %v5033 = vpack.c.bf16 %v4777, %v4777
        %v5034 = vpack.c.bf16 %v4778, %v4778
        %v5035 = vpack.c.bf16 %v4779, %v4779
        %v5036 = vpack.c.bf16 %v4780, %v4780
        %v5037 = vpack.c.bf16 %v4781, %v4781
        %v5038 = vpack.c.bf16 %v4782, %v4782
        %v5039 = vpack.c.bf16 %v4783, %v4783
        %v5040 = vpack.c.bf16 %v4784, %v4784
        %v5041 = vpack.c.bf16 %v4785, %v4785
        %v5042 = vpack.c.bf16 %v4786, %v4786
        %v5043 = vpack.c.bf16 %v4787, %v4787
        %v5044 = vpack.c.bf16 %v4788, %v4788
        %v5045 = vpack.c.bf16 %v4789, %v4789
        %v5046 = vpack.c.bf16 %v4790, %v4790
        %v5047 = vpack.c.bf16 %v4791, %v4791
        %v5048 = vpack.c.bf16 %v4792, %v4792
        %v5049 = vpack.c.bf16 %v4793, %v4793
        %v5050 = vpack.c.bf16 %v4794, %v4794
        %v5051 = vpack.c.bf16 %v4795, %v4795
        %v5052 = vpack.c.bf16 %v4796, %v4796
        %v5053 = vpack.c.bf16 %v4797, %v4797
        %v5054 = vpack.c.bf16 %v4798, %v4798
        %v5055 = vpack.c.bf16 %v4799, %v4799
        %v5056 = vpack.c.bf16 %v4800, %v4800
        %v5057 = vpack.c.bf16 %v4801, %v4801
        %v5058 = vpack.c.bf16 %v4802, %v4802
        %v5059 = vpack.c.bf16 %v4803, %v4803
        %v5060 = vpack.c.bf16 %v4804, %v4804
        %v5061 = vpack.c.bf16 %v4805, %v4805
        %v5062 = vpack.c.bf16 %v4806, %v4806
        %v5063 = vpack.c.bf16 %v4807, %v4807
        %v5064 = vpack.c.bf16 %v4808, %v4808
        %v5065 = vpack.c.bf16 %v4809, %v4809
        %v5066 = vpack.c.bf16 %v4810, %v4810
        %v5067 = vpack.c.bf16 %v4811, %v4811
        %v5068 = vpack.c.bf16 %v4812, %v4812
        %v5069 = vpack.c.bf16 %v4813, %v4813
        %v5070 = vpack.c.bf16 %v4814, %v4814
        %v5071 = vpack.c.bf16 %v4815, %v4815
        %v5072 = vpack.c.bf16 %v4816, %v4816
        %v5073 = vpack.c.bf16 %v4817, %v4817
        %v5074 = vpack.c.bf16 %v4818, %v4818
        %v5075 = vpack.c.bf16 %v4819, %v4819
        %v5076 = vpack.c.bf16 %v4820, %v4820
        %v5077 = vpack.c.bf16 %v4821, %v4821
        %v5078 = vpack.c.bf16 %v4822, %v4822
        %v5079 = vpack.c.bf16 %v4823, %v4823
        %v5080 = vpack.c.bf16 %v4824, %v4824
        %v5081 = vpack.c.bf16 %v4825, %v4825
        %v5082 = vpack.c.bf16 %v4826, %v4826
        %v5083 = vpack.c.bf16 %v4827, %v4827
        %v5084 = vpack.c.bf16 %v4828, %v4828
        %v5085 = vpack.c.bf16 %v4829, %v4829
        %v5086 = vpack.c.bf16 %v4830, %v4830
        %v5087 = vpack.c.bf16 %v4831, %v4831
        %v5088 = vpack.c.bf16 %v4832, %v4832
        %v5089 = vpack.c.bf16 %v4833, %v4833
        %v5090 = vpack.c.bf16 %v4834, %v4834
        %v5091 = vpack.c.bf16 %v4835, %v4835
        %v5092 = vpack.c.bf16 %v4836, %v4836
        %v5093 = vpack.c.bf16 %v4837, %v4837
        %v5094 = vpack.c.bf16 %v4838, %v4838
        %v5095 = vpack.c.bf16 %v4839, %v4839
        %v5096 = vpack.c.bf16 %v4840, %v4840
        %v5097 = vpack.c.bf16 %v4841, %v4841
        %v5098 = vpack.c.bf16 %v4842, %v4842
        %v5099 = vpack.c.bf16 %v4843, %v4843
        %v5100 = vpack.c.bf16 %v4844, %v4844
        %v5101 = vpack.c.bf16 %v4845, %v4845
        %v5102 = vpack.c.bf16 %v4846, %v4846
        %v5103 = vpack.c.bf16 %v4847, %v4847
        %v5104 = vpack.c.bf16 %v4848, %v4848
        %v5105 = vpack.c.bf16 %v4849, %v4849
        %v5106 = vpack.c.bf16 %v4850, %v4850
        %v5107 = vpack.c.bf16 %v4851, %v4851
        %v5108 = vpack.c.bf16 %v4852, %v4852
        %v5109 = vpack.c.bf16 %v4853, %v4853
        %v5110 = vpack.c.bf16 %v4854, %v4854
        %v5111 = vpack.c.bf16 %v4855, %v4855
        %v5112 = vpack.c.bf16 %v4856, %v4856
        %v5113 = vpack.c.bf16 %v4857, %v4857
        %v5114 = vpack.c.bf16 %v4858, %v4858
        %v5115 = vpack.c.bf16 %v4859, %v4859
        %v5116 = vpack.c.bf16 %v4860, %v4860
        %v5117 = vpack.c.bf16 %v4861, %v4861
        %v5118 = vpack.c.bf16 %v4862, %v4862
        %v5119 = vpack.c.bf16 %v4863, %v4863
        %v5120 = vpack.c.bf16 %v4864, %v4864
        %v5121 = vpack.c.bf16 %v4865, %v4865
        %v5122 = vpack.c.bf16 %v4866, %v4866
        %v5123 = vpack.c.bf16 %v4867, %v4867
        %v5124 = vpack.c.bf16 %v4868, %v4868
        %v5125 = vpack.c.bf16 %v4869, %v4869
        %v5126 = vpack.c.bf16 %v4870, %v4870
        %v5127 = vpack.c.bf16 %v4871, %v4871
        %v5128 = vpack.c.bf16 %v4872, %v4872
        %v5129 = vpack.c.bf16 %v4873, %v4873
        %v5130 = vpack.c.bf16 %v4874, %v4874
        %v5131 = vpack.c.bf16 %v4875, %v4875
        %v5132 = vpack.c.bf16 %v4876, %v4876
        %v5133 = vpack.c.bf16 %v4877, %v4877
        %v5134 = vpack.c.bf16 %v4878, %v4878
        %v5135 = vpack.c.bf16 %v4879, %v4879
        %v5136 = vpack.c.bf16 %v4880, %v4880
        %v5137 = vpack.c.bf16 %v4881, %v4881
        %v5138 = vpack.c.bf16 %v4882, %v4882
        %v5139 = vpack.c.bf16 %v4883, %v4883
        %v5140 = vpack.c.bf16 %v4884, %v4884
        %v5141 = vpack.c.bf16 %v4885, %v4885
        %v5142 = vpack.c.bf16 %v4886, %v4886
        %v5143 = vpack.c.bf16 %v4887, %v4887
        %v5144 = vpack.c.bf16 %v4888, %v4888
        %v5145 = vpack.c.bf16 %v4889, %v4889
        %v5146 = vpack.c.bf16 %v4890, %v4890
        %v5147 = vpack.c.bf16 %v4891, %v4891
        %v5148 = vpack.c.bf16 %v4892, %v4892
        %v5149 = vpack.c.bf16 %v4893, %v4893
        %v5150 = vpack.c.bf16 %v4894, %v4894
        %v5151 = vpack.c.bf16 %v4895, %v4895
        %v5152 = vpack.c.bf16 %v4896, %v4896
        %v5153 = vpack.c.bf16 %v4897, %v4897
        %v5154 = vpack.c.bf16 %v4898, %v4898
        %v5155 = vpack.c.bf16 %v4899, %v4899
        %v5156 = vpack.c.bf16 %v4900, %v4900
        %v5157 = vpack.c.bf16 %v4901, %v4901
        %v5158 = vpack.c.bf16 %v4902, %v4902
        %v5159 = vpack.c.bf16 %v4903, %v4903
        %v5160 = vpack.c.bf16 %v4904, %v4904
        %v5161 = vpack.c.bf16 %v415, %v415
        %v5162 = vpack.c.bf16 %v419, %v419
        %v5163 = vunpack.c.l.bf16 %v5161
        %v5164 = vunpack.c.l.bf16 %v5162
        %v5165 = vsub.f32 %v415, %v5163
        %v5166 = vsub.f32 %v419, %v5164
        %v5167 = vpack.c.bf16 %v5165, %v5165
        %v5168 = vpack.c.bf16 %v5166, %v5166
        %v5171 = vrot.slane %v5161, 3
        %v5172 = vrot.slane %v5162, 3
        %vm5173 = vcmask 1040384
        %v5176 = vsel %vm5173, %v5161, %v5171
        %vm5178 = vcmask 1041409
        %v5179 = vsel %vm5178, %v5161, %v5171
        %v5181 = vrot.slane %v5179, 1
        %vm5182 = vcmask 1042434
        %v5183 = vsel %vm5182, %v5161, %v5171
        %v5185 = vrot.slane %v5183, 2
        %vm5186 = vcmask 1043459
        %v5187 = vsel %vm5186, %v5161, %v5171
        %v5189 = vrot.slane %v5187, 3
        %v5192 = vsel %vm5173, %v5162, %v5172
        %v5194 = vsel %vm5178, %v5162, %v5172
        %v5196 = vrot.slane %v5194, 1
        %v5197 = vsel %vm5182, %v5162, %v5172
        %v5199 = vrot.slane %v5197, 2
        %v5200 = vsel %vm5186, %v5162, %v5172
        %v5202 = vrot.slane %v5200, 3
        %v5203 = vunpack.i.l.s16 %v5176
        %v5204 = vunpack.i.h.s16 %v5176
        %v5205 = vunpack.i.l.s16 %v5181
        %v5206 = vunpack.i.h.s16 %v5181
        %v5207 = vunpack.i.l.s16 %v5185
        %v5208 = vunpack.i.h.s16 %v5185
        %v5209 = vunpack.i.l.s16 %v5189
        %v5210 = vunpack.i.h.s16 %v5189
        %v5211 = vunpack.i.l.s16 %v5192
        %v5212 = vunpack.i.h.s16 %v5192
        %v5213 = vunpack.i.l.s16 %v5196
        %v5214 = vunpack.i.h.s16 %v5196
        %v5215 = vunpack.i.l.s16 %v5199
        %v5216 = vunpack.i.h.s16 %v5199
        %v5217 = vunpack.i.l.s16 %v5202
        %v5218 = vunpack.i.h.s16 %v5202
        %v5221 = vrot.slane %v5167, 3
        %v5222 = vrot.slane %v5168, 3
        %v5225 = vsel %vm5173, %v5167, %v5221
        %v5227 = vsel %vm5178, %v5167, %v5221
        %v5229 = vrot.slane %v5227, 1
        %v5230 = vsel %vm5182, %v5167, %v5221
        %v5232 = vrot.slane %v5230, 2
        %v5233 = vsel %vm5186, %v5167, %v5221
        %v5235 = vrot.slane %v5233, 3
        %v5238 = vsel %vm5173, %v5168, %v5222
        %v5240 = vsel %vm5178, %v5168, %v5222
        %v5242 = vrot.slane %v5240, 1
        %v5243 = vsel %vm5182, %v5168, %v5222
        %v5245 = vrot.slane %v5243, 2
        %v5246 = vsel %vm5186, %v5168, %v5222
        %v5248 = vrot.slane %v5246, 3
        %v5249 = vunpack.i.l.s16 %v5225
        %v5250 = vunpack.i.h.s16 %v5225
        %v5251 = vunpack.i.l.s16 %v5229
        %v5252 = vunpack.i.h.s16 %v5229
        %v5253 = vunpack.i.l.s16 %v5232
        %v5254 = vunpack.i.h.s16 %v5232
        %v5255 = vunpack.i.l.s16 %v5235
        %v5256 = vunpack.i.h.s16 %v5235
        %v5257 = vunpack.i.l.s16 %v5238
        %v5258 = vunpack.i.h.s16 %v5238
        %v5259 = vunpack.i.l.s16 %v5242
        %v5260 = vunpack.i.h.s16 %v5242
        %v5261 = vunpack.i.l.s16 %v5245
        %v5262 = vunpack.i.h.s16 %v5245
        %v5263 = vunpack.i.l.s16 %v5248
        %v5264 = vunpack.i.h.s16 %v5248
        %v5265 = vpack.i.b16 %v5249, %v5249
        %v5266 = vperm.slane %v5265, 0
        %v5284 = vunpack.c.l.b16 %v4905
        %v5285 = vunpack.c.l.b16 %v4906
        %v5286 = vunpack.c.l.b16 %v4907
        %v5287 = vunpack.c.l.b16 %v4908
        %v5288 = vunpack.c.l.b16 %v4909
        %v5289 = vunpack.c.l.b16 %v4910
        %v5290 = vunpack.c.l.b16 %v4911
        %v5291 = vunpack.c.l.b16 %v4912
        %v5292 = vunpack.c.l.b16 %v4913
        %v5293 = vunpack.c.l.b16 %v4914
        %v5294 = vunpack.c.l.b16 %v4915
        %v5295 = vunpack.c.l.b16 %v4916
        %v5296 = vunpack.c.l.b16 %v4917
        %v5297 = vunpack.c.l.b16 %v4918
        %v5298 = vunpack.c.l.b16 %v4919
        %v5299 = vunpack.c.l.b16 %v4920
        %v5300 = vpack.c.b16 %v5285, %v5284
        %v5301 = vpack.c.b16 %v5287, %v5286
        %v5302 = vpack.c.b16 %v5289, %v5288
        %v5303 = vpack.c.b16 %v5291, %v5290
        %v5304 = vpack.c.b16 %v5293, %v5292
        %v5305 = vpack.c.b16 %v5295, %v5294
        %v5306 = vpack.c.b16 %v5297, %v5296
        %v5307 = vpack.c.b16 %v5299, %v5298
        %5316 = vmatpush.bf16.msra.mxu0 %v5307
        %5317 = vmatpush.bf16.msra.mxu0 %v5306
        %5318 = vmatpush.bf16.msra.mxu0 %v5305
        %5319 = vmatpush.bf16.msra.mxu0 %v5304
        %5320 = vmatpush.bf16.msra.mxu0 %v5303
        %5321 = vmatpush.bf16.msra.mxu0 %v5302
        %5322 = vmatpush.bf16.msra.mxu0 %v5301
        %5323 = vmatpush.bf16.msra.mxu0 %v5300
        %5324 = vmatmul.bf16.gmra.mxu0 %v5266
        %v5325 = vpop.f32.mrf.mxu0
        %v5326 = vadd.f32 0.0, %v5325
        %v5327 = vpop.f32.mrf.mxu0
        %5328 = vdwg.mxu0
        %v5329 = vpack.i.b16 %v5250, %v5250
        %v5330 = vperm.slane %v5329, 0
        %v5348 = vunpack.c.l.b16 %v4921
        %v5349 = vunpack.c.l.b16 %v4922
        %v5350 = vunpack.c.l.b16 %v4923
        %v5351 = vunpack.c.l.b16 %v4924
        %v5352 = vunpack.c.l.b16 %v4925
        %v5353 = vunpack.c.l.b16 %v4926
        %v5354 = vunpack.c.l.b16 %v4927
        %v5355 = vunpack.c.l.b16 %v4928
        %v5356 = vunpack.c.l.b16 %v4929
        %v5357 = vunpack.c.l.b16 %v4930
        %v5358 = vunpack.c.l.b16 %v4931
        %v5359 = vunpack.c.l.b16 %v4932
        %v5360 = vunpack.c.l.b16 %v4933
        %v5361 = vunpack.c.l.b16 %v4934
        %v5362 = vunpack.c.l.b16 %v4935
        %v5363 = vunpack.c.l.b16 %v4936
        %v5364 = vpack.c.b16 %v5349, %v5348
        %v5365 = vpack.c.b16 %v5351, %v5350
        %v5366 = vpack.c.b16 %v5353, %v5352
        %v5367 = vpack.c.b16 %v5355, %v5354
        %v5368 = vpack.c.b16 %v5357, %v5356
        %v5369 = vpack.c.b16 %v5359, %v5358
        %v5370 = vpack.c.b16 %v5361, %v5360
        %v5371 = vpack.c.b16 %v5363, %v5362
        %5380 = vmatpush.bf16.msra.mxu0 %v5371
        %5381 = vmatpush.bf16.msra.mxu0 %v5370
        %5382 = vmatpush.bf16.msra.mxu0 %v5369
        %5383 = vmatpush.bf16.msra.mxu0 %v5368
        %5384 = vmatpush.bf16.msra.mxu0 %v5367
        %5385 = vmatpush.bf16.msra.mxu0 %v5366
        %5386 = vmatpush.bf16.msra.mxu0 %v5365
        %5387 = vmatpush.bf16.msra.mxu0 %v5364
        %5388 = vmatmul.bf16.gmra.mxu0 %v5330
        %v5389 = vpop.f32.mrf.mxu0
        %v5390 = vadd.f32 0.0, %v5389
        %v5391 = vpop.f32.mrf.mxu0
        %5392 = vdwg.mxu0
        %v5393 = vpack.i.b16 %v5251, %v5251
        %v5394 = vperm.slane %v5393, 0
        %v5412 = vunpack.c.l.b16 %v4937
        %v5413 = vunpack.c.l.b16 %v4938
        %v5414 = vunpack.c.l.b16 %v4939
        %v5415 = vunpack.c.l.b16 %v4940
        %v5416 = vunpack.c.l.b16 %v4941
        %v5417 = vunpack.c.l.b16 %v4942
        %v5418 = vunpack.c.l.b16 %v4943
        %v5419 = vunpack.c.l.b16 %v4944
        %v5420 = vunpack.c.l.b16 %v4945
        %v5421 = vunpack.c.l.b16 %v4946
        %v5422 = vunpack.c.l.b16 %v4947
        %v5423 = vunpack.c.l.b16 %v4948
        %v5424 = vunpack.c.l.b16 %v4949
        %v5425 = vunpack.c.l.b16 %v4950
        %v5426 = vunpack.c.l.b16 %v4951
        %v5427 = vunpack.c.l.b16 %v4952
        %v5428 = vpack.c.b16 %v5413, %v5412
        %v5429 = vpack.c.b16 %v5415, %v5414
        %v5430 = vpack.c.b16 %v5417, %v5416
        %v5431 = vpack.c.b16 %v5419, %v5418
        %v5432 = vpack.c.b16 %v5421, %v5420
        %v5433 = vpack.c.b16 %v5423, %v5422
        %v5434 = vpack.c.b16 %v5425, %v5424
        %v5435 = vpack.c.b16 %v5427, %v5426
        %5444 = vmatpush.bf16.msra.mxu0 %v5435
        %5445 = vmatpush.bf16.msra.mxu0 %v5434
        %5446 = vmatpush.bf16.msra.mxu0 %v5433
        %5447 = vmatpush.bf16.msra.mxu0 %v5432
        %5448 = vmatpush.bf16.msra.mxu0 %v5431
        %5449 = vmatpush.bf16.msra.mxu0 %v5430
        %5450 = vmatpush.bf16.msra.mxu0 %v5429
        %5451 = vmatpush.bf16.msra.mxu0 %v5428
        %5452 = vmatmul.bf16.gmra.mxu0 %v5394
        %v5453 = vpop.f32.mrf.mxu0
        %v5454 = vadd.f32 0.0, %v5453
        %v5455 = vpop.f32.mrf.mxu0
        %5456 = vdwg.mxu0
        %v5457 = vpack.i.b16 %v5252, %v5252
        %v5458 = vperm.slane %v5457, 0
        %v5476 = vunpack.c.l.b16 %v4953
        %v5477 = vunpack.c.l.b16 %v4954
        %v5478 = vunpack.c.l.b16 %v4955
        %v5479 = vunpack.c.l.b16 %v4956
        %v5480 = vunpack.c.l.b16 %v4957
        %v5481 = vunpack.c.l.b16 %v4958
        %v5482 = vunpack.c.l.b16 %v4959
        %v5483 = vunpack.c.l.b16 %v4960
        %v5484 = vunpack.c.l.b16 %v4961
        %v5485 = vunpack.c.l.b16 %v4962
        %v5486 = vunpack.c.l.b16 %v4963
        %v5487 = vunpack.c.l.b16 %v4964
        %v5488 = vunpack.c.l.b16 %v4965
        %v5489 = vunpack.c.l.b16 %v4966
        %v5490 = vunpack.c.l.b16 %v4967
        %v5491 = vunpack.c.l.b16 %v4968
        %v5492 = vpack.c.b16 %v5477, %v5476
        %v5493 = vpack.c.b16 %v5479, %v5478
        %v5494 = vpack.c.b16 %v5481, %v5480
        %v5495 = vpack.c.b16 %v5483, %v5482
        %v5496 = vpack.c.b16 %v5485, %v5484
        %v5497 = vpack.c.b16 %v5487, %v5486
        %v5498 = vpack.c.b16 %v5489, %v5488
        %v5499 = vpack.c.b16 %v5491, %v5490
        %5508 = vmatpush.bf16.msra.mxu0 %v5499
        %5509 = vmatpush.bf16.msra.mxu0 %v5498
        %5510 = vmatpush.bf16.msra.mxu0 %v5497
        %5511 = vmatpush.bf16.msra.mxu0 %v5496
        %5512 = vmatpush.bf16.msra.mxu0 %v5495
        %5513 = vmatpush.bf16.msra.mxu0 %v5494
        %5514 = vmatpush.bf16.msra.mxu0 %v5493
        %5515 = vmatpush.bf16.msra.mxu0 %v5492
        %5516 = vmatmul.bf16.gmra.mxu0 %v5458
        %v5517 = vpop.f32.mrf.mxu0
        %v5518 = vadd.f32 0.0, %v5517
        %v5519 = vpop.f32.mrf.mxu0
        %5520 = vdwg.mxu0
        %v5521 = vpack.i.b16 %v5253, %v5253
        %v5522 = vperm.slane %v5521, 0
        %v5540 = vunpack.c.l.b16 %v4969
        %v5541 = vunpack.c.l.b16 %v4970
        %v5542 = vunpack.c.l.b16 %v4971
        %v5543 = vunpack.c.l.b16 %v4972
        %v5544 = vunpack.c.l.b16 %v4973
        %v5545 = vunpack.c.l.b16 %v4974
        %v5546 = vunpack.c.l.b16 %v4975
        %v5547 = vunpack.c.l.b16 %v4976
        %v5548 = vunpack.c.l.b16 %v4977
        %v5549 = vunpack.c.l.b16 %v4978
        %v5550 = vunpack.c.l.b16 %v4979
        %v5551 = vunpack.c.l.b16 %v4980
        %v5552 = vunpack.c.l.b16 %v4981
        %v5553 = vunpack.c.l.b16 %v4982
        %v5554 = vunpack.c.l.b16 %v4983
        %v5555 = vunpack.c.l.b16 %v4984
        %v5556 = vpack.c.b16 %v5541, %v5540
        %v5557 = vpack.c.b16 %v5543, %v5542
        %v5558 = vpack.c.b16 %v5545, %v5544
        %v5559 = vpack.c.b16 %v5547, %v5546
        %v5560 = vpack.c.b16 %v5549, %v5548
        %v5561 = vpack.c.b16 %v5551, %v5550
        %v5562 = vpack.c.b16 %v5553, %v5552
        %v5563 = vpack.c.b16 %v5555, %v5554
        %5572 = vmatpush.bf16.msra.mxu0 %v5563
        %5573 = vmatpush.bf16.msra.mxu0 %v5562
        %5574 = vmatpush.bf16.msra.mxu0 %v5561
        %5575 = vmatpush.bf16.msra.mxu0 %v5560
        %5576 = vmatpush.bf16.msra.mxu0 %v5559
        %5577 = vmatpush.bf16.msra.mxu0 %v5558
        %5578 = vmatpush.bf16.msra.mxu0 %v5557
        %5579 = vmatpush.bf16.msra.mxu0 %v5556
        %5580 = vmatmul.bf16.gmra.mxu0 %v5522
        %v5581 = vpop.f32.mrf.mxu0
        %v5582 = vadd.f32 0.0, %v5581
        %v5583 = vpop.f32.mrf.mxu0
        %5584 = vdwg.mxu0
        %v5585 = vpack.i.b16 %v5254, %v5254
        %v5586 = vperm.slane %v5585, 0
        %v5604 = vunpack.c.l.b16 %v4985
        %v5605 = vunpack.c.l.b16 %v4986
        %v5606 = vunpack.c.l.b16 %v4987
        %v5607 = vunpack.c.l.b16 %v4988
        %v5608 = vunpack.c.l.b16 %v4989
        %v5609 = vunpack.c.l.b16 %v4990
        %v5610 = vunpack.c.l.b16 %v4991
        %v5611 = vunpack.c.l.b16 %v4992
        %v5612 = vunpack.c.l.b16 %v4993
        %v5613 = vunpack.c.l.b16 %v4994
        %v5614 = vunpack.c.l.b16 %v4995
        %v5615 = vunpack.c.l.b16 %v4996
        %v5616 = vunpack.c.l.b16 %v4997
        %v5617 = vunpack.c.l.b16 %v4998
        %v5618 = vunpack.c.l.b16 %v4999
        %v5619 = vunpack.c.l.b16 %v5000
        %v5620 = vpack.c.b16 %v5605, %v5604
        %v5621 = vpack.c.b16 %v5607, %v5606
        %v5622 = vpack.c.b16 %v5609, %v5608
        %v5623 = vpack.c.b16 %v5611, %v5610
        %v5624 = vpack.c.b16 %v5613, %v5612
        %v5625 = vpack.c.b16 %v5615, %v5614
        %v5626 = vpack.c.b16 %v5617, %v5616
        %v5627 = vpack.c.b16 %v5619, %v5618
        %5636 = vmatpush.bf16.msra.mxu0 %v5627
        %5637 = vmatpush.bf16.msra.mxu0 %v5626
        %5638 = vmatpush.bf16.msra.mxu0 %v5625
        %5639 = vmatpush.bf16.msra.mxu0 %v5624
        %5640 = vmatpush.bf16.msra.mxu0 %v5623
        %5641 = vmatpush.bf16.msra.mxu0 %v5622
        %5642 = vmatpush.bf16.msra.mxu0 %v5621
        %5643 = vmatpush.bf16.msra.mxu0 %v5620
        %5644 = vmatmul.bf16.gmra.mxu0 %v5586
        %v5645 = vpop.f32.mrf.mxu0
        %v5646 = vadd.f32 0.0, %v5645
        %v5647 = vpop.f32.mrf.mxu0
        %5648 = vdwg.mxu0
        %v5649 = vpack.i.b16 %v5255, %v5255
        %v5650 = vperm.slane %v5649, 0
        %v5668 = vunpack.c.l.b16 %v5001
        %v5669 = vunpack.c.l.b16 %v5002
        %v5670 = vunpack.c.l.b16 %v5003
        %v5671 = vunpack.c.l.b16 %v5004
        %v5672 = vunpack.c.l.b16 %v5005
        %v5673 = vunpack.c.l.b16 %v5006
        %v5674 = vunpack.c.l.b16 %v5007
        %v5675 = vunpack.c.l.b16 %v5008
        %v5676 = vunpack.c.l.b16 %v5009
        %v5677 = vunpack.c.l.b16 %v5010
        %v5678 = vunpack.c.l.b16 %v5011
        %v5679 = vunpack.c.l.b16 %v5012
        %v5680 = vunpack.c.l.b16 %v5013
        %v5681 = vunpack.c.l.b16 %v5014
        %v5682 = vunpack.c.l.b16 %v5015
        %v5683 = vunpack.c.l.b16 %v5016
        %v5684 = vpack.c.b16 %v5669, %v5668
        %v5685 = vpack.c.b16 %v5671, %v5670
        %v5686 = vpack.c.b16 %v5673, %v5672
        %v5687 = vpack.c.b16 %v5675, %v5674
        %v5688 = vpack.c.b16 %v5677, %v5676
        %v5689 = vpack.c.b16 %v5679, %v5678
        %v5690 = vpack.c.b16 %v5681, %v5680
        %v5691 = vpack.c.b16 %v5683, %v5682
        %5700 = vmatpush.bf16.msra.mxu0 %v5691
        %5701 = vmatpush.bf16.msra.mxu0 %v5690
        %5702 = vmatpush.bf16.msra.mxu0 %v5689
        %5703 = vmatpush.bf16.msra.mxu0 %v5688
        %5704 = vmatpush.bf16.msra.mxu0 %v5687
        %5705 = vmatpush.bf16.msra.mxu0 %v5686
        %5706 = vmatpush.bf16.msra.mxu0 %v5685
        %5707 = vmatpush.bf16.msra.mxu0 %v5684
        %5708 = vmatmul.bf16.gmra.mxu0 %v5650
        %v5709 = vpop.f32.mrf.mxu0
        %v5710 = vadd.f32 0.0, %v5709
        %v5711 = vpop.f32.mrf.mxu0
        %5712 = vdwg.mxu0
        %v5713 = vpack.i.b16 %v5256, %v5256
        %v5714 = vperm.slane %v5713, 0
        %v5732 = vunpack.c.l.b16 %v5017
        %v5733 = vunpack.c.l.b16 %v5018
        %v5734 = vunpack.c.l.b16 %v5019
        %v5735 = vunpack.c.l.b16 %v5020
        %v5736 = vunpack.c.l.b16 %v5021
        %v5737 = vunpack.c.l.b16 %v5022
        %v5738 = vunpack.c.l.b16 %v5023
        %v5739 = vunpack.c.l.b16 %v5024
        %v5740 = vunpack.c.l.b16 %v5025
        %v5741 = vunpack.c.l.b16 %v5026
        %v5742 = vunpack.c.l.b16 %v5027
        %v5743 = vunpack.c.l.b16 %v5028
        %v5744 = vunpack.c.l.b16 %v5029
        %v5745 = vunpack.c.l.b16 %v5030
        %v5746 = vunpack.c.l.b16 %v5031
        %v5747 = vunpack.c.l.b16 %v5032
        %v5748 = vpack.c.b16 %v5733, %v5732
        %v5749 = vpack.c.b16 %v5735, %v5734
        %v5750 = vpack.c.b16 %v5737, %v5736
        %v5751 = vpack.c.b16 %v5739, %v5738
        %v5752 = vpack.c.b16 %v5741, %v5740
        %v5753 = vpack.c.b16 %v5743, %v5742
        %v5754 = vpack.c.b16 %v5745, %v5744
        %v5755 = vpack.c.b16 %v5747, %v5746
        %5764 = vmatpush.bf16.msra.mxu0 %v5755
        %5765 = vmatpush.bf16.msra.mxu0 %v5754
        %5766 = vmatpush.bf16.msra.mxu0 %v5753
        %5767 = vmatpush.bf16.msra.mxu0 %v5752
        %5768 = vmatpush.bf16.msra.mxu0 %v5751
        %5769 = vmatpush.bf16.msra.mxu0 %v5750
        %5770 = vmatpush.bf16.msra.mxu0 %v5749
        %5771 = vmatpush.bf16.msra.mxu0 %v5748
        %5772 = vmatmul.bf16.gmra.mxu0 %v5714
        %v5773 = vpop.f32.mrf.mxu0
        %v5774 = vadd.f32 0.0, %v5773
        %v5775 = vpop.f32.mrf.mxu0
        %5776 = vdwg.mxu0
        %v5777 = vpack.i.b16 %v5257, %v5257
        %v5778 = vperm.slane %v5777, 0
        %v5796 = vunpack.c.l.b16 %v5033
        %v5797 = vunpack.c.l.b16 %v5034
        %v5798 = vunpack.c.l.b16 %v5035
        %v5799 = vunpack.c.l.b16 %v5036
        %v5800 = vunpack.c.l.b16 %v5037
        %v5801 = vunpack.c.l.b16 %v5038
        %v5802 = vunpack.c.l.b16 %v5039
        %v5803 = vunpack.c.l.b16 %v5040
        %v5804 = vunpack.c.l.b16 %v5041
        %v5805 = vunpack.c.l.b16 %v5042
        %v5806 = vunpack.c.l.b16 %v5043
        %v5807 = vunpack.c.l.b16 %v5044
        %v5808 = vunpack.c.l.b16 %v5045
        %v5809 = vunpack.c.l.b16 %v5046
        %v5810 = vunpack.c.l.b16 %v5047
        %v5811 = vunpack.c.l.b16 %v5048
        %v5812 = vpack.c.b16 %v5797, %v5796
        %v5813 = vpack.c.b16 %v5799, %v5798
        %v5814 = vpack.c.b16 %v5801, %v5800
        %v5815 = vpack.c.b16 %v5803, %v5802
        %v5816 = vpack.c.b16 %v5805, %v5804
        %v5817 = vpack.c.b16 %v5807, %v5806
        %v5818 = vpack.c.b16 %v5809, %v5808
        %v5819 = vpack.c.b16 %v5811, %v5810
        %5828 = vmatpush.bf16.msra.mxu0 %v5819
        %5829 = vmatpush.bf16.msra.mxu0 %v5818
        %5830 = vmatpush.bf16.msra.mxu0 %v5817
        %5831 = vmatpush.bf16.msra.mxu0 %v5816
        %5832 = vmatpush.bf16.msra.mxu0 %v5815
        %5833 = vmatpush.bf16.msra.mxu0 %v5814
        %5834 = vmatpush.bf16.msra.mxu0 %v5813
        %5835 = vmatpush.bf16.msra.mxu0 %v5812
        %5836 = vmatmul.bf16.gmra.mxu0 %v5778
        %v5837 = vpop.f32.mrf.mxu0
        %v5838 = vadd.f32 0.0, %v5837
        %v5839 = vpop.f32.mrf.mxu0
        %5840 = vdwg.mxu0
        %v5841 = vpack.i.b16 %v5258, %v5258
        %v5842 = vperm.slane %v5841, 0
        %v5860 = vunpack.c.l.b16 %v5049
        %v5861 = vunpack.c.l.b16 %v5050
        %v5862 = vunpack.c.l.b16 %v5051
        %v5863 = vunpack.c.l.b16 %v5052
        %v5864 = vunpack.c.l.b16 %v5053
        %v5865 = vunpack.c.l.b16 %v5054
        %v5866 = vunpack.c.l.b16 %v5055
        %v5867 = vunpack.c.l.b16 %v5056
        %v5868 = vunpack.c.l.b16 %v5057
        %v5869 = vunpack.c.l.b16 %v5058
        %v5870 = vunpack.c.l.b16 %v5059
        %v5871 = vunpack.c.l.b16 %v5060
        %v5872 = vunpack.c.l.b16 %v5061
        %v5873 = vunpack.c.l.b16 %v5062
        %v5874 = vunpack.c.l.b16 %v5063
        %v5875 = vunpack.c.l.b16 %v5064
        %v5876 = vpack.c.b16 %v5861, %v5860
        %v5877 = vpack.c.b16 %v5863, %v5862
        %v5878 = vpack.c.b16 %v5865, %v5864
        %v5879 = vpack.c.b16 %v5867, %v5866
        %v5880 = vpack.c.b16 %v5869, %v5868
        %v5881 = vpack.c.b16 %v5871, %v5870
        %v5882 = vpack.c.b16 %v5873, %v5872
        %v5883 = vpack.c.b16 %v5875, %v5874
        %5892 = vmatpush.bf16.msra.mxu0 %v5883
        %5893 = vmatpush.bf16.msra.mxu0 %v5882
        %5894 = vmatpush.bf16.msra.mxu0 %v5881
        %5895 = vmatpush.bf16.msra.mxu0 %v5880
        %5896 = vmatpush.bf16.msra.mxu0 %v5879
        %5897 = vmatpush.bf16.msra.mxu0 %v5878
        %5898 = vmatpush.bf16.msra.mxu0 %v5877
        %5899 = vmatpush.bf16.msra.mxu0 %v5876
        %5900 = vmatmul.bf16.gmra.mxu0 %v5842
        %v5901 = vpop.f32.mrf.mxu0
        %v5902 = vadd.f32 0.0, %v5901
        %v5903 = vpop.f32.mrf.mxu0
        %5904 = vdwg.mxu0
        %v5905 = vpack.i.b16 %v5259, %v5259
        %v5906 = vperm.slane %v5905, 0
        %v5924 = vunpack.c.l.b16 %v5065
        %v5925 = vunpack.c.l.b16 %v5066
        %v5926 = vunpack.c.l.b16 %v5067
        %v5927 = vunpack.c.l.b16 %v5068
        %v5928 = vunpack.c.l.b16 %v5069
        %v5929 = vunpack.c.l.b16 %v5070
        %v5930 = vunpack.c.l.b16 %v5071
        %v5931 = vunpack.c.l.b16 %v5072
        %v5932 = vunpack.c.l.b16 %v5073
        %v5933 = vunpack.c.l.b16 %v5074
        %v5934 = vunpack.c.l.b16 %v5075
        %v5935 = vunpack.c.l.b16 %v5076
        %v5936 = vunpack.c.l.b16 %v5077
        %v5937 = vunpack.c.l.b16 %v5078
        %v5938 = vunpack.c.l.b16 %v5079
        %v5939 = vunpack.c.l.b16 %v5080
        %v5940 = vpack.c.b16 %v5925, %v5924
        %v5941 = vpack.c.b16 %v5927, %v5926
        %v5942 = vpack.c.b16 %v5929, %v5928
        %v5943 = vpack.c.b16 %v5931, %v5930
        %v5944 = vpack.c.b16 %v5933, %v5932
        %v5945 = vpack.c.b16 %v5935, %v5934
        %v5946 = vpack.c.b16 %v5937, %v5936
        %v5947 = vpack.c.b16 %v5939, %v5938
        %5956 = vmatpush.bf16.msra.mxu0 %v5947
        %5957 = vmatpush.bf16.msra.mxu0 %v5946
        %5958 = vmatpush.bf16.msra.mxu0 %v5945
        %5959 = vmatpush.bf16.msra.mxu0 %v5944
        %5960 = vmatpush.bf16.msra.mxu0 %v5943
        %5961 = vmatpush.bf16.msra.mxu0 %v5942
        %5962 = vmatpush.bf16.msra.mxu0 %v5941
        %5963 = vmatpush.bf16.msra.mxu0 %v5940
        %5964 = vmatmul.bf16.gmra.mxu0 %v5906
        %v5965 = vpop.f32.mrf.mxu0
        %v5966 = vadd.f32 0.0, %v5965
        %v5967 = vpop.f32.mrf.mxu0
        %5968 = vdwg.mxu0
        %v5969 = vpack.i.b16 %v5260, %v5260
        %v5970 = vperm.slane %v5969, 0
        %v5988 = vunpack.c.l.b16 %v5081
        %v5989 = vunpack.c.l.b16 %v5082
        %v5990 = vunpack.c.l.b16 %v5083
        %v5991 = vunpack.c.l.b16 %v5084
        %v5992 = vunpack.c.l.b16 %v5085
        %v5993 = vunpack.c.l.b16 %v5086
        %v5994 = vunpack.c.l.b16 %v5087
        %v5995 = vunpack.c.l.b16 %v5088
        %v5996 = vunpack.c.l.b16 %v5089
        %v5997 = vunpack.c.l.b16 %v5090
        %v5998 = vunpack.c.l.b16 %v5091
        %v5999 = vunpack.c.l.b16 %v5092
        %v6000 = vunpack.c.l.b16 %v5093
        %v6001 = vunpack.c.l.b16 %v5094
        %v6002 = vunpack.c.l.b16 %v5095
        %v6003 = vunpack.c.l.b16 %v5096
        %v6004 = vpack.c.b16 %v5989, %v5988
        %v6005 = vpack.c.b16 %v5991, %v5990
        %v6006 = vpack.c.b16 %v5993, %v5992
        %v6007 = vpack.c.b16 %v5995, %v5994
        %v6008 = vpack.c.b16 %v5997, %v5996
        %v6009 = vpack.c.b16 %v5999, %v5998
        %v6010 = vpack.c.b16 %v6001, %v6000
        %v6011 = vpack.c.b16 %v6003, %v6002
        %6020 = vmatpush.bf16.msra.mxu0 %v6011
        %6021 = vmatpush.bf16.msra.mxu0 %v6010
        %6022 = vmatpush.bf16.msra.mxu0 %v6009
        %6023 = vmatpush.bf16.msra.mxu0 %v6008
        %6024 = vmatpush.bf16.msra.mxu0 %v6007
        %6025 = vmatpush.bf16.msra.mxu0 %v6006
        %6026 = vmatpush.bf16.msra.mxu0 %v6005
        %6027 = vmatpush.bf16.msra.mxu0 %v6004
        %6028 = vmatmul.bf16.gmra.mxu0 %v5970
        %v6029 = vpop.f32.mrf.mxu0
        %v6030 = vadd.f32 0.0, %v6029
        %v6031 = vpop.f32.mrf.mxu0
        %6032 = vdwg.mxu0
        %v6033 = vpack.i.b16 %v5261, %v5261
        %v6034 = vperm.slane %v6033, 0
        %v6052 = vunpack.c.l.b16 %v5097
        %v6053 = vunpack.c.l.b16 %v5098
        %v6054 = vunpack.c.l.b16 %v5099
        %v6055 = vunpack.c.l.b16 %v5100
        %v6056 = vunpack.c.l.b16 %v5101
        %v6057 = vunpack.c.l.b16 %v5102
        %v6058 = vunpack.c.l.b16 %v5103
        %v6059 = vunpack.c.l.b16 %v5104
        %v6060 = vunpack.c.l.b16 %v5105
        %v6061 = vunpack.c.l.b16 %v5106
        %v6062 = vunpack.c.l.b16 %v5107
        %v6063 = vunpack.c.l.b16 %v5108
        %v6064 = vunpack.c.l.b16 %v5109
        %v6065 = vunpack.c.l.b16 %v5110
        %v6066 = vunpack.c.l.b16 %v5111
        %v6067 = vunpack.c.l.b16 %v5112
        %v6068 = vpack.c.b16 %v6053, %v6052
        %v6069 = vpack.c.b16 %v6055, %v6054
        %v6070 = vpack.c.b16 %v6057, %v6056
        %v6071 = vpack.c.b16 %v6059, %v6058
        %v6072 = vpack.c.b16 %v6061, %v6060
        %v6073 = vpack.c.b16 %v6063, %v6062
        %v6074 = vpack.c.b16 %v6065, %v6064
        %v6075 = vpack.c.b16 %v6067, %v6066
        %6084 = vmatpush.bf16.msra.mxu0 %v6075
        %6085 = vmatpush.bf16.msra.mxu0 %v6074
        %6086 = vmatpush.bf16.msra.mxu0 %v6073
        %6087 = vmatpush.bf16.msra.mxu0 %v6072
        %6088 = vmatpush.bf16.msra.mxu0 %v6071
        %6089 = vmatpush.bf16.msra.mxu0 %v6070
        %6090 = vmatpush.bf16.msra.mxu0 %v6069
        %6091 = vmatpush.bf16.msra.mxu0 %v6068
        %6092 = vmatmul.bf16.gmra.mxu0 %v6034
        %v6093 = vpop.f32.mrf.mxu0
        %v6094 = vadd.f32 0.0, %v6093
        %v6095 = vpop.f32.mrf.mxu0
        %6096 = vdwg.mxu0
        %v6097 = vpack.i.b16 %v5262, %v5262
        %v6098 = vperm.slane %v6097, 0
        %v6116 = vunpack.c.l.b16 %v5113
        %v6117 = vunpack.c.l.b16 %v5114
        %v6118 = vunpack.c.l.b16 %v5115
        %v6119 = vunpack.c.l.b16 %v5116
        %v6120 = vunpack.c.l.b16 %v5117
        %v6121 = vunpack.c.l.b16 %v5118
        %v6122 = vunpack.c.l.b16 %v5119
        %v6123 = vunpack.c.l.b16 %v5120
        %v6124 = vunpack.c.l.b16 %v5121
        %v6125 = vunpack.c.l.b16 %v5122
        %v6126 = vunpack.c.l.b16 %v5123
        %v6127 = vunpack.c.l.b16 %v5124
        %v6128 = vunpack.c.l.b16 %v5125
        %v6129 = vunpack.c.l.b16 %v5126
        %v6130 = vunpack.c.l.b16 %v5127
        %v6131 = vunpack.c.l.b16 %v5128
        %v6132 = vpack.c.b16 %v6117, %v6116
        %v6133 = vpack.c.b16 %v6119, %v6118
        %v6134 = vpack.c.b16 %v6121, %v6120
        %v6135 = vpack.c.b16 %v6123, %v6122
        %v6136 = vpack.c.b16 %v6125, %v6124
        %v6137 = vpack.c.b16 %v6127, %v6126
        %v6138 = vpack.c.b16 %v6129, %v6128
        %v6139 = vpack.c.b16 %v6131, %v6130
        %6148 = vmatpush.bf16.msra.mxu0 %v6139
        %6149 = vmatpush.bf16.msra.mxu0 %v6138
        %6150 = vmatpush.bf16.msra.mxu0 %v6137
        %6151 = vmatpush.bf16.msra.mxu0 %v6136
        %6152 = vmatpush.bf16.msra.mxu0 %v6135
        %6153 = vmatpush.bf16.msra.mxu0 %v6134
        %6154 = vmatpush.bf16.msra.mxu0 %v6133
        %6155 = vmatpush.bf16.msra.mxu0 %v6132
        %6156 = vmatmul.bf16.gmra.mxu0 %v6098
        %v6157 = vpop.f32.mrf.mxu0
        %v6158 = vadd.f32 0.0, %v6157
        %v6159 = vpop.f32.mrf.mxu0
        %6160 = vdwg.mxu0
        %v6161 = vpack.i.b16 %v5263, %v5263
        %v6162 = vperm.slane %v6161, 0
        %v6180 = vunpack.c.l.b16 %v5129
        %v6181 = vunpack.c.l.b16 %v5130
        %v6182 = vunpack.c.l.b16 %v5131
        %v6183 = vunpack.c.l.b16 %v5132
        %v6184 = vunpack.c.l.b16 %v5133
        %v6185 = vunpack.c.l.b16 %v5134
        %v6186 = vunpack.c.l.b16 %v5135
        %v6187 = vunpack.c.l.b16 %v5136
        %v6188 = vunpack.c.l.b16 %v5137
        %v6189 = vunpack.c.l.b16 %v5138
        %v6190 = vunpack.c.l.b16 %v5139
        %v6191 = vunpack.c.l.b16 %v5140
        %v6192 = vunpack.c.l.b16 %v5141
        %v6193 = vunpack.c.l.b16 %v5142
        %v6194 = vunpack.c.l.b16 %v5143
        %v6195 = vunpack.c.l.b16 %v5144
        %v6196 = vpack.c.b16 %v6181, %v6180
        %v6197 = vpack.c.b16 %v6183, %v6182
        %v6198 = vpack.c.b16 %v6185, %v6184
        %v6199 = vpack.c.b16 %v6187, %v6186
        %v6200 = vpack.c.b16 %v6189, %v6188
        %v6201 = vpack.c.b16 %v6191, %v6190
        %v6202 = vpack.c.b16 %v6193, %v6192
        %v6203 = vpack.c.b16 %v6195, %v6194
        %6212 = vmatpush.bf16.msra.mxu0 %v6203
        %6213 = vmatpush.bf16.msra.mxu0 %v6202
        %6214 = vmatpush.bf16.msra.mxu0 %v6201
        %6215 = vmatpush.bf16.msra.mxu0 %v6200
        %6216 = vmatpush.bf16.msra.mxu0 %v6199
        %6217 = vmatpush.bf16.msra.mxu0 %v6198
        %6218 = vmatpush.bf16.msra.mxu0 %v6197
        %6219 = vmatpush.bf16.msra.mxu0 %v6196
        %6220 = vmatmul.bf16.gmra.mxu0 %v6162
        %v6221 = vpop.f32.mrf.mxu0
        %v6222 = vadd.f32 0.0, %v6221
        %v6223 = vpop.f32.mrf.mxu0
        %6224 = vdwg.mxu0
        %v6225 = vpack.i.b16 %v5264, %v5264
        %v6226 = vperm.slane %v6225, 0
        %v6244 = vunpack.c.l.b16 %v5145
        %v6245 = vunpack.c.l.b16 %v5146
        %v6246 = vunpack.c.l.b16 %v5147
        %v6247 = vunpack.c.l.b16 %v5148
        %v6248 = vunpack.c.l.b16 %v5149
        %v6249 = vunpack.c.l.b16 %v5150
        %v6250 = vunpack.c.l.b16 %v5151
        %v6251 = vunpack.c.l.b16 %v5152
        %v6252 = vunpack.c.l.b16 %v5153
        %v6253 = vunpack.c.l.b16 %v5154
        %v6254 = vunpack.c.l.b16 %v5155
        %v6255 = vunpack.c.l.b16 %v5156
        %v6256 = vunpack.c.l.b16 %v5157
        %v6257 = vunpack.c.l.b16 %v5158
        %v6258 = vunpack.c.l.b16 %v5159
        %v6259 = vunpack.c.l.b16 %v5160
        %v6260 = vpack.c.b16 %v6245, %v6244
        %v6261 = vpack.c.b16 %v6247, %v6246
        %v6262 = vpack.c.b16 %v6249, %v6248
        %v6263 = vpack.c.b16 %v6251, %v6250
        %v6264 = vpack.c.b16 %v6253, %v6252
        %v6265 = vpack.c.b16 %v6255, %v6254
        %v6266 = vpack.c.b16 %v6257, %v6256
        %v6267 = vpack.c.b16 %v6259, %v6258
        %6276 = vmatpush.bf16.msra.mxu0 %v6267
        %6277 = vmatpush.bf16.msra.mxu0 %v6266
        %6278 = vmatpush.bf16.msra.mxu0 %v6265
        %6279 = vmatpush.bf16.msra.mxu0 %v6264
        %6280 = vmatpush.bf16.msra.mxu0 %v6263
        %6281 = vmatpush.bf16.msra.mxu0 %v6262
        %6282 = vmatpush.bf16.msra.mxu0 %v6261
        %6283 = vmatpush.bf16.msra.mxu0 %v6260
        %6284 = vmatmul.bf16.gmra.mxu0 %v6226
        %v6285 = vpop.f32.mrf.mxu0
        %v6286 = vadd.f32 0.0, %v6285
        %v6287 = vpop.f32.mrf.mxu0
        %6288 = vdwg.mxu0
        %v6289 = vpack.i.b16 %v5203, %v5203
        %v6290 = vperm.slane %v6289, 0
        %6292 = vmatpush.bf16.msra.mxu0 %v5307
        %6293 = vmatpush.bf16.msra.mxu0 %v5306
        %6294 = vmatpush.bf16.msra.mxu0 %v5305
        %6295 = vmatpush.bf16.msra.mxu0 %v5304
        %6296 = vmatpush.bf16.msra.mxu0 %v5303
        %6297 = vmatpush.bf16.msra.mxu0 %v5302
        %6298 = vmatpush.bf16.msra.mxu0 %v5301
        %6299 = vmatpush.bf16.msra.mxu0 %v5300
        %6300 = vmatmul.bf16.gmra.mxu0 %v6290
        %v6301 = vpop.f32.mrf.mxu0
        %v6302 = vadd.f32 %v5326, %v6301
        %v6303 = vpop.f32.mrf.mxu0
        %6304 = vdwg.mxu0
        %v6305 = vpack.i.b16 %v5204, %v5204
        %v6306 = vperm.slane %v6305, 0
        %6308 = vmatpush.bf16.msra.mxu0 %v5371
        %6309 = vmatpush.bf16.msra.mxu0 %v5370
        %6310 = vmatpush.bf16.msra.mxu0 %v5369
        %6311 = vmatpush.bf16.msra.mxu0 %v5368
        %6312 = vmatpush.bf16.msra.mxu0 %v5367
        %6313 = vmatpush.bf16.msra.mxu0 %v5366
        %6314 = vmatpush.bf16.msra.mxu0 %v5365
        %6315 = vmatpush.bf16.msra.mxu0 %v5364
        %6316 = vmatmul.bf16.gmra.mxu0 %v6306
        %v6317 = vpop.f32.mrf.mxu0
        %v6318 = vadd.f32 %v5390, %v6317
        %v6319 = vpop.f32.mrf.mxu0
        %6320 = vdwg.mxu0
        %v6321 = vpack.i.b16 %v5205, %v5205
        %v6322 = vperm.slane %v6321, 0
        %6324 = vmatpush.bf16.msra.mxu0 %v5435
        %6325 = vmatpush.bf16.msra.mxu0 %v5434
        %6326 = vmatpush.bf16.msra.mxu0 %v5433
        %6327 = vmatpush.bf16.msra.mxu0 %v5432
        %6328 = vmatpush.bf16.msra.mxu0 %v5431
        %6329 = vmatpush.bf16.msra.mxu0 %v5430
        %6330 = vmatpush.bf16.msra.mxu0 %v5429
        %6331 = vmatpush.bf16.msra.mxu0 %v5428
        %6332 = vmatmul.bf16.gmra.mxu0 %v6322
        %v6333 = vpop.f32.mrf.mxu0
        %v6334 = vadd.f32 %v5454, %v6333
        %v6335 = vpop.f32.mrf.mxu0
        %6336 = vdwg.mxu0
        %v6337 = vpack.i.b16 %v5206, %v5206
        %v6338 = vperm.slane %v6337, 0
        %6340 = vmatpush.bf16.msra.mxu0 %v5499
        %6341 = vmatpush.bf16.msra.mxu0 %v5498
        %6342 = vmatpush.bf16.msra.mxu0 %v5497
        %6343 = vmatpush.bf16.msra.mxu0 %v5496
        %6344 = vmatpush.bf16.msra.mxu0 %v5495
        %6345 = vmatpush.bf16.msra.mxu0 %v5494
        %6346 = vmatpush.bf16.msra.mxu0 %v5493
        %6347 = vmatpush.bf16.msra.mxu0 %v5492
        %6348 = vmatmul.bf16.gmra.mxu0 %v6338
        %v6349 = vpop.f32.mrf.mxu0
        %v6350 = vadd.f32 %v5518, %v6349
        %v6351 = vpop.f32.mrf.mxu0
        %6352 = vdwg.mxu0
        %v6353 = vpack.i.b16 %v5207, %v5207
        %v6354 = vperm.slane %v6353, 0
        %6356 = vmatpush.bf16.msra.mxu0 %v5563
        %6357 = vmatpush.bf16.msra.mxu0 %v5562
        %6358 = vmatpush.bf16.msra.mxu0 %v5561
        %6359 = vmatpush.bf16.msra.mxu0 %v5560
        %6360 = vmatpush.bf16.msra.mxu0 %v5559
        %6361 = vmatpush.bf16.msra.mxu0 %v5558
        %6362 = vmatpush.bf16.msra.mxu0 %v5557
        %6363 = vmatpush.bf16.msra.mxu0 %v5556
        %6364 = vmatmul.bf16.gmra.mxu0 %v6354
        %v6365 = vpop.f32.mrf.mxu0
        %v6366 = vadd.f32 %v5582, %v6365
        %v6367 = vpop.f32.mrf.mxu0
        %6368 = vdwg.mxu0
        %v6369 = vpack.i.b16 %v5208, %v5208
        %v6370 = vperm.slane %v6369, 0
        %6372 = vmatpush.bf16.msra.mxu0 %v5627
        %6373 = vmatpush.bf16.msra.mxu0 %v5626
        %6374 = vmatpush.bf16.msra.mxu0 %v5625
        %6375 = vmatpush.bf16.msra.mxu0 %v5624
        %6376 = vmatpush.bf16.msra.mxu0 %v5623
        %6377 = vmatpush.bf16.msra.mxu0 %v5622
        %6378 = vmatpush.bf16.msra.mxu0 %v5621
        %6379 = vmatpush.bf16.msra.mxu0 %v5620
        %6380 = vmatmul.bf16.gmra.mxu0 %v6370
        %v6381 = vpop.f32.mrf.mxu0
        %v6382 = vadd.f32 %v5646, %v6381
        %v6383 = vpop.f32.mrf.mxu0
        %6384 = vdwg.mxu0
        %v6385 = vpack.i.b16 %v5209, %v5209
        %v6386 = vperm.slane %v6385, 0
        %6388 = vmatpush.bf16.msra.mxu0 %v5691
        %6389 = vmatpush.bf16.msra.mxu0 %v5690
        %6390 = vmatpush.bf16.msra.mxu0 %v5689
        %6391 = vmatpush.bf16.msra.mxu0 %v5688
        %6392 = vmatpush.bf16.msra.mxu0 %v5687
        %6393 = vmatpush.bf16.msra.mxu0 %v5686
        %6394 = vmatpush.bf16.msra.mxu0 %v5685
        %6395 = vmatpush.bf16.msra.mxu0 %v5684
        %6396 = vmatmul.bf16.gmra.mxu0 %v6386
        %v6397 = vpop.f32.mrf.mxu0
        %v6398 = vadd.f32 %v5710, %v6397
        %v6399 = vpop.f32.mrf.mxu0
        %6400 = vdwg.mxu0
        %v6401 = vpack.i.b16 %v5210, %v5210
        %v6402 = vperm.slane %v6401, 0
        %6404 = vmatpush.bf16.msra.mxu0 %v5755
        %6405 = vmatpush.bf16.msra.mxu0 %v5754
        %6406 = vmatpush.bf16.msra.mxu0 %v5753
        %6407 = vmatpush.bf16.msra.mxu0 %v5752
        %6408 = vmatpush.bf16.msra.mxu0 %v5751
        %6409 = vmatpush.bf16.msra.mxu0 %v5750
        %6410 = vmatpush.bf16.msra.mxu0 %v5749
        %6411 = vmatpush.bf16.msra.mxu0 %v5748
        %6412 = vmatmul.bf16.gmra.mxu0 %v6402
        %v6413 = vpop.f32.mrf.mxu0
        %v6414 = vadd.f32 %v5774, %v6413
        %v6415 = vpop.f32.mrf.mxu0
        %6416 = vdwg.mxu0
        %v6417 = vpack.i.b16 %v5211, %v5211
        %v6418 = vperm.slane %v6417, 0
        %6420 = vmatpush.bf16.msra.mxu0 %v5819
        %6421 = vmatpush.bf16.msra.mxu0 %v5818
        %6422 = vmatpush.bf16.msra.mxu0 %v5817
        %6423 = vmatpush.bf16.msra.mxu0 %v5816
        %6424 = vmatpush.bf16.msra.mxu0 %v5815
        %6425 = vmatpush.bf16.msra.mxu0 %v5814
        %6426 = vmatpush.bf16.msra.mxu0 %v5813
        %6427 = vmatpush.bf16.msra.mxu0 %v5812
        %6428 = vmatmul.bf16.gmra.mxu0 %v6418
        %v6429 = vpop.f32.mrf.mxu0
        %v6430 = vadd.f32 %v5838, %v6429
        %v6431 = vpop.f32.mrf.mxu0
        %6432 = vdwg.mxu0
        %v6433 = vpack.i.b16 %v5212, %v5212
        %v6434 = vperm.slane %v6433, 0
        %6436 = vmatpush.bf16.msra.mxu0 %v5883
        %6437 = vmatpush.bf16.msra.mxu0 %v5882
        %6438 = vmatpush.bf16.msra.mxu0 %v5881
        %6439 = vmatpush.bf16.msra.mxu0 %v5880
        %6440 = vmatpush.bf16.msra.mxu0 %v5879
        %6441 = vmatpush.bf16.msra.mxu0 %v5878
        %6442 = vmatpush.bf16.msra.mxu0 %v5877
        %6443 = vmatpush.bf16.msra.mxu0 %v5876
        %6444 = vmatmul.bf16.gmra.mxu0 %v6434
        %v6445 = vpop.f32.mrf.mxu0
        %v6446 = vadd.f32 %v5902, %v6445
        %v6447 = vpop.f32.mrf.mxu0
        %6448 = vdwg.mxu0
        %v6449 = vpack.i.b16 %v5213, %v5213
        %v6450 = vperm.slane %v6449, 0
        %6452 = vmatpush.bf16.msra.mxu0 %v5947
        %6453 = vmatpush.bf16.msra.mxu0 %v5946
        %6454 = vmatpush.bf16.msra.mxu0 %v5945
        %6455 = vmatpush.bf16.msra.mxu0 %v5944
        %6456 = vmatpush.bf16.msra.mxu0 %v5943
        %6457 = vmatpush.bf16.msra.mxu0 %v5942
        %6458 = vmatpush.bf16.msra.mxu0 %v5941
        %6459 = vmatpush.bf16.msra.mxu0 %v5940
        %6460 = vmatmul.bf16.gmra.mxu0 %v6450
        %v6461 = vpop.f32.mrf.mxu0
        %v6462 = vadd.f32 %v5966, %v6461
        %v6463 = vpop.f32.mrf.mxu0
        %6464 = vdwg.mxu0
        %v6465 = vpack.i.b16 %v5214, %v5214
        %v6466 = vperm.slane %v6465, 0
        %6468 = vmatpush.bf16.msra.mxu0 %v6011
        %6469 = vmatpush.bf16.msra.mxu0 %v6010
        %6470 = vmatpush.bf16.msra.mxu0 %v6009
        %6471 = vmatpush.bf16.msra.mxu0 %v6008
        %6472 = vmatpush.bf16.msra.mxu0 %v6007
        %6473 = vmatpush.bf16.msra.mxu0 %v6006
        %6474 = vmatpush.bf16.msra.mxu0 %v6005
        %6475 = vmatpush.bf16.msra.mxu0 %v6004
        %6476 = vmatmul.bf16.gmra.mxu0 %v6466
        %v6477 = vpop.f32.mrf.mxu0
        %v6478 = vadd.f32 %v6030, %v6477
        %v6479 = vpop.f32.mrf.mxu0
        %6480 = vdwg.mxu0
        %v6481 = vpack.i.b16 %v5215, %v5215
        %v6482 = vperm.slane %v6481, 0
        %6484 = vmatpush.bf16.msra.mxu0 %v6075
        %6485 = vmatpush.bf16.msra.mxu0 %v6074
        %6486 = vmatpush.bf16.msra.mxu0 %v6073
        %6487 = vmatpush.bf16.msra.mxu0 %v6072
        %6488 = vmatpush.bf16.msra.mxu0 %v6071
        %6489 = vmatpush.bf16.msra.mxu0 %v6070
        %6490 = vmatpush.bf16.msra.mxu0 %v6069
        %6491 = vmatpush.bf16.msra.mxu0 %v6068
        %6492 = vmatmul.bf16.gmra.mxu0 %v6482
        %v6493 = vpop.f32.mrf.mxu0
        %v6494 = vadd.f32 %v6094, %v6493
        %v6495 = vpop.f32.mrf.mxu0
        %6496 = vdwg.mxu0
        %v6497 = vpack.i.b16 %v5216, %v5216
        %v6498 = vperm.slane %v6497, 0
        %6500 = vmatpush.bf16.msra.mxu0 %v6139
        %6501 = vmatpush.bf16.msra.mxu0 %v6138
        %6502 = vmatpush.bf16.msra.mxu0 %v6137
        %6503 = vmatpush.bf16.msra.mxu0 %v6136
        %6504 = vmatpush.bf16.msra.mxu0 %v6135
        %6505 = vmatpush.bf16.msra.mxu0 %v6134
        %6506 = vmatpush.bf16.msra.mxu0 %v6133
        %6507 = vmatpush.bf16.msra.mxu0 %v6132
        %6508 = vmatmul.bf16.gmra.mxu0 %v6498
        %v6509 = vpop.f32.mrf.mxu0
        %v6510 = vadd.f32 %v6158, %v6509
        %v6511 = vpop.f32.mrf.mxu0
        %6512 = vdwg.mxu0
        %v6513 = vpack.i.b16 %v5217, %v5217
        %v6514 = vperm.slane %v6513, 0
        %6516 = vmatpush.bf16.msra.mxu0 %v6203
        %6517 = vmatpush.bf16.msra.mxu0 %v6202
        %6518 = vmatpush.bf16.msra.mxu0 %v6201
        %6519 = vmatpush.bf16.msra.mxu0 %v6200
        %6520 = vmatpush.bf16.msra.mxu0 %v6199
        %6521 = vmatpush.bf16.msra.mxu0 %v6198
        %6522 = vmatpush.bf16.msra.mxu0 %v6197
        %6523 = vmatpush.bf16.msra.mxu0 %v6196
        %6524 = vmatmul.bf16.gmra.mxu0 %v6514
        %v6525 = vpop.f32.mrf.mxu0
        %v6526 = vadd.f32 %v6222, %v6525
        %v6527 = vpop.f32.mrf.mxu0
        %6528 = vdwg.mxu0
        %v6529 = vpack.i.b16 %v5218, %v5218
        %v6530 = vperm.slane %v6529, 0
        %6532 = vmatpush.bf16.msra.mxu0 %v6267
        %6533 = vmatpush.bf16.msra.mxu0 %v6266
        %6534 = vmatpush.bf16.msra.mxu0 %v6265
        %6535 = vmatpush.bf16.msra.mxu0 %v6264
        %6536 = vmatpush.bf16.msra.mxu0 %v6263
        %6537 = vmatpush.bf16.msra.mxu0 %v6262
        %6538 = vmatpush.bf16.msra.mxu0 %v6261
        %6539 = vmatpush.bf16.msra.mxu0 %v6260
        %6540 = vmatmul.bf16.gmra.mxu0 %v6530
        %v6541 = vpop.f32.mrf.mxu0
        %v6542 = vadd.f32 %v6286, %v6541
        %v6543 = vpop.f32.mrf.mxu0
        %6544 = vdwg.mxu0
        %v6545 = vsub.f32 %v6302, %v6430
        %v6546 = vsub.f32 %v6318, %v6446
        %v6547 = vsub.f32 %v6334, %v6462
        %v6548 = vsub.f32 %v6350, %v6478
        %v6549 = vsub.f32 %v6366, %v6494
        %v6550 = vsub.f32 %v6382, %v6510
        %v6551 = vsub.f32 %v6398, %v6526
        %v6552 = vsub.f32 %v6414, %v6542
        %v6553 = vmul.f32 %v6545, %v6545
        %v6554 = vmul.f32 %v6546, %v6546
        %v6555 = vmul.f32 %v6547, %v6547
        %v6556 = vmul.f32 %v6548, %v6548
        %v6557 = vmul.f32 %v6549, %v6549
        %v6558 = vmul.f32 %v6550, %v6550
        %v6559 = vmul.f32 %v6551, %v6551
        %v6560 = vmul.f32 %v6552, %v6552
        %v6561 = vsel %vm5173, %v6553, 0.0
        %6562 = vadd.xlane.f32.xlu0 %v6561
        %v6563 = vpop.xlane.xlu0 %6562
        %v6564 = vsel %vm5173, %v6554, 0.0
        %6565 = vadd.xlane.f32.xlu0 %v6564
        %v6566 = vpop.xlane.xlu0 %6565
        %v6567 = vsel %vm5173, %v6555, 0.0
        %6568 = vadd.xlane.f32.xlu0 %v6567
        %v6569 = vpop.xlane.xlu0 %6568
        %v6570 = vsel %vm5173, %v6556, 0.0
        %6571 = vadd.xlane.f32.xlu0 %v6570
        %v6572 = vpop.xlane.xlu0 %6571
        %v6573 = vsel %vm5173, %v6557, 0.0
        %6574 = vadd.xlane.f32.xlu0 %v6573
        %v6575 = vpop.xlane.xlu0 %6574
        %v6576 = vsel %vm5173, %v6558, 0.0
        %6577 = vadd.xlane.f32.xlu0 %v6576
        %v6578 = vpop.xlane.xlu0 %6577
        %v6579 = vsel %vm5173, %v6559, 0.0
        %6580 = vadd.xlane.f32.xlu0 %v6579
        %v6581 = vpop.xlane.xlu0 %6580
        %v6582 = vsel %vm5173, %v6560, 0.0
        %6583 = vadd.xlane.f32.xlu0 %v6582
        %v6584 = vpop.xlane.xlu0 %6583
        %v6585 = vsel %vm5173, %v6563, 0.0
        %v6586 = vsel %vm5173, %v6566, 0.0
        %v6587 = vadd.f32 %v6585, %v6586
        %v6588 = vsel %vm5173, %v6569, 0.0
        %v6589 = vadd.f32 %v6587, %v6588
        %v6590 = vsel %vm5173, %v6572, 0.0
        %v6591 = vadd.f32 %v6589, %v6590
        %v6592 = vsel %vm5173, %v6575, 0.0
        %v6593 = vadd.f32 %v6591, %v6592
        %v6594 = vsel %vm5173, %v6578, 0.0
        %v6595 = vadd.f32 %v6593, %v6594
        %v6596 = vsel %vm5173, %v6581, 0.0
        %v6597 = vadd.f32 %v6595, %v6596
        %v6598 = vsel %vm5173, %v6584, 0.0
        %v6599 = vadd.f32 %v6597, %v6598
        %p6600 = scmp.eq.s32.totalorder %s24, 0
        // Predicated region
        $region37: #{tpu_custom_call.1} parent=27 // pred_check
          %p6601 = pneg %p6600
        $region38: #{tpu_custom_call.1} parent=27 // pred_check_branch
          %6603 = sbr.rel (%p6601) target = $region40
        $region39: #{tpu_custom_call.1} parent=27 // pred_region
          %vm6604 = vcmask 0
          %6605 = vst.msk [vmem:[%s219] sm:$0x1] %vm6604, 0.0
        $region40: #{tpu_custom_call.1} parent=27 // pred_fallthru
          _
        %v6606 = vld [vmem:[%s219] sm:$0x1]
        %v6607 = vadd.f32 %v6606, %v6599
        %vm6608 = vcmask 0
        %6609 = vst.msk [vmem:[%s219] sm:$0x1] %vm6608, %v6607
        %p6610 = scmp.eq.s32.totalorder %s24, 1
        // Predicated region
        $region41: #{tpu_custom_call.1} parent=27 // pred_check
          %p6611 = pneg %p6610
        $region42: #{tpu_custom_call.1} parent=27 // pred_check_branch
          %6613 = sbr.rel (%p6611) target = $region44
        $region43: #{tpu_custom_call.1} parent=27 // pred_region
          %v6614 = vld [vmem:[%s219] sm:$0x1]
          %v6615 = vmul.f32 %v6614, 0.0625
          %v6616 = vrsqrt.pop %v6615
          %v6617 = vmul.f32 %v6616, %v6615
          %v6618 = vmul.f32 %v6617, %v6616
          %v6619 = vmul.f32 0.5, %v6618
          %v6620 = vsub.f32 1.5, %v6619
          %v6621 = vmul.f32 %v6616, %v6620
          %v6622 = vmul.f32 %v6615, %v6621
          %vm6623 = vcmp.eq.f32.partialorder %v6615, inf
          %v6624 = vsel %vm6623, %v6615, %v6622
          %vm6625 = vcmp.eq.f32.partialorder %v6615, 0.0
          %v6626 = vand.u32 %v6615, 2147483648
          %v6627 = vsel %vm6625, %v6626, %v6624
          %6628 = vst.msk [vmem:[%s219] sm:$0x1] %vm6608, %v6627
        $region44: #{tpu_custom_call.1} parent=27 // pred_fallthru
          _
        %p6629 = scmp.lt.s32.totalorder %s23, 1
        %s6630 = scalar_select %p6629, %s23, 1
        %s6631 = scalar_lea.vmem %s2, %s6630
        // Predicated region
        $region45: #{tpu_custom_call.1} parent=27 // pred_check
          %p6632 = pneg %p103
        $region46: #{tpu_custom_call.1} parent=27 // pred_check_branch
          %6634 = sbr.rel (%p6632) target = $region48
        $region47: #{tpu_custom_call.1} parent=27 // pred_region
          _
        $region48: #{tpu_custom_call.1} parent=27 // pred_fallthru
          _
      $region28: #{tpu_custom_call.1} parent=5 // pred_fallthru
        _
      %p6635 = scmp.le.s32.totalorder 2, %s14
      // Predicated region
      $region49: #{tpu_custom_call.1} parent=5 // pred_check
        %p6636 = pneg %p6635
      $region50: #{tpu_custom_call.1} parent=5 // pred_check_branch
        %6638 = sbr.rel (%p6636) target = $region52
      $region51: #{tpu_custom_call.1} parent=5 // pred_region
        %s6639 = ssub.s32 %s14, 2
        // Predicated region
        $region53: #{tpu_custom_call.1} parent=51 // pred_check
          %p6640 = pneg %p109
        $region54: #{tpu_custom_call.1} parent=51 // pred_check_branch
          %6642 = sbr.rel (%p6640) target = $region56
        $region55: #{tpu_custom_call.1} parent=51 // pred_region
          %p6643 = scmp.lt.s32.totalorder %s25, 1
          %s6644 = scalar_select %p6643, %s25, 1
          %s6645 = scalar_lea.vmem %s2, %s6644
        $region56: #{tpu_custom_call.1} parent=51 // pred_fallthru
          _
      $region52: #{tpu_custom_call.1} parent=5 // pred_fallthru
        _
    $region6: #{tpu_custom_call.1} parent=1 // loop_footer
      %s18 = sadd.s32 1, %s14
    $region7: #{tpu_custom_call.1} parent=1 // loop_footer_branch
      %13 = sbr.rel target = $region3
    $region8: #{tpu_custom_call.1} parent=1 // loop_exit
      _
    %6646 = vsyncpa [#allocation3], 1
    %s6647 = scalar_lea.sflag [#allocation3], 1
    %6648 = vsyncpa %s6647, 1
    %6649 = vsyncpa [#allocation5], 1
    %s6650 = scalar_lea.sflag [#allocation5], 1
    %6651 = vsyncpa %s6650, 1

</llo_original>
